<compile_context>
chip_gen: v5e
topology: v5e:2x2
jax: 0.10.0
libtpu: 0.0.40
codegen_flags: <defaults>
</compile_context>

<pallas_src>
import functools

import jax
import jax.numpy as jnp
import numpy as np
from jax import lax
from jax.experimental import pallas as pl
from jax.experimental.pallas import tpu as pltpu

# Tap ordering matches PyTorch Conv2d weights: t = kh*3 + kw, (dh, dw) = (kh-1, kw-1).
_TAPS = tuple((kh - 1, kw - 1) for kh in range(3) for kw in range(3))


# -----------------------------------------------------------------------------
# Fused kernel: conv1 -> bn1 -> sn1 -> conv2 -> bn2 -> sn2 -> sew
# -----------------------------------------------------------------------------
def _sew_block_kernel(H, W, pad, cnf,
                      x_ref, w1_ref, s1_ref, b1_ref, w2_ref, s2_ref, b2_ref,
                      m_ref, *rest):
    src_ref = rest[-1]            # flat conv-source scratch (C, pad + HW + pad)
    out_refs = rest[:-1]          # (x07,)  or  (x01..x07)
    emit_features = len(out_refs) == 7

    NB = x_ref.shape[0]
    Cout = w1_ref.shape[1]
    HW = H * W

    # Hoist small loads out of the image / tap loops.
    w1_taps = [w1_ref[t] for t in range(9)]            # (Cout, Cin)  bf16
    w2_taps = [w2_ref[t] for t in range(9)]            # (Cout, Cout) bf16
    tap_valid = [m_ref[t] != 0.0 for t in range(9)]    # (1, HW) bool
    s1 = s1_ref[...]
    b1 = b1_ref[...]
    s2 = s2_ref[...]
    b2 = b2_ref[...]

    def conv3x3(w_taps):
        # The current source image sits in src_ref at lane offset `pad`.
        # Each tap: static lane-slice (shift -> XLU), NaN-safe masked select,
        # bf16 cast at the MXU boundary, f32 accumulation.
        acc = jnp.zeros((Cout, HW), jnp.float32)
        for t, (dh, dw) in enumerate(_TAPS):
            start = pad + dh * W + dw
            patch = src_ref[:, start:start + HW]
            patch = jnp.where(tap_valid[t], patch, 0.0).astype(jnp.bfloat16)
            acc = acc + jnp.dot(w_taps[t], patch,
                                preferred_element_type=jnp.float32)
        return acc

    for i in range(NB):
        x = x_ref[i]                                    # (Cin, HW) f32
        src_ref[:, pad:pad + HW] = x                    # lane-aligned store

        # ---- conv1 -> bn1 -> sn1 ----
        x01 = conv3x3(w1_taps)
        x02 = x01 * s1 + b1
        x03 = (x02 >= 1.0).astype(jnp.float32)          # IF neuron, v_th = 1.0

        # conv2 source overwrites the same scratch (conv1 fully consumed).
        src_ref[:, pad:pad + HW] = x03

        # ---- conv2 -> bn2 -> sn2 -> sew ----
        x04 = conv3x3(w2_taps)
        x05 = x04 * s2 + b2
        x06 = (x05 >= 1.0).astype(jnp.float32)

        identity = x                                    # downsample=None path
        if cnf == 'ADD':
            x07 = identity + x06
        elif cnf == 'AND':
            x07 = identity * x06
        elif cnf == 'IAND':
            x07 = identity * (1.0 - x06)
        else:
            raise NotImplementedError(cnf)

        if emit_features:
            for ref, val in zip(out_refs,
                                (x01, x02, x03, x04, x05, x06, x07)):
                ref[i] = val.astype(ref.dtype)
        else:
            out_refs[0][i] = x07.astype(out_refs[0].dtype)


# -----------------------------------------------------------------------------
# Wrapper
# -----------------------------------------------------------------------------
def _make_tap_masks(H, W):
    """(9, 1, H*W) float32 validity masks (1 where the shifted pixel exists)."""
    HW = H * W
    hh = np.repeat(np.arange(H), W)
    ww = np.tile(np.arange(W), H)
    m = np.zeros((9, 1, HW), np.float32)
    for t, (dh, dw) in enumerate(_TAPS):
        ok = ((hh + dh >= 0) & (hh + dh < H) & (ww + dw >= 0) & (ww + dw < W))
        m[t, 0] = ok.astype(np.float32)
    return jnp.asarray(m)


def basic_block_forward(x_nchw, params, cnf='ADD', *, return_features=False,
                        images_per_step=None):
    """SEW BasicBlock forward (stride=1, downsample=None, single-step IF).

    return_features=False -> x07 only (NCHW); intermediates never hit HBM.
    return_features=True  -> [x01..x07] (NCHW), matching the PyTorch module.
    """
    N, Cin, H, W = x_nchw.shape
    Cout = params['w1'].shape[1]
    assert params['w1'].shape[2] == Cin
    assert Cin == Cout, "downsample=None requires inplanes == planes"
    HW = H * W
    n_out = 7 if return_features else 1
    pad = -(-(W + 1) // 128) * 128        # guard lanes, multiple of 128

    if images_per_step is None:
        # Largest divisor of N whose per-step working set (input + double-
        # buffered outputs) stays comfortably inside the default scoped VMEM.
        images_per_step = 1
        for nb in range(N, 0, -1):
            if N % nb == 0 and 2 * nb * HW * 4 * (Cin + n_out * Cout) <= (4 << 20):
                images_per_step = nb
                break
    NB = images_per_step
    assert N % NB == 0

    # Free contiguous reshape: spatial dim goes onto the lane axis.
    x_flat = x_nchw.reshape(N, Cin, HW)
    masks = _make_tap_masks(H, W)

    ch_spec = pl.BlockSpec((Cout, 1), lambda n: (0, 0))
    in_specs = [
        pl.BlockSpec((NB, Cin, HW), lambda n: (n, 0, 0)),     # x
        pl.BlockSpec((9, Cout, Cin), lambda n: (0, 0, 0)),    # w1 (bf16)
        ch_spec, ch_spec,                                     # s1, b1
        pl.BlockSpec((9, Cout, Cout), lambda n: (0, 0, 0)),   # w2 (bf16)
        ch_spec, ch_spec,                                     # s2, b2
        pl.BlockSpec((9, 1, HW), lambda n: (0, 0, 0)),        # tap masks
    ]
    out_block = pl.BlockSpec((NB, Cout, HW), lambda n: (n, 0, 0))
    if return_features:
        out_dtypes = (jnp.float32, jnp.float32, jnp.bfloat16, jnp.float32,
                      jnp.float32, jnp.bfloat16, jnp.float32)
        out_shape = tuple(jax.ShapeDtypeStruct((N, Cout, HW), dt)
                          for dt in out_dtypes)
        out_specs = tuple(out_block for _ in range(7))
    else:
        out_shape = jax.ShapeDtypeStruct((N, Cout, HW), jnp.float32)
        out_specs = out_block

    # Advisory cost estimate (2 convs of 9 taps each).
    flops = 2 * 9 * HW * N * (Cin * Cout + Cout * Cout)
    shapes = out_shape if isinstance(out_shape, tuple) else (out_shape,)
    out_bytes = sum(int(np.prod(s.shape)) * s.dtype.itemsize for s in shapes)
    in_bytes = (x_flat.size * 4 + params['w1'].size * 2 + params['w2'].size * 2
                + 4 * Cout * 4 + masks.size * 4)
    cost = pl.CostEstimate(flops=flops, transcendentals=0,
                           bytes_accessed=in_bytes + out_bytes)

    grid_spec = pltpu.PrefetchScalarGridSpec(
        num_scalar_prefetch=0,
        grid=(N // NB,),
        in_specs=in_specs,
        out_specs=out_specs,
        scratch_shapes=[
            pltpu.VMEM((Cout, 2 * pad + HW), jnp.float32),  # flat conv source
        ],
    )

    outs = pl.pallas_call(
        functools.partial(_sew_block_kernel, H, W, pad, cnf),
        out_shape=out_shape,
        grid_spec=grid_spec,
        compiler_params=pltpu.CompilerParams(
            dimension_semantics=("parallel",)),
        cost_estimate=cost,
    )(x_flat, params['w1'], params['s1'], params['b1'],
      params['w2'], params['s2'], params['b2'], masks)

    # (N, C, H*W) -> (N, C, H, W): contiguous reshape, no relayout / transpose.
    if return_features:
        return [o.reshape(N, Cout, H, W) for o in outs]
    return outs.reshape(N, Cout, H, W)


def make_params(key, inplanes, planes):
    k1, k2, k3, k4 = jax.random.split(key, 4)
    # conv weights in PyTorch layout (Cout, Cin, 3, 3)
    w1 = 0.2 * jax.random.normal(k1, (planes, inplanes, 3, 3), jnp.float32)
    w2 = 0.2 * jax.random.normal(k2, (planes, planes, 3, 3), jnp.float32)
    eps = 1e-5
    # BN1 (eval mode, folded): gamma, beta, running_mean, running_var
    g1 = 1.0 + 0.1 * jax.random.normal(k3, (planes,), jnp.float32)
    be1 = 0.05 * jnp.arange(planes, dtype=jnp.float32)
    rm1 = 0.01 * jnp.arange(planes, dtype=jnp.float32)
    rv1 = jnp.ones((planes,), jnp.float32)
    s1 = g1 / jnp.sqrt(rv1 + eps)
    b1 = be1 - rm1 * s1
    # BN2
    g2 = 1.0 + 0.1 * jax.random.normal(k4, (planes,), jnp.float32)
    be2 = -0.05 * jnp.arange(planes, dtype=jnp.float32)
    rm2 = -0.01 * jnp.arange(planes, dtype=jnp.float32)
    rv2 = jnp.ones((planes,), jnp.float32)
    s2 = g2 / jnp.sqrt(rv2 + eps)
    b2 = be2 - rm2 * s2

    # Kernel layout: (9, Cout, Cin), tap index kh*3+kw, bf16 for the MXU.
    def to_kernel(w):
        cout, cin = w.shape[0], w.shape[1]
        return (jnp.transpose(w, (2, 3, 0, 1))
                .reshape(9, cout, cin).astype(jnp.bfloat16))

    return {
        'w1': to_kernel(w1), 'w2': to_kernel(w2),
        's1': s1.reshape(planes, 1), 'b1': b1.reshape(planes, 1),
        's2': s2.reshape(planes, 1), 'b2': b2.reshape(planes, 1),
    }


# -----------------------------------------------------------------------------
# Pure-JAX reference (independent: lax.conv, same bf16 operand quantization)
# -----------------------------------------------------------------------------
def _ref_forward(x_nchw, params, cnf='ADD'):
    def conv(x, w9):  # w9: (9, Cout, Cin) bf16
        cout, cin = w9.shape[1], w9.shape[2]
        w_hwio = jnp.transpose(w9.reshape(3, 3, cout, cin), (0, 1, 3, 2))
        return lax.conv_general_dilated(
            x.astype(jnp.bfloat16), w_hwio,
            window_strides=(1, 1), padding=((1, 1), (1, 1)),
            dimension_numbers=('NCHW', 'HWIO', 'NCHW'),
            preferred_element_type=jnp.float32)

    def bn(x, s, b):
        return x * s.reshape(1, -1, 1, 1) + b.reshape(1, -1, 1, 1)

    spike = lambda v: (v >= 1.0).astype(jnp.float32)
    x01 = conv(x_nchw, params['w1'])
    x02 = bn(x01, params['s1'], params['b1'])
    x03 = spike(x02)
    x04 = conv(x03, params['w2'])
    x05 = bn(x04, params['s2'], params['b2'])
    x06 = spike(x05)
    if cnf == 'ADD':
        x07 = x_nchw + x06
    elif cnf == 'AND':
        x07 = x_nchw * x06
    else:  # IAND
        x07 = x_nchw * (1.0 - x06)
    return [x01, x02, x03, x04, x05, x06, x07]


if __name__ == "__main__":
    key = jax.random.PRNGKey(0)
    kx, kp = jax.random.split(key)

    N, C, H, W = 2, 4, 16, 16          # inplanes = planes = 4, stride = 1
    x = jax.random.normal(kx, (N, C, H, W), jnp.float32)
    params = make_params(kp, C, C)

    # Fast path: only the SEW block output x07 (intermediates stay in VMEM).
    y_add = jax.block_until_ready(basic_block_forward(x, params, cnf='ADD'))
    y_iand = jax.block_until_ready(basic_block_forward(x, params, cnf='IAND'))

    # Feature path: full 7-element list, matching the PyTorch module.
    feats = jax.block_until_ready(
        basic_block_forward(x, params, cnf='ADD', return_features=True))

    ref_add = _ref_forward(x, params, cnf='ADD')
    ref_iand = _ref_forward(x, params, cnf='IAND')

    np.testing.assert_allclose(np.asarray(y_add, np.float32),
                               np.asarray(ref_add[-1]), rtol=1e-4, atol=1e-4)
    np.testing.assert_allclose(np.asarray(y_iand, np.float32),
                               np.asarray(ref_iand[-1]), rtol=1e-4, atol=1e-4)
    for f, r in zip(feats, ref_add):
        np.testing.assert_allclose(np.asarray(f, np.float32),
                                   np.asarray(r), rtol=1e-4, atol=1e-4)

    print("KERNEL_OK")
</pallas_src>

<mosaic_0001>
module attributes {stable_mosaic.version = 11 : i64} {
  func.func @_sew_block_kernel(%arg0: i32, %arg1: memref<2x4x256xf32, #tpu.memory_space<vmem>>, %arg2: memref<9x4x4xbf16, #tpu.memory_space<vmem>>, %arg3: memref<4x1xf32, #tpu.memory_space<vmem>>, %arg4: memref<4x1xf32, #tpu.memory_space<vmem>>, %arg5: memref<9x4x4xbf16, #tpu.memory_space<vmem>>, %arg6: memref<4x1xf32, #tpu.memory_space<vmem>>, %arg7: memref<4x1xf32, #tpu.memory_space<vmem>>, %arg8: memref<9x1x256xf32, #tpu.memory_space<vmem>>, %arg9: memref<2x4x256xf32, #tpu.memory_space<vmem>>, %arg10: memref<4x512xf32, #tpu.memory_space<vmem>>) attributes {dimension_semantics = [#tpu.dimension_semantics<parallel>], iteration_bounds = array<i64: 1>, scalar_prefetch = 0 : i64, scratch_operands = 1 : i64, tpu.core_type = #tpu.core_type<tc>, window_params = [{transform_indices = @transform_0, window_bounds = array<i64: 2, 4, 256>}, {pipeline_mode = #tpu.pipeline_mode<synchronous>, transform_indices = @transform_1, window_bounds = array<i64: 9, 4, 4>}, {pipeline_mode = #tpu.pipeline_mode<synchronous>, transform_indices = @transform_2, window_bounds = array<i64: 4, 1>}, {pipeline_mode = #tpu.pipeline_mode<synchronous>, transform_indices = @transform_3, window_bounds = array<i64: 4, 1>}, {pipeline_mode = #tpu.pipeline_mode<synchronous>, transform_indices = @transform_4, window_bounds = array<i64: 9, 4, 4>}, {pipeline_mode = #tpu.pipeline_mode<synchronous>, transform_indices = @transform_5, window_bounds = array<i64: 4, 1>}, {pipeline_mode = #tpu.pipeline_mode<synchronous>, transform_indices = @transform_6, window_bounds = array<i64: 4, 1>}, {pipeline_mode = #tpu.pipeline_mode<synchronous>, transform_indices = @transform_7, window_bounds = array<i64: 9, 1, 256>}, {transform_indices = @transform_8, window_bounds = array<i64: 2, 4, 256>}]} {
    %c0 = arith.constant 0 : index
    %c0_0 = arith.constant 0 : index
    %c0_1 = arith.constant 0 : index
    %0 = vector.load %arg2[%c0, %c0_0, %c0_1] : memref<9x4x4xbf16, #tpu.memory_space<vmem>>, vector<1x4x4xbf16>
    %1 = vector.shape_cast %0 : vector<1x4x4xbf16> to vector<4x4xbf16>
    %c1 = arith.constant 1 : index
    %c0_2 = arith.constant 0 : index
    %c0_3 = arith.constant 0 : index
    %2 = vector.load %arg2[%c1, %c0_2, %c0_3] : memref<9x4x4xbf16, #tpu.memory_space<vmem>>, vector<1x4x4xbf16>
    %3 = vector.shape_cast %2 : vector<1x4x4xbf16> to vector<4x4xbf16>
    %c2 = arith.constant 2 : index
    %c0_4 = arith.constant 0 : index
    %c0_5 = arith.constant 0 : index
    %4 = vector.load %arg2[%c2, %c0_4, %c0_5] : memref<9x4x4xbf16, #tpu.memory_space<vmem>>, vector<1x4x4xbf16>
    %5 = vector.shape_cast %4 : vector<1x4x4xbf16> to vector<4x4xbf16>
    %c3 = arith.constant 3 : index
    %c0_6 = arith.constant 0 : index
    %c0_7 = arith.constant 0 : index
    %6 = vector.load %arg2[%c3, %c0_6, %c0_7] : memref<9x4x4xbf16, #tpu.memory_space<vmem>>, vector<1x4x4xbf16>
    %7 = vector.shape_cast %6 : vector<1x4x4xbf16> to vector<4x4xbf16>
    %c4 = arith.constant 4 : index
    %c0_8 = arith.constant 0 : index
    %c0_9 = arith.constant 0 : index
    %8 = vector.load %arg2[%c4, %c0_8, %c0_9] : memref<9x4x4xbf16, #tpu.memory_space<vmem>>, vector<1x4x4xbf16>
    %9 = vector.shape_cast %8 : vector<1x4x4xbf16> to vector<4x4xbf16>
    %c5 = arith.constant 5 : index
    %c0_10 = arith.constant 0 : index
    %c0_11 = arith.constant 0 : index
    %10 = vector.load %arg2[%c5, %c0_10, %c0_11] : memref<9x4x4xbf16, #tpu.memory_space<vmem>>, vector<1x4x4xbf16>
    %11 = vector.shape_cast %10 : vector<1x4x4xbf16> to vector<4x4xbf16>
    %c6 = arith.constant 6 : index
    %c0_12 = arith.constant 0 : index
    %c0_13 = arith.constant 0 : index
    %12 = vector.load %arg2[%c6, %c0_12, %c0_13] : memref<9x4x4xbf16, #tpu.memory_space<vmem>>, vector<1x4x4xbf16>
    %13 = vector.shape_cast %12 : vector<1x4x4xbf16> to vector<4x4xbf16>
    %c7 = arith.constant 7 : index
    %c0_14 = arith.constant 0 : index
    %c0_15 = arith.constant 0 : index
    %14 = vector.load %arg2[%c7, %c0_14, %c0_15] : memref<9x4x4xbf16, #tpu.memory_space<vmem>>, vector<1x4x4xbf16>
    %15 = vector.shape_cast %14 : vector<1x4x4xbf16> to vector<4x4xbf16>
    %c8 = arith.constant 8 : index
    %c0_16 = arith.constant 0 : index
    %c0_17 = arith.constant 0 : index
    %16 = vector.load %arg2[%c8, %c0_16, %c0_17] : memref<9x4x4xbf16, #tpu.memory_space<vmem>>, vector<1x4x4xbf16>
    %17 = vector.shape_cast %16 : vector<1x4x4xbf16> to vector<4x4xbf16>
    %c0_18 = arith.constant 0 : index
    %c0_19 = arith.constant 0 : index
    %c0_20 = arith.constant 0 : index
    %18 = vector.load %arg5[%c0_18, %c0_19, %c0_20] : memref<9x4x4xbf16, #tpu.memory_space<vmem>>, vector<1x4x4xbf16>
    %19 = vector.shape_cast %18 : vector<1x4x4xbf16> to vector<4x4xbf16>
    %c1_21 = arith.constant 1 : index
    %c0_22 = arith.constant 0 : index
    %c0_23 = arith.constant 0 : index
    %20 = vector.load %arg5[%c1_21, %c0_22, %c0_23] : memref<9x4x4xbf16, #tpu.memory_space<vmem>>, vector<1x4x4xbf16>
    %21 = vector.shape_cast %20 : vector<1x4x4xbf16> to vector<4x4xbf16>
    %c2_24 = arith.constant 2 : index
    %c0_25 = arith.constant 0 : index
    %c0_26 = arith.constant 0 : index
    %22 = vector.load %arg5[%c2_24, %c0_25, %c0_26] : memref<9x4x4xbf16, #tpu.memory_space<vmem>>, vector<1x4x4xbf16>
    %23 = vector.shape_cast %22 : vector<1x4x4xbf16> to vector<4x4xbf16>
    %c3_27 = arith.constant 3 : index
    %c0_28 = arith.constant 0 : index
    %c0_29 = arith.constant 0 : index
    %24 = vector.load %arg5[%c3_27, %c0_28, %c0_29] : memref<9x4x4xbf16, #tpu.memory_space<vmem>>, vector<1x4x4xbf16>
    %25 = vector.shape_cast %24 : vector<1x4x4xbf16> to vector<4x4xbf16>
    %c4_30 = arith.constant 4 : index
    %c0_31 = arith.constant 0 : index
    %c0_32 = arith.constant 0 : index
    %26 = vector.load %arg5[%c4_30, %c0_31, %c0_32] : memref<9x4x4xbf16, #tpu.memory_space<vmem>>, vector<1x4x4xbf16>
    %27 = vector.shape_cast %26 : vector<1x4x4xbf16> to vector<4x4xbf16>
    %c5_33 = arith.constant 5 : index
    %c0_34 = arith.constant 0 : index
    %c0_35 = arith.constant 0 : index
    %28 = vector.load %arg5[%c5_33, %c0_34, %c0_35] : memref<9x4x4xbf16, #tpu.memory_space<vmem>>, vector<1x4x4xbf16>
    %29 = vector.shape_cast %28 : vector<1x4x4xbf16> to vector<4x4xbf16>
    %c6_36 = arith.constant 6 : index
    %c0_37 = arith.constant 0 : index
    %c0_38 = arith.constant 0 : index
    %30 = vector.load %arg5[%c6_36, %c0_37, %c0_38] : memref<9x4x4xbf16, #tpu.memory_space<vmem>>, vector<1x4x4xbf16>
    %31 = vector.shape_cast %30 : vector<1x4x4xbf16> to vector<4x4xbf16>
    %c7_39 = arith.constant 7 : index
    %c0_40 = arith.constant 0 : index
    %c0_41 = arith.constant 0 : index
    %32 = vector.load %arg5[%c7_39, %c0_40, %c0_41] : memref<9x4x4xbf16, #tpu.memory_space<vmem>>, vector<1x4x4xbf16>
    %33 = vector.shape_cast %32 : vector<1x4x4xbf16> to vector<4x4xbf16>
    %c8_42 = arith.constant 8 : index
    %c0_43 = arith.constant 0 : index
    %c0_44 = arith.constant 0 : index
    %34 = vector.load %arg5[%c8_42, %c0_43, %c0_44] : memref<9x4x4xbf16, #tpu.memory_space<vmem>>, vector<1x4x4xbf16>
    %35 = vector.shape_cast %34 : vector<1x4x4xbf16> to vector<4x4xbf16>
    %c0_45 = arith.constant 0 : index
    %c0_46 = arith.constant 0 : index
    %c0_47 = arith.constant 0 : index
    %36 = vector.load %arg8[%c0_45, %c0_46, %c0_47] : memref<9x1x256xf32, #tpu.memory_space<vmem>>, vector<1x1x256xf32>
    %37 = vector.shape_cast %36 : vector<1x1x256xf32> to vector<1x256xf32>
    %cst = arith.constant 0.000000e+00 : f32
    %38 = vector.broadcast %cst : f32 to vector<1x256xf32>
    %39 = arith.cmpf one, %37, %38 : vector<1x256xf32>
    %c1_48 = arith.constant 1 : index
    %c0_49 = arith.constant 0 : index
    %c0_50 = arith.constant 0 : index
    %40 = vector.load %arg8[%c1_48, %c0_49, %c0_50] : memref<9x1x256xf32, #tpu.memory_space<vmem>>, vector<1x1x256xf32>
    %41 = vector.shape_cast %40 : vector<1x1x256xf32> to vector<1x256xf32>
    %cst_51 = arith.constant 0.000000e+00 : f32
    %42 = vector.broadcast %cst_51 : f32 to vector<1x256xf32>
    %43 = arith.cmpf one, %41, %42 : vector<1x256xf32>
    %c2_52 = arith.constant 2 : index
    %c0_53 = arith.constant 0 : index
    %c0_54 = arith.constant 0 : index
    %44 = vector.load %arg8[%c2_52, %c0_53, %c0_54] : memref<9x1x256xf32, #tpu.memory_space<vmem>>, vector<1x1x256xf32>
    %45 = vector.shape_cast %44 : vector<1x1x256xf32> to vector<1x256xf32>
    %cst_55 = arith.constant 0.000000e+00 : f32
    %46 = vector.broadcast %cst_55 : f32 to vector<1x256xf32>
    %47 = arith.cmpf one, %45, %46 : vector<1x256xf32>
    %c3_56 = arith.constant 3 : index
    %c0_57 = arith.constant 0 : index
    %c0_58 = arith.constant 0 : index
    %48 = vector.load %arg8[%c3_56, %c0_57, %c0_58] : memref<9x1x256xf32, #tpu.memory_space<vmem>>, vector<1x1x256xf32>
    %49 = vector.shape_cast %48 : vector<1x1x256xf32> to vector<1x256xf32>
    %cst_59 = arith.constant 0.000000e+00 : f32
    %50 = vector.broadcast %cst_59 : f32 to vector<1x256xf32>
    %51 = arith.cmpf one, %49, %50 : vector<1x256xf32>
    %c4_60 = arith.constant 4 : index
    %c0_61 = arith.constant 0 : index
    %c0_62 = arith.constant 0 : index
    %52 = vector.load %arg8[%c4_60, %c0_61, %c0_62] : memref<9x1x256xf32, #tpu.memory_space<vmem>>, vector<1x1x256xf32>
    %53 = vector.shape_cast %52 : vector<1x1x256xf32> to vector<1x256xf32>
    %cst_63 = arith.constant 0.000000e+00 : f32
    %54 = vector.broadcast %cst_63 : f32 to vector<1x256xf32>
    %55 = arith.cmpf one, %53, %54 : vector<1x256xf32>
    %c5_64 = arith.constant 5 : index
    %c0_65 = arith.constant 0 : index
    %c0_66 = arith.constant 0 : index
    %56 = vector.load %arg8[%c5_64, %c0_65, %c0_66] : memref<9x1x256xf32, #tpu.memory_space<vmem>>, vector<1x1x256xf32>
    %57 = vector.shape_cast %56 : vector<1x1x256xf32> to vector<1x256xf32>
    %cst_67 = arith.constant 0.000000e+00 : f32
    %58 = vector.broadcast %cst_67 : f32 to vector<1x256xf32>
    %59 = arith.cmpf one, %57, %58 : vector<1x256xf32>
    %c6_68 = arith.constant 6 : index
    %c0_69 = arith.constant 0 : index
    %c0_70 = arith.constant 0 : index
    %60 = vector.load %arg8[%c6_68, %c0_69, %c0_70] : memref<9x1x256xf32, #tpu.memory_space<vmem>>, vector<1x1x256xf32>
    %61 = vector.shape_cast %60 : vector<1x1x256xf32> to vector<1x256xf32>
    %cst_71 = arith.constant 0.000000e+00 : f32
    %62 = vector.broadcast %cst_71 : f32 to vector<1x256xf32>
    %63 = arith.cmpf one, %61, %62 : vector<1x256xf32>
    %c7_72 = arith.constant 7 : index
    %c0_73 = arith.constant 0 : index
    %c0_74 = arith.constant 0 : index
    %64 = vector.load %arg8[%c7_72, %c0_73, %c0_74] : memref<9x1x256xf32, #tpu.memory_space<vmem>>, vector<1x1x256xf32>
    %65 = vector.shape_cast %64 : vector<1x1x256xf32> to vector<1x256xf32>
    %cst_75 = arith.constant 0.000000e+00 : f32
    %66 = vector.broadcast %cst_75 : f32 to vector<1x256xf32>
    %67 = arith.cmpf one, %65, %66 : vector<1x256xf32>
    %c8_76 = arith.constant 8 : index
    %c0_77 = arith.constant 0 : index
    %c0_78 = arith.constant 0 : index
    %68 = vector.load %arg8[%c8_76, %c0_77, %c0_78] : memref<9x1x256xf32, #tpu.memory_space<vmem>>, vector<1x1x256xf32>
    %69 = vector.shape_cast %68 : vector<1x1x256xf32> to vector<1x256xf32>
    %cst_79 = arith.constant 0.000000e+00 : f32
    %70 = vector.broadcast %cst_79 : f32 to vector<1x256xf32>
    %71 = arith.cmpf one, %69, %70 : vector<1x256xf32>
    %c0_80 = arith.constant 0 : index
    %c0_81 = arith.constant 0 : index
    %72 = vector.load %arg3[%c0_80, %c0_81] : memref<4x1xf32, #tpu.memory_space<vmem>>, vector<4x1xf32>
    %c0_82 = arith.constant 0 : index
    %c0_83 = arith.constant 0 : index
    %73 = vector.load %arg4[%c0_82, %c0_83] : memref<4x1xf32, #tpu.memory_space<vmem>>, vector<4x1xf32>
    %c0_84 = arith.constant 0 : index
    %c0_85 = arith.constant 0 : index
    %74 = vector.load %arg6[%c0_84, %c0_85] : memref<4x1xf32, #tpu.memory_space<vmem>>, vector<4x1xf32>
    %c0_86 = arith.constant 0 : index
    %c0_87 = arith.constant 0 : index
    %75 = vector.load %arg7[%c0_86, %c0_87] : memref<4x1xf32, #tpu.memory_space<vmem>>, vector<4x1xf32>
    %c0_88 = arith.constant 0 : index
    %c0_89 = arith.constant 0 : index
    %c0_90 = arith.constant 0 : index
    %76 = vector.load %arg1[%c0_88, %c0_89, %c0_90] : memref<2x4x256xf32, #tpu.memory_space<vmem>>, vector<1x4x256xf32>
    %77 = vector.shape_cast %76 : vector<1x4x256xf32> to vector<4x256xf32>
    %c0_91 = arith.constant 0 : index
    %c128 = arith.constant 128 : index
    %78 = vector.load %arg10[%c0_91, %c128] : memref<4x512xf32, #tpu.memory_space<vmem>>, vector<4x256xf32>
    tpu.vector_store %arg10[%c0_91, %c128], %77 {strides = array<i32>} : memref<4x512xf32, #tpu.memory_space<vmem>>, vector<4x256xf32>,
    %cst_92 = arith.constant 0.000000e+00 : f32
    %79 = vector.broadcast %cst_92 : f32 to vector<4x256xf32>
    %c0_93 = arith.constant 0 : index
    %c111 = arith.constant 111 : index
    %80 = vector.load %arg10[%c0_93, %c111] : memref<4x512xf32, #tpu.memory_space<vmem>>, vector<4x256xf32>
    %cst_94 = arith.constant 0.000000e+00 : f32
    %81 = vector.shape_cast %39 : vector<1x256xi1> to vector<1x256xi1>
    %82 = vector.broadcast %81 : vector<1x256xi1> to vector<4x256xi1>
    %83 = vector.broadcast %cst_94 : f32 to vector<4x256xf32>
    %84 = arith.select %82, %80, %83 : vector<4x256xi1>, vector<4x256xf32>
    %85 = arith.truncf %84 : vector<4x256xf32> to vector<4x256xbf16>
    %cst_95 = arith.constant dense<0.000000e+00> : vector<4x256xf32>
    %86 = tpu.matmul %1, %85, %cst_95 {dimension_numbers = #tpu.dot_dimension_numbers<[1], [0], [0], [1], [0, 0, 1, 1], [], []>} : vector<4x4xbf16>, vector<4x256xbf16>, vector<4x256xf32> -> vector<4x256xf32>
    %87 = arith.addf %79, %86 : vector<4x256xf32>
    %c0_96 = arith.constant 0 : index
    %c112 = arith.constant 112 : index
    %88 = vector.load %arg10[%c0_96, %c112] : memref<4x512xf32, #tpu.memory_space<vmem>>, vector<4x256xf32>
    %cst_97 = arith.constant 0.000000e+00 : f32
    %89 = vector.shape_cast %43 : vector<1x256xi1> to vector<1x256xi1>
    %90 = vector.broadcast %89 : vector<1x256xi1> to vector<4x256xi1>
    %91 = vector.broadcast %cst_97 : f32 to vector<4x256xf32>
    %92 = arith.select %90, %88, %91 : vector<4x256xi1>, vector<4x256xf32>
    %93 = arith.truncf %92 : vector<4x256xf32> to vector<4x256xbf16>
    %cst_98 = arith.constant dense<0.000000e+00> : vector<4x256xf32>
    %94 = tpu.matmul %3, %93, %cst_98 {dimension_numbers = #tpu.dot_dimension_numbers<[1], [0], [0], [1], [0, 0, 1, 1], [], []>} : vector<4x4xbf16>, vector<4x256xbf16>, vector<4x256xf32> -> vector<4x256xf32>
    %95 = arith.addf %87, %94 : vector<4x256xf32>
    %c0_99 = arith.constant 0 : index
    %c113 = arith.constant 113 : index
    %96 = vector.load %arg10[%c0_99, %c113] : memref<4x512xf32, #tpu.memory_space<vmem>>, vector<4x256xf32>
    %cst_100 = arith.constant 0.000000e+00 : f32
    %97 = vector.shape_cast %47 : vector<1x256xi1> to vector<1x256xi1>
    %98 = vector.broadcast %97 : vector<1x256xi1> to vector<4x256xi1>
    %99 = vector.broadcast %cst_100 : f32 to vector<4x256xf32>
    %100 = arith.select %98, %96, %99 : vector<4x256xi1>, vector<4x256xf32>
    %101 = arith.truncf %100 : vector<4x256xf32> to vector<4x256xbf16>
    %cst_101 = arith.constant dense<0.000000e+00> : vector<4x256xf32>
    %102 = tpu.matmul %5, %101, %cst_101 {dimension_numbers = #tpu.dot_dimension_numbers<[1], [0], [0], [1], [0, 0, 1, 1], [], []>} : vector<4x4xbf16>, vector<4x256xbf16>, vector<4x256xf32> -> vector<4x256xf32>
    %103 = arith.addf %95, %102 : vector<4x256xf32>
    %c0_102 = arith.constant 0 : index
    %c127 = arith.constant 127 : index
    %104 = vector.load %arg10[%c0_102, %c127] : memref<4x512xf32, #tpu.memory_space<vmem>>, vector<4x256xf32>
    %cst_103 = arith.constant 0.000000e+00 : f32
    %105 = vector.shape_cast %51 : vector<1x256xi1> to vector<1x256xi1>
    %106 = vector.broadcast %105 : vector<1x256xi1> to vector<4x256xi1>
    %107 = vector.broadcast %cst_103 : f32 to vector<4x256xf32>
    %108 = arith.select %106, %104, %107 : vector<4x256xi1>, vector<4x256xf32>
    %109 = arith.truncf %108 : vector<4x256xf32> to vector<4x256xbf16>
    %cst_104 = arith.constant dense<0.000000e+00> : vector<4x256xf32>
    %110 = tpu.matmul %7, %109, %cst_104 {dimension_numbers = #tpu.dot_dimension_numbers<[1], [0], [0], [1], [0, 0, 1, 1], [], []>} : vector<4x4xbf16>, vector<4x256xbf16>, vector<4x256xf32> -> vector<4x256xf32>
    %111 = arith.addf %103, %110 : vector<4x256xf32>
    %c0_105 = arith.constant 0 : index
    %c128_106 = arith.constant 128 : index
    %112 = vector.load %arg10[%c0_105, %c128_106] : memref<4x512xf32, #tpu.memory_space<vmem>>, vector<4x256xf32>
    %cst_107 = arith.constant 0.000000e+00 : f32
    %113 = vector.shape_cast %55 : vector<1x256xi1> to vector<1x256xi1>
    %114 = vector.broadcast %113 : vector<1x256xi1> to vector<4x256xi1>
    %115 = vector.broadcast %cst_107 : f32 to vector<4x256xf32>
    %116 = arith.select %114, %112, %115 : vector<4x256xi1>, vector<4x256xf32>
    %117 = arith.truncf %116 : vector<4x256xf32> to vector<4x256xbf16>
    %cst_108 = arith.constant dense<0.000000e+00> : vector<4x256xf32>
    %118 = tpu.matmul %9, %117, %cst_108 {dimension_numbers = #tpu.dot_dimension_numbers<[1], [0], [0], [1], [0, 0, 1, 1], [], []>} : vector<4x4xbf16>, vector<4x256xbf16>, vector<4x256xf32> -> vector<4x256xf32>
    %119 = arith.addf %111, %118 : vector<4x256xf32>
    %c0_109 = arith.constant 0 : index
    %c129 = arith.constant 129 : index
    %120 = vector.load %arg10[%c0_109, %c129] : memref<4x512xf32, #tpu.memory_space<vmem>>, vector<4x256xf32>
    %cst_110 = arith.constant 0.000000e+00 : f32
    %121 = vector.shape_cast %59 : vector<1x256xi1> to vector<1x256xi1>
    %122 = vector.broadcast %121 : vector<1x256xi1> to vector<4x256xi1>
    %123 = vector.broadcast %cst_110 : f32 to vector<4x256xf32>
    %124 = arith.select %122, %120, %123 : vector<4x256xi1>, vector<4x256xf32>
    %125 = arith.truncf %124 : vector<4x256xf32> to vector<4x256xbf16>
    %cst_111 = arith.constant dense<0.000000e+00> : vector<4x256xf32>
    %126 = tpu.matmul %11, %125, %cst_111 {dimension_numbers = #tpu.dot_dimension_numbers<[1], [0], [0], [1], [0, 0, 1, 1], [], []>} : vector<4x4xbf16>, vector<4x256xbf16>, vector<4x256xf32> -> vector<4x256xf32>
    %127 = arith.addf %119, %126 : vector<4x256xf32>
    %c0_112 = arith.constant 0 : index
    %c143 = arith.constant 143 : index
    %128 = vector.load %arg10[%c0_112, %c143] : memref<4x512xf32, #tpu.memory_space<vmem>>, vector<4x256xf32>
    %cst_113 = arith.constant 0.000000e+00 : f32
    %129 = vector.shape_cast %63 : vector<1x256xi1> to vector<1x256xi1>
    %130 = vector.broadcast %129 : vector<1x256xi1> to vector<4x256xi1>
    %131 = vector.broadcast %cst_113 : f32 to vector<4x256xf32>
    %132 = arith.select %130, %128, %131 : vector<4x256xi1>, vector<4x256xf32>
    %133 = arith.truncf %132 : vector<4x256xf32> to vector<4x256xbf16>
    %cst_114 = arith.constant dense<0.000000e+00> : vector<4x256xf32>
    %134 = tpu.matmul %13, %133, %cst_114 {dimension_numbers = #tpu.dot_dimension_numbers<[1], [0], [0], [1], [0, 0, 1, 1], [], []>} : vector<4x4xbf16>, vector<4x256xbf16>, vector<4x256xf32> -> vector<4x256xf32>
    %135 = arith.addf %127, %134 : vector<4x256xf32>
    %c0_115 = arith.constant 0 : index
    %c144 = arith.constant 144 : index
    %136 = vector.load %arg10[%c0_115, %c144] : memref<4x512xf32, #tpu.memory_space<vmem>>, vector<4x256xf32>
    %cst_116 = arith.constant 0.000000e+00 : f32
    %137 = vector.shape_cast %67 : vector<1x256xi1> to vector<1x256xi1>
    %138 = vector.broadcast %137 : vector<1x256xi1> to vector<4x256xi1>
    %139 = vector.broadcast %cst_116 : f32 to vector<4x256xf32>
    %140 = arith.select %138, %136, %139 : vector<4x256xi1>, vector<4x256xf32>
    %141 = arith.truncf %140 : vector<4x256xf32> to vector<4x256xbf16>
    %cst_117 = arith.constant dense<0.000000e+00> : vector<4x256xf32>
    %142 = tpu.matmul %15, %141, %cst_117 {dimension_numbers = #tpu.dot_dimension_numbers<[1], [0], [0], [1], [0, 0, 1, 1], [], []>} : vector<4x4xbf16>, vector<4x256xbf16>, vector<4x256xf32> -> vector<4x256xf32>
    %143 = arith.addf %135, %142 : vector<4x256xf32>
    %c0_118 = arith.constant 0 : index
    %c145 = arith.constant 145 : index
    %144 = vector.load %arg10[%c0_118, %c145] : memref<4x512xf32, #tpu.memory_space<vmem>>, vector<4x256xf32>
    %cst_119 = arith.constant 0.000000e+00 : f32
    %145 = vector.shape_cast %71 : vector<1x256xi1> to vector<1x256xi1>
    %146 = vector.broadcast %145 : vector<1x256xi1> to vector<4x256xi1>
    %147 = vector.broadcast %cst_119 : f32 to vector<4x256xf32>
    %148 = arith.select %146, %144, %147 : vector<4x256xi1>, vector<4x256xf32>
    %149 = arith.truncf %148 : vector<4x256xf32> to vector<4x256xbf16>
    %cst_120 = arith.constant dense<0.000000e+00> : vector<4x256xf32>
    %150 = tpu.matmul %17, %149, %cst_120 {dimension_numbers = #tpu.dot_dimension_numbers<[1], [0], [0], [1], [0, 0, 1, 1], [], []>} : vector<4x4xbf16>, vector<4x256xbf16>, vector<4x256xf32> -> vector<4x256xf32>
    %151 = arith.addf %143, %150 : vector<4x256xf32>
    %152 = vector.broadcast %72 : vector<4x1xf32> to vector<4x256xf32>
    %153 = arith.mulf %151, %152 : vector<4x256xf32>
    %154 = vector.broadcast %73 : vector<4x1xf32> to vector<4x256xf32>
    %155 = arith.addf %153, %154 : vector<4x256xf32>
    %cst_121 = arith.constant 1.000000e+00 : f32
    %156 = vector.broadcast %cst_121 : f32 to vector<4x256xf32>
    %157 = arith.cmpf oge, %155, %156 : vector<4x256xf32>
    %158 = arith.extui %157 : vector<4x256xi1> to vector<4x256xi32>
    %159 = arith.sitofp %158 : vector<4x256xi32> to vector<4x256xf32>
    %c0_122 = arith.constant 0 : index
    %c128_123 = arith.constant 128 : index
    %160 = vector.load %arg10[%c0_122, %c128_123] : memref<4x512xf32, #tpu.memory_space<vmem>>, vector<4x256xf32>
    tpu.vector_store %arg10[%c0_122, %c128_123], %159 {strides = array<i32>} : memref<4x512xf32, #tpu.memory_space<vmem>>, vector<4x256xf32>,
    %cst_124 = arith.constant 0.000000e+00 : f32
    %161 = vector.broadcast %cst_124 : f32 to vector<4x256xf32>
    %c0_125 = arith.constant 0 : index
    %c111_126 = arith.constant 111 : index
    %162 = vector.load %arg10[%c0_125, %c111_126] : memref<4x512xf32, #tpu.memory_space<vmem>>, vector<4x256xf32>
    %cst_127 = arith.constant 0.000000e+00 : f32
    %163 = vector.shape_cast %39 : vector<1x256xi1> to vector<1x256xi1>
    %164 = vector.broadcast %163 : vector<1x256xi1> to vector<4x256xi1>
    %165 = vector.broadcast %cst_127 : f32 to vector<4x256xf32>
    %166 = arith.select %164, %162, %165 : vector<4x256xi1>, vector<4x256xf32>
    %167 = arith.truncf %166 : vector<4x256xf32> to vector<4x256xbf16>
    %cst_128 = arith.constant dense<0.000000e+00> : vector<4x256xf32>
    %168 = tpu.matmul %19, %167, %cst_128 {dimension_numbers = #tpu.dot_dimension_numbers<[1], [0], [0], [1], [0, 0, 1, 1], [], []>} : vector<4x4xbf16>, vector<4x256xbf16>, vector<4x256xf32> -> vector<4x256xf32>
    %169 = arith.addf %161, %168 : vector<4x256xf32>
    %c0_129 = arith.constant 0 : index
    %c112_130 = arith.constant 112 : index
    %170 = vector.load %arg10[%c0_129, %c112_130] : memref<4x512xf32, #tpu.memory_space<vmem>>, vector<4x256xf32>
    %cst_131 = arith.constant 0.000000e+00 : f32
    %171 = vector.shape_cast %43 : vector<1x256xi1> to vector<1x256xi1>
    %172 = vector.broadcast %171 : vector<1x256xi1> to vector<4x256xi1>
    %173 = vector.broadcast %cst_131 : f32 to vector<4x256xf32>
    %174 = arith.select %172, %170, %173 : vector<4x256xi1>, vector<4x256xf32>
    %175 = arith.truncf %174 : vector<4x256xf32> to vector<4x256xbf16>
    %cst_132 = arith.constant dense<0.000000e+00> : vector<4x256xf32>
    %176 = tpu.matmul %21, %175, %cst_132 {dimension_numbers = #tpu.dot_dimension_numbers<[1], [0], [0], [1], [0, 0, 1, 1], [], []>} : vector<4x4xbf16>, vector<4x256xbf16>, vector<4x256xf32> -> vector<4x256xf32>
    %177 = arith.addf %169, %176 : vector<4x256xf32>
    %c0_133 = arith.constant 0 : index
    %c113_134 = arith.constant 113 : index
    %178 = vector.load %arg10[%c0_133, %c113_134] : memref<4x512xf32, #tpu.memory_space<vmem>>, vector<4x256xf32>
    %cst_135 = arith.constant 0.000000e+00 : f32
    %179 = vector.shape_cast %47 : vector<1x256xi1> to vector<1x256xi1>
    %180 = vector.broadcast %179 : vector<1x256xi1> to vector<4x256xi1>
    %181 = vector.broadcast %cst_135 : f32 to vector<4x256xf32>
    %182 = arith.select %180, %178, %181 : vector<4x256xi1>, vector<4x256xf32>
    %183 = arith.truncf %182 : vector<4x256xf32> to vector<4x256xbf16>
    %cst_136 = arith.constant dense<0.000000e+00> : vector<4x256xf32>
    %184 = tpu.matmul %23, %183, %cst_136 {dimension_numbers = #tpu.dot_dimension_numbers<[1], [0], [0], [1], [0, 0, 1, 1], [], []>} : vector<4x4xbf16>, vector<4x256xbf16>, vector<4x256xf32> -> vector<4x256xf32>
    %185 = arith.addf %177, %184 : vector<4x256xf32>
    %c0_137 = arith.constant 0 : index
    %c127_138 = arith.constant 127 : index
    %186 = vector.load %arg10[%c0_137, %c127_138] : memref<4x512xf32, #tpu.memory_space<vmem>>, vector<4x256xf32>
    %cst_139 = arith.constant 0.000000e+00 : f32
    %187 = vector.shape_cast %51 : vector<1x256xi1> to vector<1x256xi1>
    %188 = vector.broadcast %187 : vector<1x256xi1> to vector<4x256xi1>
    %189 = vector.broadcast %cst_139 : f32 to vector<4x256xf32>
    %190 = arith.select %188, %186, %189 : vector<4x256xi1>, vector<4x256xf32>
    %191 = arith.truncf %190 : vector<4x256xf32> to vector<4x256xbf16>
    %cst_140 = arith.constant dense<0.000000e+00> : vector<4x256xf32>
    %192 = tpu.matmul %25, %191, %cst_140 {dimension_numbers = #tpu.dot_dimension_numbers<[1], [0], [0], [1], [0, 0, 1, 1], [], []>} : vector<4x4xbf16>, vector<4x256xbf16>, vector<4x256xf32> -> vector<4x256xf32>
    %193 = arith.addf %185, %192 : vector<4x256xf32>
    %c0_141 = arith.constant 0 : index
    %c128_142 = arith.constant 128 : index
    %194 = vector.load %arg10[%c0_141, %c128_142] : memref<4x512xf32, #tpu.memory_space<vmem>>, vector<4x256xf32>
    %cst_143 = arith.constant 0.000000e+00 : f32
    %195 = vector.shape_cast %55 : vector<1x256xi1> to vector<1x256xi1>
    %196 = vector.broadcast %195 : vector<1x256xi1> to vector<4x256xi1>
    %197 = vector.broadcast %cst_143 : f32 to vector<4x256xf32>
    %198 = arith.select %196, %194, %197 : vector<4x256xi1>, vector<4x256xf32>
    %199 = arith.truncf %198 : vector<4x256xf32> to vector<4x256xbf16>
    %cst_144 = arith.constant dense<0.000000e+00> : vector<4x256xf32>
    %200 = tpu.matmul %27, %199, %cst_144 {dimension_numbers = #tpu.dot_dimension_numbers<[1], [0], [0], [1], [0, 0, 1, 1], [], []>} : vector<4x4xbf16>, vector<4x256xbf16>, vector<4x256xf32> -> vector<4x256xf32>
    %201 = arith.addf %193, %200 : vector<4x256xf32>
    %c0_145 = arith.constant 0 : index
    %c129_146 = arith.constant 129 : index
    %202 = vector.load %arg10[%c0_145, %c129_146] : memref<4x512xf32, #tpu.memory_space<vmem>>, vector<4x256xf32>
    %cst_147 = arith.constant 0.000000e+00 : f32
    %203 = vector.shape_cast %59 : vector<1x256xi1> to vector<1x256xi1>
    %204 = vector.broadcast %203 : vector<1x256xi1> to vector<4x256xi1>
    %205 = vector.broadcast %cst_147 : f32 to vector<4x256xf32>
    %206 = arith.select %204, %202, %205 : vector<4x256xi1>, vector<4x256xf32>
    %207 = arith.truncf %206 : vector<4x256xf32> to vector<4x256xbf16>
    %cst_148 = arith.constant dense<0.000000e+00> : vector<4x256xf32>
    %208 = tpu.matmul %29, %207, %cst_148 {dimension_numbers = #tpu.dot_dimension_numbers<[1], [0], [0], [1], [0, 0, 1, 1], [], []>} : vector<4x4xbf16>, vector<4x256xbf16>, vector<4x256xf32> -> vector<4x256xf32>
    %209 = arith.addf %201, %208 : vector<4x256xf32>
    %c0_149 = arith.constant 0 : index
    %c143_150 = arith.constant 143 : index
    %210 = vector.load %arg10[%c0_149, %c143_150] : memref<4x512xf32, #tpu.memory_space<vmem>>, vector<4x256xf32>
    %cst_151 = arith.constant 0.000000e+00 : f32
    %211 = vector.shape_cast %63 : vector<1x256xi1> to vector<1x256xi1>
    %212 = vector.broadcast %211 : vector<1x256xi1> to vector<4x256xi1>
    %213 = vector.broadcast %cst_151 : f32 to vector<4x256xf32>
    %214 = arith.select %212, %210, %213 : vector<4x256xi1>, vector<4x256xf32>
    %215 = arith.truncf %214 : vector<4x256xf32> to vector<4x256xbf16>
    %cst_152 = arith.constant dense<0.000000e+00> : vector<4x256xf32>
    %216 = tpu.matmul %31, %215, %cst_152 {dimension_numbers = #tpu.dot_dimension_numbers<[1], [0], [0], [1], [0, 0, 1, 1], [], []>} : vector<4x4xbf16>, vector<4x256xbf16>, vector<4x256xf32> -> vector<4x256xf32>
    %217 = arith.addf %209, %216 : vector<4x256xf32>
    %c0_153 = arith.constant 0 : index
    %c144_154 = arith.constant 144 : index
    %218 = vector.load %arg10[%c0_153, %c144_154] : memref<4x512xf32, #tpu.memory_space<vmem>>, vector<4x256xf32>
    %cst_155 = arith.constant 0.000000e+00 : f32
    %219 = vector.shape_cast %67 : vector<1x256xi1> to vector<1x256xi1>
    %220 = vector.broadcast %219 : vector<1x256xi1> to vector<4x256xi1>
    %221 = vector.broadcast %cst_155 : f32 to vector<4x256xf32>
    %222 = arith.select %220, %218, %221 : vector<4x256xi1>, vector<4x256xf32>
    %223 = arith.truncf %222 : vector<4x256xf32> to vector<4x256xbf16>
    %cst_156 = arith.constant dense<0.000000e+00> : vector<4x256xf32>
    %224 = tpu.matmul %33, %223, %cst_156 {dimension_numbers = #tpu.dot_dimension_numbers<[1], [0], [0], [1], [0, 0, 1, 1], [], []>} : vector<4x4xbf16>, vector<4x256xbf16>, vector<4x256xf32> -> vector<4x256xf32>
    %225 = arith.addf %217, %224 : vector<4x256xf32>
    %c0_157 = arith.constant 0 : index
    %c145_158 = arith.constant 145 : index
    %226 = vector.load %arg10[%c0_157, %c145_158] : memref<4x512xf32, #tpu.memory_space<vmem>>, vector<4x256xf32>
    %cst_159 = arith.constant 0.000000e+00 : f32
    %227 = vector.shape_cast %71 : vector<1x256xi1> to vector<1x256xi1>
    %228 = vector.broadcast %227 : vector<1x256xi1> to vector<4x256xi1>
    %229 = vector.broadcast %cst_159 : f32 to vector<4x256xf32>
    %230 = arith.select %228, %226, %229 : vector<4x256xi1>, vector<4x256xf32>
    %231 = arith.truncf %230 : vector<4x256xf32> to vector<4x256xbf16>
    %cst_160 = arith.constant dense<0.000000e+00> : vector<4x256xf32>
    %232 = tpu.matmul %35, %231, %cst_160 {dimension_numbers = #tpu.dot_dimension_numbers<[1], [0], [0], [1], [0, 0, 1, 1], [], []>} : vector<4x4xbf16>, vector<4x256xbf16>, vector<4x256xf32> -> vector<4x256xf32>
    %233 = arith.addf %225, %232 : vector<4x256xf32>
    %234 = vector.broadcast %74 : vector<4x1xf32> to vector<4x256xf32>
    %235 = arith.mulf %233, %234 : vector<4x256xf32>
    %236 = vector.broadcast %75 : vector<4x1xf32> to vector<4x256xf32>
    %237 = arith.addf %235, %236 : vector<4x256xf32>
    %cst_161 = arith.constant 1.000000e+00 : f32
    %238 = vector.broadcast %cst_161 : f32 to vector<4x256xf32>
    %239 = arith.cmpf oge, %237, %238 : vector<4x256xf32>
    %240 = arith.extui %239 : vector<4x256xi1> to vector<4x256xi32>
    %241 = arith.sitofp %240 : vector<4x256xi32> to vector<4x256xf32>
    %242 = arith.addf %77, %241 : vector<4x256xf32>
    %c0_162 = arith.constant 0 : index
    %c0_163 = arith.constant 0 : index
    %c0_164 = arith.constant 0 : index
    %243 = vector.load %arg9[%c0_162, %c0_163, %c0_164] : memref<2x4x256xf32, #tpu.memory_space<vmem>>, vector<1x4x256xf32>
    %244 = vector.shape_cast %243 : vector<1x4x256xf32> to vector<4x256xf32>
    %245 = vector.shape_cast %242 : vector<4x256xf32> to vector<1x4x256xf32>
    tpu.vector_store %arg9[%c0_162, %c0_163, %c0_164], %245 {strides = array<i32>} : memref<2x4x256xf32, #tpu.memory_space<vmem>>, vector<1x4x256xf32>,
    %c1_165 = arith.constant 1 : index
    %c0_166 = arith.constant 0 : index
    %c0_167 = arith.constant 0 : index
    %246 = vector.load %arg1[%c1_165, %c0_166, %c0_167] : memref<2x4x256xf32, #tpu.memory_space<vmem>>, vector<1x4x256xf32>
    %247 = vector.shape_cast %246 : vector<1x4x256xf32> to vector<4x256xf32>
    %c0_168 = arith.constant 0 : index
    %c128_169 = arith.constant 128 : index
    %248 = vector.load %arg10[%c0_168, %c128_169] : memref<4x512xf32, #tpu.memory_space<vmem>>, vector<4x256xf32>
    tpu.vector_store %arg10[%c0_168, %c128_169], %247 {strides = array<i32>} : memref<4x512xf32, #tpu.memory_space<vmem>>, vector<4x256xf32>,
    %cst_170 = arith.constant 0.000000e+00 : f32
    %249 = vector.broadcast %cst_170 : f32 to vector<4x256xf32>
    %c0_171 = arith.constant 0 : index
    %c111_172 = arith.constant 111 : index
    %250 = vector.load %arg10[%c0_171, %c111_172] : memref<4x512xf32, #tpu.memory_space<vmem>>, vector<4x256xf32>
    %cst_173 = arith.constant 0.000000e+00 : f32
    %251 = vector.shape_cast %39 : vector<1x256xi1> to vector<1x256xi1>
    %252 = vector.broadcast %251 : vector<1x256xi1> to vector<4x256xi1>
    %253 = vector.broadcast %cst_173 : f32 to vector<4x256xf32>
    %254 = arith.select %252, %250, %253 : vector<4x256xi1>, vector<4x256xf32>
    %255 = arith.truncf %254 : vector<4x256xf32> to vector<4x256xbf16>
    %cst_174 = arith.constant dense<0.000000e+00> : vector<4x256xf32>
    %256 = tpu.matmul %1, %255, %cst_174 {dimension_numbers = #tpu.dot_dimension_numbers<[1], [0], [0], [1], [0, 0, 1, 1], [], []>} : vector<4x4xbf16>, vector<4x256xbf16>, vector<4x256xf32> -> vector<4x256xf32>
    %257 = arith.addf %249, %256 : vector<4x256xf32>
    %c0_175 = arith.constant 0 : index
    %c112_176 = arith.constant 112 : index
    %258 = vector.load %arg10[%c0_175, %c112_176] : memref<4x512xf32, #tpu.memory_space<vmem>>, vector<4x256xf32>
    %cst_177 = arith.constant 0.000000e+00 : f32
    %259 = vector.shape_cast %43 : vector<1x256xi1> to vector<1x256xi1>
    %260 = vector.broadcast %259 : vector<1x256xi1> to vector<4x256xi1>
    %261 = vector.broadcast %cst_177 : f32 to vector<4x256xf32>
    %262 = arith.select %260, %258, %261 : vector<4x256xi1>, vector<4x256xf32>
    %263 = arith.truncf %262 : vector<4x256xf32> to vector<4x256xbf16>
    %cst_178 = arith.constant dense<0.000000e+00> : vector<4x256xf32>
    %264 = tpu.matmul %3, %263, %cst_178 {dimension_numbers = #tpu.dot_dimension_numbers<[1], [0], [0], [1], [0, 0, 1, 1], [], []>} : vector<4x4xbf16>, vector<4x256xbf16>, vector<4x256xf32> -> vector<4x256xf32>
    %265 = arith.addf %257, %264 : vector<4x256xf32>
    %c0_179 = arith.constant 0 : index
    %c113_180 = arith.constant 113 : index
    %266 = vector.load %arg10[%c0_179, %c113_180] : memref<4x512xf32, #tpu.memory_space<vmem>>, vector<4x256xf32>
    %cst_181 = arith.constant 0.000000e+00 : f32
    %267 = vector.shape_cast %47 : vector<1x256xi1> to vector<1x256xi1>
    %268 = vector.broadcast %267 : vector<1x256xi1> to vector<4x256xi1>
    %269 = vector.broadcast %cst_181 : f32 to vector<4x256xf32>
    %270 = arith.select %268, %266, %269 : vector<4x256xi1>, vector<4x256xf32>
    %271 = arith.truncf %270 : vector<4x256xf32> to vector<4x256xbf16>
    %cst_182 = arith.constant dense<0.000000e+00> : vector<4x256xf32>
    %272 = tpu.matmul %5, %271, %cst_182 {dimension_numbers = #tpu.dot_dimension_numbers<[1], [0], [0], [1], [0, 0, 1, 1], [], []>} : vector<4x4xbf16>, vector<4x256xbf16>, vector<4x256xf32> -> vector<4x256xf32>
    %273 = arith.addf %265, %272 : vector<4x256xf32>
    %c0_183 = arith.constant 0 : index
    %c127_184 = arith.constant 127 : index
    %274 = vector.load %arg10[%c0_183, %c127_184] : memref<4x512xf32, #tpu.memory_space<vmem>>, vector<4x256xf32>
    %cst_185 = arith.constant 0.000000e+00 : f32
    %275 = vector.shape_cast %51 : vector<1x256xi1> to vector<1x256xi1>
    %276 = vector.broadcast %275 : vector<1x256xi1> to vector<4x256xi1>
    %277 = vector.broadcast %cst_185 : f32 to vector<4x256xf32>
    %278 = arith.select %276, %274, %277 : vector<4x256xi1>, vector<4x256xf32>
    %279 = arith.truncf %278 : vector<4x256xf32> to vector<4x256xbf16>
    %cst_186 = arith.constant dense<0.000000e+00> : vector<4x256xf32>
    %280 = tpu.matmul %7, %279, %cst_186 {dimension_numbers = #tpu.dot_dimension_numbers<[1], [0], [0], [1], [0, 0, 1, 1], [], []>} : vector<4x4xbf16>, vector<4x256xbf16>, vector<4x256xf32> -> vector<4x256xf32>
    %281 = arith.addf %273, %280 : vector<4x256xf32>
    %c0_187 = arith.constant 0 : index
    %c128_188 = arith.constant 128 : index
    %282 = vector.load %arg10[%c0_187, %c128_188] : memref<4x512xf32, #tpu.memory_space<vmem>>, vector<4x256xf32>
    %cst_189 = arith.constant 0.000000e+00 : f32
    %283 = vector.shape_cast %55 : vector<1x256xi1> to vector<1x256xi1>
    %284 = vector.broadcast %283 : vector<1x256xi1> to vector<4x256xi1>
    %285 = vector.broadcast %cst_189 : f32 to vector<4x256xf32>
    %286 = arith.select %284, %282, %285 : vector<4x256xi1>, vector<4x256xf32>
    %287 = arith.truncf %286 : vector<4x256xf32> to vector<4x256xbf16>
    %cst_190 = arith.constant dense<0.000000e+00> : vector<4x256xf32>
    %288 = tpu.matmul %9, %287, %cst_190 {dimension_numbers = #tpu.dot_dimension_numbers<[1], [0], [0], [1], [0, 0, 1, 1], [], []>} : vector<4x4xbf16>, vector<4x256xbf16>, vector<4x256xf32> -> vector<4x256xf32>
    %289 = arith.addf %281, %288 : vector<4x256xf32>
    %c0_191 = arith.constant 0 : index
    %c129_192 = arith.constant 129 : index
    %290 = vector.load %arg10[%c0_191, %c129_192] : memref<4x512xf32, #tpu.memory_space<vmem>>, vector<4x256xf32>
    %cst_193 = arith.constant 0.000000e+00 : f32
    %291 = vector.shape_cast %59 : vector<1x256xi1> to vector<1x256xi1>
    %292 = vector.broadcast %291 : vector<1x256xi1> to vector<4x256xi1>
    %293 = vector.broadcast %cst_193 : f32 to vector<4x256xf32>
    %294 = arith.select %292, %290, %293 : vector<4x256xi1>, vector<4x256xf32>
    %295 = arith.truncf %294 : vector<4x256xf32> to vector<4x256xbf16>
    %cst_194 = arith.constant dense<0.000000e+00> : vector<4x256xf32>
    %296 = tpu.matmul %11, %295, %cst_194 {dimension_numbers = #tpu.dot_dimension_numbers<[1], [0], [0], [1], [0, 0, 1, 1], [], []>} : vector<4x4xbf16>, vector<4x256xbf16>, vector<4x256xf32> -> vector<4x256xf32>
    %297 = arith.addf %289, %296 : vector<4x256xf32>
    %c0_195 = arith.constant 0 : index
    %c143_196 = arith.constant 143 : index
    %298 = vector.load %arg10[%c0_195, %c143_196] : memref<4x512xf32, #tpu.memory_space<vmem>>, vector<4x256xf32>
    %cst_197 = arith.constant 0.000000e+00 : f32
    %299 = vector.shape_cast %63 : vector<1x256xi1> to vector<1x256xi1>
    %300 = vector.broadcast %299 : vector<1x256xi1> to vector<4x256xi1>
    %301 = vector.broadcast %cst_197 : f32 to vector<4x256xf32>
    %302 = arith.select %300, %298, %301 : vector<4x256xi1>, vector<4x256xf32>
    %303 = arith.truncf %302 : vector<4x256xf32> to vector<4x256xbf16>
    %cst_198 = arith.constant dense<0.000000e+00> : vector<4x256xf32>
    %304 = tpu.matmul %13, %303, %cst_198 {dimension_numbers = #tpu.dot_dimension_numbers<[1], [0], [0], [1], [0, 0, 1, 1], [], []>} : vector<4x4xbf16>, vector<4x256xbf16>, vector<4x256xf32> -> vector<4x256xf32>
    %305 = arith.addf %297, %304 : vector<4x256xf32>
    %c0_199 = arith.constant 0 : index
    %c144_200 = arith.constant 144 : index
    %306 = vector.load %arg10[%c0_199, %c144_200] : memref<4x512xf32, #tpu.memory_space<vmem>>, vector<4x256xf32>
    %cst_201 = arith.constant 0.000000e+00 : f32
    %307 = vector.shape_cast %67 : vector<1x256xi1> to vector<1x256xi1>
    %308 = vector.broadcast %307 : vector<1x256xi1> to vector<4x256xi1>
    %309 = vector.broadcast %cst_201 : f32 to vector<4x256xf32>
    %310 = arith.select %308, %306, %309 : vector<4x256xi1>, vector<4x256xf32>
    %311 = arith.truncf %310 : vector<4x256xf32> to vector<4x256xbf16>
    %cst_202 = arith.constant dense<0.000000e+00> : vector<4x256xf32>
    %312 = tpu.matmul %15, %311, %cst_202 {dimension_numbers = #tpu.dot_dimension_numbers<[1], [0], [0], [1], [0, 0, 1, 1], [], []>} : vector<4x4xbf16>, vector<4x256xbf16>, vector<4x256xf32> -> vector<4x256xf32>
    %313 = arith.addf %305, %312 : vector<4x256xf32>
    %c0_203 = arith.constant 0 : index
    %c145_204 = arith.constant 145 : index
    %314 = vector.load %arg10[%c0_203, %c145_204] : memref<4x512xf32, #tpu.memory_space<vmem>>, vector<4x256xf32>
    %cst_205 = arith.constant 0.000000e+00 : f32
    %315 = vector.shape_cast %71 : vector<1x256xi1> to vector<1x256xi1>
    %316 = vector.broadcast %315 : vector<1x256xi1> to vector<4x256xi1>
    %317 = vector.broadcast %cst_205 : f32 to vector<4x256xf32>
    %318 = arith.select %316, %314, %317 : vector<4x256xi1>, vector<4x256xf32>
    %319 = arith.truncf %318 : vector<4x256xf32> to vector<4x256xbf16>
    %cst_206 = arith.constant dense<0.000000e+00> : vector<4x256xf32>
    %320 = tpu.matmul %17, %319, %cst_206 {dimension_numbers = #tpu.dot_dimension_numbers<[1], [0], [0], [1], [0, 0, 1, 1], [], []>} : vector<4x4xbf16>, vector<4x256xbf16>, vector<4x256xf32> -> vector<4x256xf32>
    %321 = arith.addf %313, %320 : vector<4x256xf32>
    %322 = vector.broadcast %72 : vector<4x1xf32> to vector<4x256xf32>
    %323 = arith.mulf %321, %322 : vector<4x256xf32>
    %324 = vector.broadcast %73 : vector<4x1xf32> to vector<4x256xf32>
    %325 = arith.addf %323, %324 : vector<4x256xf32>
    %cst_207 = arith.constant 1.000000e+00 : f32
    %326 = vector.broadcast %cst_207 : f32 to vector<4x256xf32>
    %327 = arith.cmpf oge, %325, %326 : vector<4x256xf32>
    %328 = arith.extui %327 : vector<4x256xi1> to vector<4x256xi32>
    %329 = arith.sitofp %328 : vector<4x256xi32> to vector<4x256xf32>
    %c0_208 = arith.constant 0 : index
    %c128_209 = arith.constant 128 : index
    %330 = vector.load %arg10[%c0_208, %c128_209] : memref<4x512xf32, #tpu.memory_space<vmem>>, vector<4x256xf32>
    tpu.vector_store %arg10[%c0_208, %c128_209], %329 {strides = array<i32>} : memref<4x512xf32, #tpu.memory_space<vmem>>, vector<4x256xf32>,
    %cst_210 = arith.constant 0.000000e+00 : f32
    %331 = vector.broadcast %cst_210 : f32 to vector<4x256xf32>
    %c0_211 = arith.constant 0 : index
    %c111_212 = arith.constant 111 : index
    %332 = vector.load %arg10[%c0_211, %c111_212] : memref<4x512xf32, #tpu.memory_space<vmem>>, vector<4x256xf32>
    %cst_213 = arith.constant 0.000000e+00 : f32
    %333 = vector.shape_cast %39 : vector<1x256xi1> to vector<1x256xi1>
    %334 = vector.broadcast %333 : vector<1x256xi1> to vector<4x256xi1>
    %335 = vector.broadcast %cst_213 : f32 to vector<4x256xf32>
    %336 = arith.select %334, %332, %335 : vector<4x256xi1>, vector<4x256xf32>
    %337 = arith.truncf %336 : vector<4x256xf32> to vector<4x256xbf16>
    %cst_214 = arith.constant dense<0.000000e+00> : vector<4x256xf32>
    %338 = tpu.matmul %19, %337, %cst_214 {dimension_numbers = #tpu.dot_dimension_numbers<[1], [0], [0], [1], [0, 0, 1, 1], [], []>} : vector<4x4xbf16>, vector<4x256xbf16>, vector<4x256xf32> -> vector<4x256xf32>
    %339 = arith.addf %331, %338 : vector<4x256xf32>
    %c0_215 = arith.constant 0 : index
    %c112_216 = arith.constant 112 : index
    %340 = vector.load %arg10[%c0_215, %c112_216] : memref<4x512xf32, #tpu.memory_space<vmem>>, vector<4x256xf32>
    %cst_217 = arith.constant 0.000000e+00 : f32
    %341 = vector.shape_cast %43 : vector<1x256xi1> to vector<1x256xi1>
    %342 = vector.broadcast %341 : vector<1x256xi1> to vector<4x256xi1>
    %343 = vector.broadcast %cst_217 : f32 to vector<4x256xf32>
    %344 = arith.select %342, %340, %343 : vector<4x256xi1>, vector<4x256xf32>
    %345 = arith.truncf %344 : vector<4x256xf32> to vector<4x256xbf16>
    %cst_218 = arith.constant dense<0.000000e+00> : vector<4x256xf32>
    %346 = tpu.matmul %21, %345, %cst_218 {dimension_numbers = #tpu.dot_dimension_numbers<[1], [0], [0], [1], [0, 0, 1, 1], [], []>} : vector<4x4xbf16>, vector<4x256xbf16>, vector<4x256xf32> -> vector<4x256xf32>
    %347 = arith.addf %339, %346 : vector<4x256xf32>
    %c0_219 = arith.constant 0 : index
    %c113_220 = arith.constant 113 : index
    %348 = vector.load %arg10[%c0_219, %c113_220] : memref<4x512xf32, #tpu.memory_space<vmem>>, vector<4x256xf32>
    %cst_221 = arith.constant 0.000000e+00 : f32
    %349 = vector.shape_cast %47 : vector<1x256xi1> to vector<1x256xi1>
    %350 = vector.broadcast %349 : vector<1x256xi1> to vector<4x256xi1>
    %351 = vector.broadcast %cst_221 : f32 to vector<4x256xf32>
    %352 = arith.select %350, %348, %351 : vector<4x256xi1>, vector<4x256xf32>
    %353 = arith.truncf %352 : vector<4x256xf32> to vector<4x256xbf16>
    %cst_222 = arith.constant dense<0.000000e+00> : vector<4x256xf32>
    %354 = tpu.matmul %23, %353, %cst_222 {dimension_numbers = #tpu.dot_dimension_numbers<[1], [0], [0], [1], [0, 0, 1, 1], [], []>} : vector<4x4xbf16>, vector<4x256xbf16>, vector<4x256xf32> -> vector<4x256xf32>
    %355 = arith.addf %347, %354 : vector<4x256xf32>
    %c0_223 = arith.constant 0 : index
    %c127_224 = arith.constant 127 : index
    %356 = vector.load %arg10[%c0_223, %c127_224] : memref<4x512xf32, #tpu.memory_space<vmem>>, vector<4x256xf32>
    %cst_225 = arith.constant 0.000000e+00 : f32
    %357 = vector.shape_cast %51 : vector<1x256xi1> to vector<1x256xi1>
    %358 = vector.broadcast %357 : vector<1x256xi1> to vector<4x256xi1>
    %359 = vector.broadcast %cst_225 : f32 to vector<4x256xf32>
    %360 = arith.select %358, %356, %359 : vector<4x256xi1>, vector<4x256xf32>
    %361 = arith.truncf %360 : vector<4x256xf32> to vector<4x256xbf16>
    %cst_226 = arith.constant dense<0.000000e+00> : vector<4x256xf32>
    %362 = tpu.matmul %25, %361, %cst_226 {dimension_numbers = #tpu.dot_dimension_numbers<[1], [0], [0], [1], [0, 0, 1, 1], [], []>} : vector<4x4xbf16>, vector<4x256xbf16>, vector<4x256xf32> -> vector<4x256xf32>
    %363 = arith.addf %355, %362 : vector<4x256xf32>
    %c0_227 = arith.constant 0 : index
    %c128_228 = arith.constant 128 : index
    %364 = vector.load %arg10[%c0_227, %c128_228] : memref<4x512xf32, #tpu.memory_space<vmem>>, vector<4x256xf32>
    %cst_229 = arith.constant 0.000000e+00 : f32
    %365 = vector.shape_cast %55 : vector<1x256xi1> to vector<1x256xi1>
    %366 = vector.broadcast %365 : vector<1x256xi1> to vector<4x256xi1>
    %367 = vector.broadcast %cst_229 : f32 to vector<4x256xf32>
    %368 = arith.select %366, %364, %367 : vector<4x256xi1>, vector<4x256xf32>
    %369 = arith.truncf %368 : vector<4x256xf32> to vector<4x256xbf16>
    %cst_230 = arith.constant dense<0.000000e+00> : vector<4x256xf32>
    %370 = tpu.matmul %27, %369, %cst_230 {dimension_numbers = #tpu.dot_dimension_numbers<[1], [0], [0], [1], [0, 0, 1, 1], [], []>} : vector<4x4xbf16>, vector<4x256xbf16>, vector<4x256xf32> -> vector<4x256xf32>
    %371 = arith.addf %363, %370 : vector<4x256xf32>
    %c0_231 = arith.constant 0 : index
    %c129_232 = arith.constant 129 : index
    %372 = vector.load %arg10[%c0_231, %c129_232] : memref<4x512xf32, #tpu.memory_space<vmem>>, vector<4x256xf32>
    %cst_233 = arith.constant 0.000000e+00 : f32
    %373 = vector.shape_cast %59 : vector<1x256xi1> to vector<1x256xi1>
    %374 = vector.broadcast %373 : vector<1x256xi1> to vector<4x256xi1>
    %375 = vector.broadcast %cst_233 : f32 to vector<4x256xf32>
    %376 = arith.select %374, %372, %375 : vector<4x256xi1>, vector<4x256xf32>
    %377 = arith.truncf %376 : vector<4x256xf32> to vector<4x256xbf16>
    %cst_234 = arith.constant dense<0.000000e+00> : vector<4x256xf32>
    %378 = tpu.matmul %29, %377, %cst_234 {dimension_numbers = #tpu.dot_dimension_numbers<[1], [0], [0], [1], [0, 0, 1, 1], [], []>} : vector<4x4xbf16>, vector<4x256xbf16>, vector<4x256xf32> -> vector<4x256xf32>
    %379 = arith.addf %371, %378 : vector<4x256xf32>
    %c0_235 = arith.constant 0 : index
    %c143_236 = arith.constant 143 : index
    %380 = vector.load %arg10[%c0_235, %c143_236] : memref<4x512xf32, #tpu.memory_space<vmem>>, vector<4x256xf32>
    %cst_237 = arith.constant 0.000000e+00 : f32
    %381 = vector.shape_cast %63 : vector<1x256xi1> to vector<1x256xi1>
    %382 = vector.broadcast %381 : vector<1x256xi1> to vector<4x256xi1>
    %383 = vector.broadcast %cst_237 : f32 to vector<4x256xf32>
    %384 = arith.select %382, %380, %383 : vector<4x256xi1>, vector<4x256xf32>
    %385 = arith.truncf %384 : vector<4x256xf32> to vector<4x256xbf16>
    %cst_238 = arith.constant dense<0.000000e+00> : vector<4x256xf32>
    %386 = tpu.matmul %31, %385, %cst_238 {dimension_numbers = #tpu.dot_dimension_numbers<[1], [0], [0], [1], [0, 0, 1, 1], [], []>} : vector<4x4xbf16>, vector<4x256xbf16>, vector<4x256xf32> -> vector<4x256xf32>
    %387 = arith.addf %379, %386 : vector<4x256xf32>
    %c0_239 = arith.constant 0 : index
    %c144_240 = arith.constant 144 : index
    %388 = vector.load %arg10[%c0_239, %c144_240] : memref<4x512xf32, #tpu.memory_space<vmem>>, vector<4x256xf32>
    %cst_241 = arith.constant 0.000000e+00 : f32
    %389 = vector.shape_cast %67 : vector<1x256xi1> to vector<1x256xi1>
    %390 = vector.broadcast %389 : vector<1x256xi1> to vector<4x256xi1>
    %391 = vector.broadcast %cst_241 : f32 to vector<4x256xf32>
    %392 = arith.select %390, %388, %391 : vector<4x256xi1>, vector<4x256xf32>
    %393 = arith.truncf %392 : vector<4x256xf32> to vector<4x256xbf16>
    %cst_242 = arith.constant dense<0.000000e+00> : vector<4x256xf32>
    %394 = tpu.matmul %33, %393, %cst_242 {dimension_numbers = #tpu.dot_dimension_numbers<[1], [0], [0], [1], [0, 0, 1, 1], [], []>} : vector<4x4xbf16>, vector<4x256xbf16>, vector<4x256xf32> -> vector<4x256xf32>
    %395 = arith.addf %387, %394 : vector<4x256xf32>
    %c0_243 = arith.constant 0 : index
    %c145_244 = arith.constant 145 : index
    %396 = vector.load %arg10[%c0_243, %c145_244] : memref<4x512xf32, #tpu.memory_space<vmem>>, vector<4x256xf32>
    %cst_245 = arith.constant 0.000000e+00 : f32
    %397 = vector.shape_cast %71 : vector<1x256xi1> to vector<1x256xi1>
    %398 = vector.broadcast %397 : vector<1x256xi1> to vector<4x256xi1>
    %399 = vector.broadcast %cst_245 : f32 to vector<4x256xf32>
    %400 = arith.select %398, %396, %399 : vector<4x256xi1>, vector<4x256xf32>
    %401 = arith.truncf %400 : vector<4x256xf32> to vector<4x256xbf16>
    %cst_246 = arith.constant dense<0.000000e+00> : vector<4x256xf32>
    %402 = tpu.matmul %35, %401, %cst_246 {dimension_numbers = #tpu.dot_dimension_numbers<[1], [0], [0], [1], [0, 0, 1, 1], [], []>} : vector<4x4xbf16>, vector<4x256xbf16>, vector<4x256xf32> -> vector<4x256xf32>
    %403 = arith.addf %395, %402 : vector<4x256xf32>
    %404 = vector.broadcast %74 : vector<4x1xf32> to vector<4x256xf32>
    %405 = arith.mulf %403, %404 : vector<4x256xf32>
    %406 = vector.broadcast %75 : vector<4x1xf32> to vector<4x256xf32>
    %407 = arith.addf %405, %406 : vector<4x256xf32>
    %cst_247 = arith.constant 1.000000e+00 : f32
    %408 = vector.broadcast %cst_247 : f32 to vector<4x256xf32>
    %409 = arith.cmpf oge, %407, %408 : vector<4x256xf32>
    %410 = arith.extui %409 : vector<4x256xi1> to vector<4x256xi32>
    %411 = arith.sitofp %410 : vector<4x256xi32> to vector<4x256xf32>
    %412 = arith.addf %247, %411 : vector<4x256xf32>
    %c1_248 = arith.constant 1 : index
    %c0_249 = arith.constant 0 : index
    %c0_250 = arith.constant 0 : index
    %413 = vector.load %arg9[%c1_248, %c0_249, %c0_250] : memref<2x4x256xf32, #tpu.memory_space<vmem>>, vector<1x4x256xf32>
    %414 = vector.shape_cast %413 : vector<1x4x256xf32> to vector<4x256xf32>
    %415 = vector.shape_cast %412 : vector<4x256xf32> to vector<1x4x256xf32>
    tpu.vector_store %arg9[%c1_248, %c0_249, %c0_250], %415 {strides = array<i32>} : memref<2x4x256xf32, #tpu.memory_space<vmem>>, vector<1x4x256xf32>,
    return
  }
  func.func @transform_0(%arg0: i32) -> (i32, i32, i32) {
    %c0_i32 = arith.constant 0 : i32
    %c0_i32_0 = arith.constant 0 : i32
    %c0_i32_1 = arith.constant 0 : i32
    return %arg0, %c0_i32, %c0_i32_0 : i32, i32, i32
  }
  func.func @transform_1(%arg0: i32) -> (i32, i32, i32) {
    %c0_i32 = arith.constant 0 : i32
    %c0_i32_0 = arith.constant 0 : i32
    %c0_i32_1 = arith.constant 0 : i32
    %c0_i32_2 = arith.constant 0 : i32
    return %c0_i32, %c0_i32_0, %c0_i32_1 : i32, i32, i32
  }
  func.func @transform_2(%arg0: i32) -> (i32, i32) {
    %c0_i32 = arith.constant 0 : i32
    %c0_i32_0 = arith.constant 0 : i32
    %c0_i32_1 = arith.constant 0 : i32
    return %c0_i32, %c0_i32_0 : i32, i32
  }
  func.func @transform_3(%arg0: i32) -> (i32, i32) {
    %c0_i32 = arith.constant 0 : i32
    %c0_i32_0 = arith.constant 0 : i32
    %c0_i32_1 = arith.constant 0 : i32
    return %c0_i32, %c0_i32_0 : i32, i32
  }
  func.func @transform_4(%arg0: i32) -> (i32, i32, i32) {
    %c0_i32 = arith.constant 0 : i32
    %c0_i32_0 = arith.constant 0 : i32
    %c0_i32_1 = arith.constant 0 : i32
    %c0_i32_2 = arith.constant 0 : i32
    return %c0_i32, %c0_i32_0, %c0_i32_1 : i32, i32, i32
  }
  func.func @transform_5(%arg0: i32) -> (i32, i32) {
    %c0_i32 = arith.constant 0 : i32
    %c0_i32_0 = arith.constant 0 : i32
    %c0_i32_1 = arith.constant 0 : i32
    return %c0_i32, %c0_i32_0 : i32, i32
  }
  func.func @transform_6(%arg0: i32) -> (i32, i32) {
    %c0_i32 = arith.constant 0 : i32
    %c0_i32_0 = arith.constant 0 : i32
    %c0_i32_1 = arith.constant 0 : i32
    return %c0_i32, %c0_i32_0 : i32, i32
  }
  func.func @transform_7(%arg0: i32) -> (i32, i32, i32) {
    %c0_i32 = arith.constant 0 : i32
    %c0_i32_0 = arith.constant 0 : i32
    %c0_i32_1 = arith.constant 0 : i32
    %c0_i32_2 = arith.constant 0 : i32
    return %c0_i32, %c0_i32_0, %c0_i32_1 : i32, i32, i32
  }
  func.func @transform_8(%arg0: i32) -> (i32, i32, i32) {
    %c0_i32 = arith.constant 0 : i32
    %c0_i32_0 = arith.constant 0 : i32
    %c0_i32_1 = arith.constant 0 : i32
    return %arg0, %c0_i32, %c0_i32_0 : i32, i32, i32
  }
}

</mosaic_0001>

<llo_original>
// kernel: tpu_custom_call.1
$region0: #{tpu_custom_call.1}
  #allocation0 [shape = 'u32[]', space=smem, size = 0x4, offset = 0x4, fixed_abs, tag = 'smem constant byte address 0x4 - core index']
  #allocation1 [shape = 'u32[72,128]{1,0:T(1,128)}', space=vmem, size = 0x9000, scoped, tag = 'internal scratch']
  #allocation2 [shape = 'f32[4,512]{1,0:T(4,128)}', space=vmem, size = 0x2000, scoped, tag = 'scratch operand']
  %s0 = inlined_call_operand.vmem [shape: f32[2,4,256], index: 0, kind: input, shape index: {}]
  %s1 = inlined_call_operand.vmem [shape: bf16[9,4,4], index: 1, kind: input, shape index: {}]
  %s2 = inlined_call_operand.vmem [shape: f32[4,1], index: 2, kind: input, shape index: {}]
  %s3 = inlined_call_operand.vmem [shape: f32[4,1], index: 3, kind: input, shape index: {}]
  %s4 = inlined_call_operand.vmem [shape: bf16[9,4,4], index: 4, kind: input, shape index: {}]
  %s5 = inlined_call_operand.vmem [shape: f32[4,1], index: 5, kind: input, shape index: {}]
  %s6 = inlined_call_operand.vmem [shape: f32[4,1], index: 6, kind: input, shape index: {}]
  %s7 = inlined_call_operand.vmem [shape: f32[9,1,256], index: 7, kind: input, shape index: {}]
  %s8 = inlined_call_operand.hbm [shape: f32[2,4,256], index: 8, kind: output, shape index: {}]
  %s9 = sld [smem:[#allocation0]]
  $region42: #{tpu_custom_call.1} parent=0
    _
  %s11 = ssub.s32 1, %s9
  %s12 = scalar_select 0, %s11, %s9
  $region1: #{tpu_custom_call.1} parent=0
    #allocation3 [shape = 'u8[8192]{0}', space=vmem, size = 0x2000, scoped, tag = 'output window, operand 0, single buffered']
    #allocation4 [shape = 's32[1]{0}', space=sflag, size = 0x4, scoped, tag = 'scoped memory for tpu_custom_call.1']
    %13 = vsyncpa [#allocation4], 0
    // Predicated region
    $region2: #{tpu_custom_call.1} parent=1 // pred_check
      _
    $region3: #{tpu_custom_call.1} parent=1 // pred_check_branch
      %15 = sbr.rel (0) target = $region5
    $region4: #{tpu_custom_call.1} parent=1 // pred_region
      _
    $region5: #{tpu_custom_call.1} parent=1 // pred_fallthru
      _
    // Predicated region
    $region6: #{tpu_custom_call.1} parent=1 // pred_check
      _
    $region7: #{tpu_custom_call.1} parent=1 // pred_check_branch
      %17 = sbr.rel (0) target = $region9
    $region8: #{tpu_custom_call.1} parent=1 // pred_region
      _
    $region9: #{tpu_custom_call.1} parent=1 // pred_fallthru
      _
    // Predicated region
    $region10: #{tpu_custom_call.1} parent=1 // pred_check
      _
    $region11: #{tpu_custom_call.1} parent=1 // pred_check_branch
      %19 = sbr.rel (0) target = $region13
    $region12: #{tpu_custom_call.1} parent=1 // pred_region
      _
    $region13: #{tpu_custom_call.1} parent=1 // pred_fallthru
      _
    // Predicated region
    $region14: #{tpu_custom_call.1} parent=1 // pred_check
      _
    $region15: #{tpu_custom_call.1} parent=1 // pred_check_branch
      %21 = sbr.rel (0) target = $region17
    $region16: #{tpu_custom_call.1} parent=1 // pred_region
      _
    $region17: #{tpu_custom_call.1} parent=1 // pred_fallthru
      _
    // Predicated region
    $region18: #{tpu_custom_call.1} parent=1 // pred_check
      _
    $region19: #{tpu_custom_call.1} parent=1 // pred_check_branch
      %23 = sbr.rel (0) target = $region21
    $region20: #{tpu_custom_call.1} parent=1 // pred_region
      _
    $region21: #{tpu_custom_call.1} parent=1 // pred_fallthru
      _
    // Predicated region
    $region22: #{tpu_custom_call.1} parent=1 // pred_check
      _
    $region23: #{tpu_custom_call.1} parent=1 // pred_check_branch
      %25 = sbr.rel (0) target = $region25
    $region24: #{tpu_custom_call.1} parent=1 // pred_region
      _
    $region25: #{tpu_custom_call.1} parent=1 // pred_fallthru
      _
    // Predicated region
    $region26: #{tpu_custom_call.1} parent=1 // pred_check
      _
    $region27: #{tpu_custom_call.1} parent=1 // pred_check_branch
      %27 = sbr.rel (0) target = $region29
    $region28: #{tpu_custom_call.1} parent=1 // pred_region
      _
    $region29: #{tpu_custom_call.1} parent=1 // pred_fallthru
      _
    // Predicated region
    $region30: #{tpu_custom_call.1} parent=1 // pred_check
      _
    $region31: #{tpu_custom_call.1} parent=1 // pred_check_branch
      %29 = sbr.rel (0) target = $region33
    $region32: #{tpu_custom_call.1} parent=1 // pred_region
      _
    $region33: #{tpu_custom_call.1} parent=1 // pred_fallthru
      _
    %v31 = vld [vmem:[%s1] sm:$0x3]
    %s32 = scalar_lea.vmem %s1, 2
    %v33 = vld [vmem:[%s32] sm:$0x3]
    %s34 = scalar_lea.vmem %s1, 4
    %v35 = vld [vmem:[%s34] sm:$0x3]
    %s36 = scalar_lea.vmem %s1, 6
    %v37 = vld [vmem:[%s36] sm:$0x3]
    %s38 = scalar_lea.vmem %s1, 8
    %v39 = vld [vmem:[%s38] sm:$0x3]
    %s40 = scalar_lea.vmem %s1, 10
    %v41 = vld [vmem:[%s40] sm:$0x3]
    %s42 = scalar_lea.vmem %s1, 12
    %v43 = vld [vmem:[%s42] sm:$0x3]
    %s44 = scalar_lea.vmem %s1, 14
    %v45 = vld [vmem:[%s44] sm:$0x3]
    %s46 = scalar_lea.vmem %s1, 16
    %v47 = vld [vmem:[%s46] sm:$0x3]
    %v48 = vld [vmem:[%s4] sm:$0x3]
    %s49 = scalar_lea.vmem %s4, 2
    %v50 = vld [vmem:[%s49] sm:$0x3]
    %s51 = scalar_lea.vmem %s4, 4
    %v52 = vld [vmem:[%s51] sm:$0x3]
    %s53 = scalar_lea.vmem %s4, 6
    %v54 = vld [vmem:[%s53] sm:$0x3]
    %s55 = scalar_lea.vmem %s4, 8
    %v56 = vld [vmem:[%s55] sm:$0x3]
    %s57 = scalar_lea.vmem %s4, 10
    %v58 = vld [vmem:[%s57] sm:$0x3]
    %s59 = scalar_lea.vmem %s4, 12
    %v60 = vld [vmem:[%s59] sm:$0x3]
    %s61 = scalar_lea.vmem %s4, 14
    %v62 = vld [vmem:[%s61] sm:$0x3]
    %s63 = scalar_lea.vmem %s4, 16
    %v64 = vld [vmem:[%s63] sm:$0x3]
    %v65 = vld [vmem:[%s7] sm:$0x3]
    %vm66 = vcmp.ne.f32.partialorder %v65, 0.0
    %s67 = scalar_lea.vmem %s7, 2
    %v68 = vld [vmem:[%s67] sm:$0x3]
    %vm69 = vcmp.ne.f32.partialorder %v68, 0.0
    %s70 = scalar_lea.vmem %s7, 4
    %v71 = vld [vmem:[%s70] sm:$0x3]
    %vm72 = vcmp.ne.f32.partialorder %v71, 0.0
    %s73 = scalar_lea.vmem %s7, 6
    %v74 = vld [vmem:[%s73] sm:$0x3]
    %vm75 = vcmp.ne.f32.partialorder %v74, 0.0
    %s76 = scalar_lea.vmem %s7, 8
    %v77 = vld [vmem:[%s76] sm:$0x3]
    %vm78 = vcmp.ne.f32.partialorder %v77, 0.0
    %s79 = scalar_lea.vmem %s7, 10
    %v80 = vld [vmem:[%s79] sm:$0x3]
    %vm81 = vcmp.ne.f32.partialorder %v80, 0.0
    %s82 = scalar_lea.vmem %s7, 12
    %v83 = vld [vmem:[%s82] sm:$0x3]
    %vm84 = vcmp.ne.f32.partialorder %v83, 0.0
    %s85 = scalar_lea.vmem %s7, 14
    %v86 = vld [vmem:[%s85] sm:$0x3]
    %vm87 = vcmp.ne.f32.partialorder %v86, 0.0
    %s88 = scalar_lea.vmem %s7, 16
    %v89 = vld [vmem:[%s88] sm:$0x3]
    %vm90 = vcmp.ne.f32.partialorder %v89, 0.0
    %v91 = vld [vmem:[%s2] sm:$0xf]
    %v92 = vld [vmem:[%s3] sm:$0xf]
    %v93 = vld [vmem:[%s5] sm:$0xf]
    %v94 = vld [vmem:[%s6] sm:$0xf]
    %v95 = vld [vmem:[%s0] sm:$0xff]
    %96 = vst [vmem:[#allocation2 + $0x4] sm:$0xff] %v95
    %v97 = vld [vmem:[#allocation2] sm:$0xff]
    %v98 = vld [vmem:[#allocation2 + $0x8] sm:$0xf]
    %v99 = vsel %vm66, 1, 0
    %v100 = vperm.slane %v99, 0
    %v101 = vperm.slane %v99, 1
    %vm102 = vcmp.eq.s32.totalorder %v100, 1
    %vm103 = vcmp.eq.s32.totalorder %v101, 1
    %106 = vst [vmem:[#allocation1] ss:$2 sm:$0xff] %v97
    %s107 = scalar_lea.vmem [#allocation1], 16
    %108 = vst [vmem:[%s107] ss:$2 sm:$0xff] %v98
    %v109 = vld.sshfl [vmem:[#allocation1] sm:$0xff pattern:$0x75316420]
    %v110 = vld.sshfl [vmem:[#allocation1 + $0x8] sm:$0xff pattern:$0x75316420]
    %v111 = vld.sshfl [vmem:[#allocation1 + $0x10] sm:$0xff pattern:$0x75316420]
    %112 = vrot.lane.b32.xlu0 %v109, 17
    %v113 = vpop.permute.xlu0 %112
    %114 = vrot.lane.b32.xlu0 %v110, 17
    %v115 = vpop.permute.xlu0 %114
    %116 = vrot.lane.b32.xlu0 %v111, 17
    %v117 = vpop.permute.xlu0 %116
    %vm118 = vcmask 138240
    %v119 = vsel %vm118, %v113, %v115
    %v120 = vsel %vm118, %v115, %v117
    %v123 = vsel %vm102, %v119, 0.0
    %v124 = vsel %vm103, %v120, 0.0
    %v125 = vpack.c.bf16 %v123, %v123
    %v126 = vpack.c.bf16 %v124, %v124
    %v127 = vld [vmem:[#allocation2] sm:$0xff]
    %v128 = vld [vmem:[#allocation2 + $0x8] sm:$0xf]
    %v129 = vsel %vm69, 1, 0
    %v130 = vperm.slane %v129, 0
    %v131 = vperm.slane %v129, 1
    %vm132 = vcmp.eq.s32.totalorder %v130, 1
    %vm133 = vcmp.eq.s32.totalorder %v131, 1
    %136 = vst [vmem:[#allocation1] ss:$2 sm:$0xff] %v127
    %s137 = scalar_lea.vmem [#allocation1], 16
    %138 = vst [vmem:[%s137] ss:$2 sm:$0xff] %v128
    %v139 = vld.sshfl [vmem:[#allocation1] sm:$0xff pattern:$0x75316420]
    %v140 = vld.sshfl [vmem:[#allocation1 + $0x8] sm:$0xff pattern:$0x75316420]
    %v141 = vld.sshfl [vmem:[#allocation1 + $0x10] sm:$0xff pattern:$0x75316420]
    %142 = vrot.lane.b32.xlu0 %v139, 16
    %v143 = vpop.permute.xlu0 %142
    %144 = vrot.lane.b32.xlu0 %v140, 16
    %v145 = vpop.permute.xlu0 %144
    %146 = vrot.lane.b32.xlu0 %v141, 16
    %v147 = vpop.permute.xlu0 %146
    %vm148 = vcmask 130048
    %v149 = vsel %vm148, %v143, %v145
    %v150 = vsel %vm148, %v145, %v147
    %v153 = vsel %vm132, %v149, 0.0
    %v154 = vsel %vm133, %v150, 0.0
    %v155 = vpack.c.bf16 %v153, %v153
    %v156 = vpack.c.bf16 %v154, %v154
    %vm157 = vcmask 31744
    %v159 = vsel %vm157, %v33, 0
    %vm161 = vcmask 1041408
    %v163 = vsel %vm161, %v155, 0
    %v166 = vsel %vm161, %v156, 0
    %168 = vmatpush.bf16.msra.mxu0 0
    %169 = vmatpush.bf16.msra.mxu0 0
    %170 = vmatpush.bf16.msra.mxu0 0
    %171 = vmatpush.bf16.msra.mxu0 0
    %172 = vmatpush.bf16.msra.mxu0 0
    %173 = vmatpush.bf16.msra.mxu0 0
    %174 = vmatpush.bf16.msra.mxu0 0
    %175 = vmatpush.bf16.msra.mxu0 %v163
    %176 = vmatmul.bf16.gmra.mxu0 %v159
    %v177 = vpop.f32.mrf.mxu0
    %v178 = vadd.f32 0.0, %v177
    %v179 = vpop.f32.mrf.mxu0
    %180 = vdwg.mxu0
    %181 = vmatpush.bf16.msra.mxu0 0
    %182 = vmatpush.bf16.msra.mxu0 0
    %183 = vmatpush.bf16.msra.mxu0 0
    %184 = vmatpush.bf16.msra.mxu0 0
    %185 = vmatpush.bf16.msra.mxu0 0
    %186 = vmatpush.bf16.msra.mxu0 0
    %187 = vmatpush.bf16.msra.mxu0 0
    %188 = vmatpush.bf16.msra.mxu0 %v166
    %189 = vmatmul.bf16.gmra.mxu0 %v159
    %v190 = vpop.f32.mrf.mxu0
    %v191 = vadd.f32 0.0, %v190
    %v192 = vpop.f32.mrf.mxu0
    %193 = vdwg.mxu0
    %v195 = vsel %vm157, %v31, 0
    %v198 = vsel %vm161, %v125, 0
    %v201 = vsel %vm161, %v126, 0
    %203 = vmatpush.bf16.msra.mxu0 0
    %204 = vmatpush.bf16.msra.mxu0 0
    %205 = vmatpush.bf16.msra.mxu0 0
    %206 = vmatpush.bf16.msra.mxu0 0
    %207 = vmatpush.bf16.msra.mxu0 0
    %208 = vmatpush.bf16.msra.mxu0 0
    %209 = vmatpush.bf16.msra.mxu0 0
    %210 = vmatpush.bf16.msra.mxu0 %v198
    %211 = vmatmul.bf16.gmra.mxu0 %v195
    %v212 = vpop.f32.mrf.mxu0
    %v213 = vadd.f32 %v178, %v212
    %v214 = vpop.f32.mrf.mxu0
    %215 = vdwg.mxu0
    %216 = vmatpush.bf16.msra.mxu0 0
    %217 = vmatpush.bf16.msra.mxu0 0
    %218 = vmatpush.bf16.msra.mxu0 0
    %219 = vmatpush.bf16.msra.mxu0 0
    %220 = vmatpush.bf16.msra.mxu0 0
    %221 = vmatpush.bf16.msra.mxu0 0
    %222 = vmatpush.bf16.msra.mxu0 0
    %223 = vmatpush.bf16.msra.mxu0 %v201
    %224 = vmatmul.bf16.gmra.mxu0 %v195
    %v225 = vpop.f32.mrf.mxu0
    %v226 = vadd.f32 %v191, %v225
    %v227 = vpop.f32.mrf.mxu0
    %228 = vdwg.mxu0
    %v229 = vld [vmem:[#allocation2] sm:$0xff]
    %v230 = vld [vmem:[#allocation2 + $0x8] sm:$0xf]
    %v231 = vsel %vm72, 1, 0
    %v232 = vperm.slane %v231, 0
    %v233 = vperm.slane %v231, 1
    %vm234 = vcmp.eq.s32.totalorder %v232, 1
    %vm235 = vcmp.eq.s32.totalorder %v233, 1
    %238 = vst [vmem:[#allocation1] ss:$2 sm:$0xff] %v229
    %s239 = scalar_lea.vmem [#allocation1], 16
    %240 = vst [vmem:[%s239] ss:$2 sm:$0xff] %v230
    %v241 = vld.sshfl [vmem:[#allocation1] sm:$0xff pattern:$0x75316420]
    %v242 = vld.sshfl [vmem:[#allocation1 + $0x8] sm:$0xff pattern:$0x75316420]
    %v243 = vld.sshfl [vmem:[#allocation1 + $0x10] sm:$0xff pattern:$0x75316420]
    %244 = vrot.lane.b32.xlu0 %v241, 15
    %v245 = vpop.permute.xlu0 %244
    %246 = vrot.lane.b32.xlu0 %v242, 15
    %v247 = vpop.permute.xlu0 %246
    %248 = vrot.lane.b32.xlu0 %v243, 15
    %v249 = vpop.permute.xlu0 %248
    %vm250 = vcmask 121856
    %v251 = vsel %vm250, %v245, %v247
    %v252 = vsel %vm250, %v247, %v249
    %v255 = vsel %vm234, %v251, 0.0
    %v256 = vsel %vm235, %v252, 0.0
    %v257 = vpack.c.bf16 %v255, %v255
    %v258 = vpack.c.bf16 %v256, %v256
    %v260 = vsel %vm157, %v35, 0
    %v263 = vsel %vm161, %v257, 0
    %v266 = vsel %vm161, %v258, 0
    %268 = vmatpush.bf16.msra.mxu0 0
    %269 = vmatpush.bf16.msra.mxu0 0
    %270 = vmatpush.bf16.msra.mxu0 0
    %271 = vmatpush.bf16.msra.mxu0 0
    %272 = vmatpush.bf16.msra.mxu0 0
    %273 = vmatpush.bf16.msra.mxu0 0
    %274 = vmatpush.bf16.msra.mxu0 0
    %275 = vmatpush.bf16.msra.mxu0 %v263
    %276 = vmatmul.bf16.gmra.mxu0 %v260
    %v277 = vpop.f32.mrf.mxu0
    %v278 = vadd.f32 0.0, %v277
    %v279 = vpop.f32.mrf.mxu0
    %280 = vdwg.mxu0
    %281 = vmatpush.bf16.msra.mxu0 0
    %282 = vmatpush.bf16.msra.mxu0 0
    %283 = vmatpush.bf16.msra.mxu0 0
    %284 = vmatpush.bf16.msra.mxu0 0
    %285 = vmatpush.bf16.msra.mxu0 0
    %286 = vmatpush.bf16.msra.mxu0 0
    %287 = vmatpush.bf16.msra.mxu0 0
    %288 = vmatpush.bf16.msra.mxu0 %v266
    %289 = vmatmul.bf16.gmra.mxu0 %v260
    %v290 = vpop.f32.mrf.mxu0
    %v291 = vadd.f32 0.0, %v290
    %v292 = vpop.f32.mrf.mxu0
    %293 = vdwg.mxu0
    %v294 = vadd.f32 %v213, %v278
    %v295 = vadd.f32 %v226, %v291
    %v296 = vld [vmem:[#allocation2] sm:$0xff]
    %v297 = vld [vmem:[#allocation2 + $0x8] sm:$0xf]
    %v298 = vsel %vm75, 1, 0
    %v299 = vperm.slane %v298, 0
    %v300 = vperm.slane %v298, 1
    %vm301 = vcmp.eq.s32.totalorder %v299, 1
    %vm302 = vcmp.eq.s32.totalorder %v300, 1
    %305 = vst [vmem:[#allocation1] ss:$2 sm:$0xff] %v296
    %s306 = scalar_lea.vmem [#allocation1], 16
    %307 = vst [vmem:[%s306] ss:$2 sm:$0xff] %v297
    %v308 = vld.sshfl [vmem:[#allocation1] sm:$0xff pattern:$0x75316420]
    %v309 = vld.sshfl [vmem:[#allocation1 + $0x8] sm:$0xff pattern:$0x75316420]
    %v310 = vld.sshfl [vmem:[#allocation1 + $0x10] sm:$0xff pattern:$0x75316420]
    %311 = vrot.lane.b32.xlu0 %v308, 1
    %v312 = vpop.permute.xlu0 %311
    %313 = vrot.lane.b32.xlu0 %v309, 1
    %v314 = vpop.permute.xlu0 %313
    %315 = vrot.lane.b32.xlu0 %v310, 1
    %v316 = vpop.permute.xlu0 %315
    %vm317 = vcmask 7168
    %v318 = vsel %vm317, %v312, %v314
    %v319 = vsel %vm317, %v314, %v316
    %v322 = vsel %vm301, %v318, 0.0
    %v323 = vsel %vm302, %v319, 0.0
    %v324 = vpack.c.bf16 %v322, %v322
    %v325 = vpack.c.bf16 %v323, %v323
    %v327 = vsel %vm157, %v37, 0
    %v330 = vsel %vm161, %v324, 0
    %v333 = vsel %vm161, %v325, 0
    %335 = vmatpush.bf16.msra.mxu0 0
    %336 = vmatpush.bf16.msra.mxu0 0
    %337 = vmatpush.bf16.msra.mxu0 0
    %338 = vmatpush.bf16.msra.mxu0 0
    %339 = vmatpush.bf16.msra.mxu0 0
    %340 = vmatpush.bf16.msra.mxu0 0
    %341 = vmatpush.bf16.msra.mxu0 0
    %342 = vmatpush.bf16.msra.mxu0 %v330
    %343 = vmatmul.bf16.gmra.mxu0 %v327
    %v344 = vpop.f32.mrf.mxu0
    %v345 = vadd.f32 0.0, %v344
    %v346 = vpop.f32.mrf.mxu0
    %347 = vdwg.mxu0
    %348 = vmatpush.bf16.msra.mxu0 0
    %349 = vmatpush.bf16.msra.mxu0 0
    %350 = vmatpush.bf16.msra.mxu0 0
    %351 = vmatpush.bf16.msra.mxu0 0
    %352 = vmatpush.bf16.msra.mxu0 0
    %353 = vmatpush.bf16.msra.mxu0 0
    %354 = vmatpush.bf16.msra.mxu0 0
    %355 = vmatpush.bf16.msra.mxu0 %v333
    %356 = vmatmul.bf16.gmra.mxu0 %v327
    %v357 = vpop.f32.mrf.mxu0
    %v358 = vadd.f32 0.0, %v357
    %v359 = vpop.f32.mrf.mxu0
    %360 = vdwg.mxu0
    %v361 = vadd.f32 %v294, %v345
    %v362 = vadd.f32 %v295, %v358
    %v363 = vld [vmem:[#allocation2 + $0x4] sm:$0xff]
    %v364 = vsel %vm78, 1, 0
    %v365 = vperm.slane %v364, 0
    %v366 = vperm.slane %v364, 1
    %vm367 = vcmp.eq.s32.totalorder %v365, 1
    %vm368 = vcmp.eq.s32.totalorder %v366, 1
    %370 = vst [vmem:[#allocation1] ss:$2 sm:$0xff] %v363
    %v371 = vld.sshfl [vmem:[#allocation1] sm:$0xff pattern:$0x75316420]
    %v372 = vld.sshfl [vmem:[#allocation1 + $0x8] sm:$0xff pattern:$0x75316420]
    %v375 = vsel %vm367, %v371, 0.0
    %v376 = vsel %vm368, %v372, 0.0
    %v377 = vpack.c.bf16 %v375, %v375
    %v378 = vpack.c.bf16 %v376, %v376
    %v380 = vsel %vm157, %v39, 0
    %v383 = vsel %vm161, %v377, 0
    %v386 = vsel %vm161, %v378, 0
    %388 = vmatpush.bf16.msra.mxu0 0
    %389 = vmatpush.bf16.msra.mxu0 0
    %390 = vmatpush.bf16.msra.mxu0 0
    %391 = vmatpush.bf16.msra.mxu0 0
    %392 = vmatpush.bf16.msra.mxu0 0
    %393 = vmatpush.bf16.msra.mxu0 0
    %394 = vmatpush.bf16.msra.mxu0 0
    %395 = vmatpush.bf16.msra.mxu0 %v383
    %396 = vmatmul.bf16.gmra.mxu0 %v380
    %v397 = vpop.f32.mrf.mxu0
    %v398 = vadd.f32 0.0, %v397
    %v399 = vpop.f32.mrf.mxu0
    %400 = vdwg.mxu0
    %401 = vmatpush.bf16.msra.mxu0 0
    %402 = vmatpush.bf16.msra.mxu0 0
    %403 = vmatpush.bf16.msra.mxu0 0
    %404 = vmatpush.bf16.msra.mxu0 0
    %405 = vmatpush.bf16.msra.mxu0 0
    %406 = vmatpush.bf16.msra.mxu0 0
    %407 = vmatpush.bf16.msra.mxu0 0
    %408 = vmatpush.bf16.msra.mxu0 %v386
    %409 = vmatmul.bf16.gmra.mxu0 %v380
    %v410 = vpop.f32.mrf.mxu0
    %v411 = vadd.f32 0.0, %v410
    %v412 = vpop.f32.mrf.mxu0
    %413 = vdwg.mxu0
    %v414 = vadd.f32 %v361, %v398
    %v415 = vadd.f32 %v362, %v411
    %v416 = vld [vmem:[#allocation2 + $0x4] sm:$0xff]
    %v417 = vld [vmem:[#allocation2 + $0xc] sm:$0xf]
    %v418 = vsel %vm81, 1, 0
    %v419 = vperm.slane %v418, 0
    %v420 = vperm.slane %v418, 1
    %vm421 = vcmp.eq.s32.totalorder %v419, 1
    %vm422 = vcmp.eq.s32.totalorder %v420, 1
    %425 = vst [vmem:[#allocation1] ss:$2 sm:$0xff] %v416
    %s426 = scalar_lea.vmem [#allocation1], 16
    %427 = vst [vmem:[%s426] ss:$2 sm:$0xff] %v417
    %v428 = vld.sshfl [vmem:[#allocation1] sm:$0xff pattern:$0x75316420]
    %v429 = vld.sshfl [vmem:[#allocation1 + $0x8] sm:$0xff pattern:$0x75316420]
    %v430 = vld.sshfl [vmem:[#allocation1 + $0x10] sm:$0xff pattern:$0x75316420]
    %431 = vrot.lane.b32.xlu0 %v428, 127
    %v432 = vpop.permute.xlu0 %431
    %433 = vrot.lane.b32.xlu0 %v429, 127
    %v434 = vpop.permute.xlu0 %433
    %435 = vrot.lane.b32.xlu0 %v430, 127
    %v436 = vpop.permute.xlu0 %435
    %vm437 = vcmask 1039360
    %v438 = vsel %vm437, %v432, %v434
    %v439 = vsel %vm437, %v434, %v436
    %v442 = vsel %vm421, %v438, 0.0
    %v443 = vsel %vm422, %v439, 0.0
    %v444 = vpack.c.bf16 %v442, %v442
    %v445 = vpack.c.bf16 %v443, %v443
    %v447 = vsel %vm157, %v41, 0
    %v450 = vsel %vm161, %v444, 0
    %v453 = vsel %vm161, %v445, 0
    %455 = vmatpush.bf16.msra.mxu0 0
    %456 = vmatpush.bf16.msra.mxu0 0
    %457 = vmatpush.bf16.msra.mxu0 0
    %458 = vmatpush.bf16.msra.mxu0 0
    %459 = vmatpush.bf16.msra.mxu0 0
    %460 = vmatpush.bf16.msra.mxu0 0
    %461 = vmatpush.bf16.msra.mxu0 0
    %462 = vmatpush.bf16.msra.mxu0 %v450
    %463 = vmatmul.bf16.gmra.mxu0 %v447
    %v464 = vpop.f32.mrf.mxu0
    %v465 = vadd.f32 0.0, %v464
    %v466 = vpop.f32.mrf.mxu0
    %467 = vdwg.mxu0
    %468 = vmatpush.bf16.msra.mxu0 0
    %469 = vmatpush.bf16.msra.mxu0 0
    %470 = vmatpush.bf16.msra.mxu0 0
    %471 = vmatpush.bf16.msra.mxu0 0
    %472 = vmatpush.bf16.msra.mxu0 0
    %473 = vmatpush.bf16.msra.mxu0 0
    %474 = vmatpush.bf16.msra.mxu0 0
    %475 = vmatpush.bf16.msra.mxu0 %v453
    %476 = vmatmul.bf16.gmra.mxu0 %v447
    %v477 = vpop.f32.mrf.mxu0
    %v478 = vadd.f32 0.0, %v477
    %v479 = vpop.f32.mrf.mxu0
    %480 = vdwg.mxu0
    %v481 = vadd.f32 %v414, %v465
    %v482 = vadd.f32 %v415, %v478
    %v483 = vld [vmem:[#allocation2 + $0x4] sm:$0xff]
    %v484 = vld [vmem:[#allocation2 + $0xc] sm:$0xf]
    %v485 = vsel %vm84, 1, 0
    %v486 = vperm.slane %v485, 0
    %v487 = vperm.slane %v485, 1
    %vm488 = vcmp.eq.s32.totalorder %v486, 1
    %vm489 = vcmp.eq.s32.totalorder %v487, 1
    %492 = vst [vmem:[#allocation1] ss:$2 sm:$0xff] %v483
    %s493 = scalar_lea.vmem [#allocation1], 16
    %494 = vst [vmem:[%s493] ss:$2 sm:$0xff] %v484
    %v495 = vld.sshfl [vmem:[#allocation1] sm:$0xff pattern:$0x75316420]
    %v496 = vld.sshfl [vmem:[#allocation1 + $0x8] sm:$0xff pattern:$0x75316420]
    %v497 = vld.sshfl [vmem:[#allocation1 + $0x10] sm:$0xff pattern:$0x75316420]
    %498 = vrot.lane.b32.xlu0 %v495, 113
    %v499 = vpop.permute.xlu0 %498
    %500 = vrot.lane.b32.xlu0 %v496, 113
    %v501 = vpop.permute.xlu0 %500
    %502 = vrot.lane.b32.xlu0 %v497, 113
    %v503 = vpop.permute.xlu0 %502
    %vm504 = vcmask 924672
    %v505 = vsel %vm504, %v499, %v501
    %v506 = vsel %vm504, %v501, %v503
    %v509 = vsel %vm488, %v505, 0.0
    %v510 = vsel %vm489, %v506, 0.0
    %v511 = vpack.c.bf16 %v509, %v509
    %v512 = vpack.c.bf16 %v510, %v510
    %v514 = vsel %vm157, %v43, 0
    %v517 = vsel %vm161, %v511, 0
    %v520 = vsel %vm161, %v512, 0
    %522 = vmatpush.bf16.msra.mxu0 0
    %523 = vmatpush.bf16.msra.mxu0 0
    %524 = vmatpush.bf16.msra.mxu0 0
    %525 = vmatpush.bf16.msra.mxu0 0
    %526 = vmatpush.bf16.msra.mxu0 0
    %527 = vmatpush.bf16.msra.mxu0 0
    %528 = vmatpush.bf16.msra.mxu0 0
    %529 = vmatpush.bf16.msra.mxu0 %v517
    %530 = vmatmul.bf16.gmra.mxu0 %v514
    %v531 = vpop.f32.mrf.mxu0
    %v532 = vadd.f32 0.0, %v531
    %v533 = vpop.f32.mrf.mxu0
    %534 = vdwg.mxu0
    %535 = vmatpush.bf16.msra.mxu0 0
    %536 = vmatpush.bf16.msra.mxu0 0
    %537 = vmatpush.bf16.msra.mxu0 0
    %538 = vmatpush.bf16.msra.mxu0 0
    %539 = vmatpush.bf16.msra.mxu0 0
    %540 = vmatpush.bf16.msra.mxu0 0
    %541 = vmatpush.bf16.msra.mxu0 0
    %542 = vmatpush.bf16.msra.mxu0 %v520
    %543 = vmatmul.bf16.gmra.mxu0 %v514
    %v544 = vpop.f32.mrf.mxu0
    %v545 = vadd.f32 0.0, %v544
    %v546 = vpop.f32.mrf.mxu0
    %547 = vdwg.mxu0
    %v548 = vadd.f32 %v481, %v532
    %v549 = vadd.f32 %v482, %v545
    %v550 = vld [vmem:[#allocation2 + $0x4] sm:$0xff]
    %v551 = vld [vmem:[#allocation2 + $0xc] sm:$0xf]
    %v552 = vsel %vm87, 1, 0
    %v553 = vperm.slane %v552, 0
    %v554 = vperm.slane %v552, 1
    %vm555 = vcmp.eq.s32.totalorder %v553, 1
    %vm556 = vcmp.eq.s32.totalorder %v554, 1
    %559 = vst [vmem:[#allocation1] ss:$2 sm:$0xff] %v550
    %s560 = scalar_lea.vmem [#allocation1], 16
    %561 = vst [vmem:[%s560] ss:$2 sm:$0xff] %v551
    %v562 = vld.sshfl [vmem:[#allocation1] sm:$0xff pattern:$0x75316420]
    %v563 = vld.sshfl [vmem:[#allocation1 + $0x8] sm:$0xff pattern:$0x75316420]
    %v564 = vld.sshfl [vmem:[#allocation1 + $0x10] sm:$0xff pattern:$0x75316420]
    %565 = vrot.lane.b32.xlu0 %v562, 112
    %v566 = vpop.permute.xlu0 %565
    %567 = vrot.lane.b32.xlu0 %v563, 112
    %v568 = vpop.permute.xlu0 %567
    %569 = vrot.lane.b32.xlu0 %v564, 112
    %v570 = vpop.permute.xlu0 %569
    %vm571 = vcmask 916480
    %v572 = vsel %vm571, %v566, %v568
    %v573 = vsel %vm571, %v568, %v570
    %v576 = vsel %vm555, %v572, 0.0
    %v577 = vsel %vm556, %v573, 0.0
    %v578 = vpack.c.bf16 %v576, %v576
    %v579 = vpack.c.bf16 %v577, %v577
    %v581 = vsel %vm157, %v45, 0
    %v584 = vsel %vm161, %v578, 0
    %v587 = vsel %vm161, %v579, 0
    %589 = vmatpush.bf16.msra.mxu0 0
    %590 = vmatpush.bf16.msra.mxu0 0
    %591 = vmatpush.bf16.msra.mxu0 0
    %592 = vmatpush.bf16.msra.mxu0 0
    %593 = vmatpush.bf16.msra.mxu0 0
    %594 = vmatpush.bf16.msra.mxu0 0
    %595 = vmatpush.bf16.msra.mxu0 0
    %596 = vmatpush.bf16.msra.mxu0 %v584
    %597 = vmatmul.bf16.gmra.mxu0 %v581
    %v598 = vpop.f32.mrf.mxu0
    %v599 = vadd.f32 0.0, %v598
    %v600 = vpop.f32.mrf.mxu0
    %601 = vdwg.mxu0
    %602 = vmatpush.bf16.msra.mxu0 0
    %603 = vmatpush.bf16.msra.mxu0 0
    %604 = vmatpush.bf16.msra.mxu0 0
    %605 = vmatpush.bf16.msra.mxu0 0
    %606 = vmatpush.bf16.msra.mxu0 0
    %607 = vmatpush.bf16.msra.mxu0 0
    %608 = vmatpush.bf16.msra.mxu0 0
    %609 = vmatpush.bf16.msra.mxu0 %v587
    %610 = vmatmul.bf16.gmra.mxu0 %v581
    %v611 = vpop.f32.mrf.mxu0
    %v612 = vadd.f32 0.0, %v611
    %v613 = vpop.f32.mrf.mxu0
    %614 = vdwg.mxu0
    %v615 = vadd.f32 %v548, %v599
    %v616 = vadd.f32 %v549, %v612
    %v617 = vld [vmem:[#allocation2 + $0x4] sm:$0xff]
    %v618 = vld [vmem:[#allocation2 + $0xc] sm:$0xf]
    %v619 = vsel %vm90, 1, 0
    %v620 = vperm.slane %v619, 0
    %v621 = vperm.slane %v619, 1
    %vm622 = vcmp.eq.s32.totalorder %v620, 1
    %vm623 = vcmp.eq.s32.totalorder %v621, 1
    %626 = vst [vmem:[#allocation1] ss:$2 sm:$0xff] %v617
    %s627 = scalar_lea.vmem [#allocation1], 16
    %628 = vst [vmem:[%s627] ss:$2 sm:$0xff] %v618
    %v629 = vld.sshfl [vmem:[#allocation1] sm:$0xff pattern:$0x75316420]
    %v630 = vld.sshfl [vmem:[#allocation1 + $0x8] sm:$0xff pattern:$0x75316420]
    %v631 = vld.sshfl [vmem:[#allocation1 + $0x10] sm:$0xff pattern:$0x75316420]
    %632 = vrot.lane.b32.xlu0 %v629, 111
    %v633 = vpop.permute.xlu0 %632
    %634 = vrot.lane.b32.xlu0 %v630, 111
    %v635 = vpop.permute.xlu0 %634
    %636 = vrot.lane.b32.xlu0 %v631, 111
    %v637 = vpop.permute.xlu0 %636
    %vm638 = vcmask 908288
    %v639 = vsel %vm638, %v633, %v635
    %v640 = vsel %vm638, %v635, %v637
    %v643 = vsel %vm622, %v639, 0.0
    %v644 = vsel %vm623, %v640, 0.0
    %v645 = vpack.c.bf16 %v643, %v643
    %v646 = vpack.c.bf16 %v644, %v644
    %v648 = vsel %vm157, %v47, 0
    %v651 = vsel %vm161, %v645, 0
    %v654 = vsel %vm161, %v646, 0
    %656 = vmatpush.bf16.msra.mxu0 0
    %657 = vmatpush.bf16.msra.mxu0 0
    %658 = vmatpush.bf16.msra.mxu0 0
    %659 = vmatpush.bf16.msra.mxu0 0
    %660 = vmatpush.bf16.msra.mxu0 0
    %661 = vmatpush.bf16.msra.mxu0 0
    %662 = vmatpush.bf16.msra.mxu0 0
    %663 = vmatpush.bf16.msra.mxu0 %v651
    %664 = vmatmul.bf16.gmra.mxu0 %v648
    %v665 = vpop.f32.mrf.mxu0
    %v666 = vadd.f32 0.0, %v665
    %v667 = vpop.f32.mrf.mxu0
    %668 = vdwg.mxu0
    %669 = vmatpush.bf16.msra.mxu0 0
    %670 = vmatpush.bf16.msra.mxu0 0
    %671 = vmatpush.bf16.msra.mxu0 0
    %672 = vmatpush.bf16.msra.mxu0 0
    %673 = vmatpush.bf16.msra.mxu0 0
    %674 = vmatpush.bf16.msra.mxu0 0
    %675 = vmatpush.bf16.msra.mxu0 0
    %676 = vmatpush.bf16.msra.mxu0 %v654
    %677 = vmatmul.bf16.gmra.mxu0 %v648
    %v678 = vpop.f32.mrf.mxu0
    %v679 = vadd.f32 0.0, %v678
    %v680 = vpop.f32.mrf.mxu0
    %681 = vdwg.mxu0
    %v682 = vadd.f32 %v615, %v666
    %v683 = vadd.f32 %v616, %v679
    %685 = vset.pattern.permute.xlu0 0
    %686 = vperm.xlu0 %685, %v91
    %v687 = vpop.permute.xlu0 %686
    %v689 = vmul.f32 %v682, %v687
    %v690 = vmul.f32 %v683, %v687
    %692 = vset.pattern.permute.xlu0 0
    %693 = vperm.xlu0 %692, %v92
    %v694 = vpop.permute.xlu0 %693
    %v696 = vadd.f32 %v689, %v694
    %v697 = vadd.f32 %v690, %v694
    %vm698 = vcmp.ge.f32.partialorder %v696, 1.0
    %vm699 = vcmp.ge.f32.partialorder %v697, 1.0
    %v700 = vsel %vm698, 1, 0
    %v701 = vsel %vm699, 1, 0
    %v702 = vcvt.s32.f32 %v700
    %v703 = vcvt.s32.f32 %v701
    %v706 = vrot.slane %v703, 4
    %vm707 = vcmask 1043456
    %v708 = vsel %vm707, %v702, %v706
    %710 = vst [vmem:[#allocation2 + $0x4] sm:$0xff] %v708
    %v711 = vld [vmem:[#allocation2] sm:$0xff]
    %v712 = vld [vmem:[#allocation2 + $0x8] sm:$0xf]
    %715 = vst [vmem:[#allocation1] ss:$2 sm:$0xff] %v711
    %s716 = scalar_lea.vmem [#allocation1], 16
    %717 = vst [vmem:[%s716] ss:$2 sm:$0xff] %v712
    %v718 = vld.sshfl [vmem:[#allocation1] sm:$0xff pattern:$0x75316420]
    %v719 = vld.sshfl [vmem:[#allocation1 + $0x8] sm:$0xff pattern:$0x75316420]
    %v720 = vld.sshfl [vmem:[#allocation1 + $0x10] sm:$0xff pattern:$0x75316420]
    %721 = vrot.lane.b32.xlu0 %v718, 17
    %v722 = vpop.permute.xlu0 %721
    %723 = vrot.lane.b32.xlu0 %v719, 17
    %v724 = vpop.permute.xlu0 %723
    %725 = vrot.lane.b32.xlu0 %v720, 17
    %v726 = vpop.permute.xlu0 %725
    %v727 = vsel %vm118, %v722, %v724
    %v728 = vsel %vm118, %v724, %v726
    %v731 = vsel %vm102, %v727, 0.0
    %v732 = vsel %vm103, %v728, 0.0
    %v733 = vpack.c.bf16 %v731, %v731
    %v734 = vpack.c.bf16 %v732, %v732
    %v735 = vld [vmem:[#allocation2] sm:$0xff]
    %v736 = vld [vmem:[#allocation2 + $0x8] sm:$0xf]
    %739 = vst [vmem:[#allocation1] ss:$2 sm:$0xff] %v735
    %s740 = scalar_lea.vmem [#allocation1], 16
    %741 = vst [vmem:[%s740] ss:$2 sm:$0xff] %v736
    %v742 = vld.sshfl [vmem:[#allocation1] sm:$0xff pattern:$0x75316420]
    %v743 = vld.sshfl [vmem:[#allocation1 + $0x8] sm:$0xff pattern:$0x75316420]
    %v744 = vld.sshfl [vmem:[#allocation1 + $0x10] sm:$0xff pattern:$0x75316420]
    %745 = vrot.lane.b32.xlu0 %v742, 16
    %v746 = vpop.permute.xlu0 %745
    %747 = vrot.lane.b32.xlu0 %v743, 16
    %v748 = vpop.permute.xlu0 %747
    %749 = vrot.lane.b32.xlu0 %v744, 16
    %v750 = vpop.permute.xlu0 %749
    %v751 = vsel %vm148, %v746, %v748
    %v752 = vsel %vm148, %v748, %v750
    %v755 = vsel %vm132, %v751, 0.0
    %v756 = vsel %vm133, %v752, 0.0
    %v757 = vpack.c.bf16 %v755, %v755
    %v758 = vpack.c.bf16 %v756, %v756
    %v760 = vsel %vm157, %v50, 0
    %v763 = vsel %vm161, %v757, 0
    %v766 = vsel %vm161, %v758, 0
    %768 = vmatpush.bf16.msra.mxu0 0
    %769 = vmatpush.bf16.msra.mxu0 0
    %770 = vmatpush.bf16.msra.mxu0 0
    %771 = vmatpush.bf16.msra.mxu0 0
    %772 = vmatpush.bf16.msra.mxu0 0
    %773 = vmatpush.bf16.msra.mxu0 0
    %774 = vmatpush.bf16.msra.mxu0 0
    %775 = vmatpush.bf16.msra.mxu0 %v763
    %776 = vmatmul.bf16.gmra.mxu0 %v760
    %v777 = vpop.f32.mrf.mxu0
    %v778 = vadd.f32 0.0, %v777
    %v779 = vpop.f32.mrf.mxu0
    %780 = vdwg.mxu0
    %781 = vmatpush.bf16.msra.mxu0 0
    %782 = vmatpush.bf16.msra.mxu0 0
    %783 = vmatpush.bf16.msra.mxu0 0
    %784 = vmatpush.bf16.msra.mxu0 0
    %785 = vmatpush.bf16.msra.mxu0 0
    %786 = vmatpush.bf16.msra.mxu0 0
    %787 = vmatpush.bf16.msra.mxu0 0
    %788 = vmatpush.bf16.msra.mxu0 %v766
    %789 = vmatmul.bf16.gmra.mxu0 %v760
    %v790 = vpop.f32.mrf.mxu0
    %v791 = vadd.f32 0.0, %v790
    %v792 = vpop.f32.mrf.mxu0
    %793 = vdwg.mxu0
    %v795 = vsel %vm157, %v48, 0
    %v798 = vsel %vm161, %v733, 0
    %v801 = vsel %vm161, %v734, 0
    %803 = vmatpush.bf16.msra.mxu0 0
    %804 = vmatpush.bf16.msra.mxu0 0
    %805 = vmatpush.bf16.msra.mxu0 0
    %806 = vmatpush.bf16.msra.mxu0 0
    %807 = vmatpush.bf16.msra.mxu0 0
    %808 = vmatpush.bf16.msra.mxu0 0
    %809 = vmatpush.bf16.msra.mxu0 0
    %810 = vmatpush.bf16.msra.mxu0 %v798
    %811 = vmatmul.bf16.gmra.mxu0 %v795
    %v812 = vpop.f32.mrf.mxu0
    %v813 = vadd.f32 %v778, %v812
    %v814 = vpop.f32.mrf.mxu0
    %815 = vdwg.mxu0
    %816 = vmatpush.bf16.msra.mxu0 0
    %817 = vmatpush.bf16.msra.mxu0 0
    %818 = vmatpush.bf16.msra.mxu0 0
    %819 = vmatpush.bf16.msra.mxu0 0
    %820 = vmatpush.bf16.msra.mxu0 0
    %821 = vmatpush.bf16.msra.mxu0 0
    %822 = vmatpush.bf16.msra.mxu0 0
    %823 = vmatpush.bf16.msra.mxu0 %v801
    %824 = vmatmul.bf16.gmra.mxu0 %v795
    %v825 = vpop.f32.mrf.mxu0
    %v826 = vadd.f32 %v791, %v825
    %v827 = vpop.f32.mrf.mxu0
    %828 = vdwg.mxu0
    %v829 = vld [vmem:[#allocation2] sm:$0xff]
    %v830 = vld [vmem:[#allocation2 + $0x8] sm:$0xf]
    %833 = vst [vmem:[#allocation1] ss:$2 sm:$0xff] %v829
    %s834 = scalar_lea.vmem [#allocation1], 16
    %835 = vst [vmem:[%s834] ss:$2 sm:$0xff] %v830
    %v836 = vld.sshfl [vmem:[#allocation1] sm:$0xff pattern:$0x75316420]
    %v837 = vld.sshfl [vmem:[#allocation1 + $0x8] sm:$0xff pattern:$0x75316420]
    %v838 = vld.sshfl [vmem:[#allocation1 + $0x10] sm:$0xff pattern:$0x75316420]
    %839 = vrot.lane.b32.xlu0 %v836, 15
    %v840 = vpop.permute.xlu0 %839
    %841 = vrot.lane.b32.xlu0 %v837, 15
    %v842 = vpop.permute.xlu0 %841
    %843 = vrot.lane.b32.xlu0 %v838, 15
    %v844 = vpop.permute.xlu0 %843
    %v845 = vsel %vm250, %v840, %v842
    %v846 = vsel %vm250, %v842, %v844
    %v849 = vsel %vm234, %v845, 0.0
    %v850 = vsel %vm235, %v846, 0.0
    %v851 = vpack.c.bf16 %v849, %v849
    %v852 = vpack.c.bf16 %v850, %v850
    %v854 = vsel %vm157, %v52, 0
    %v857 = vsel %vm161, %v851, 0
    %v860 = vsel %vm161, %v852, 0
    %862 = vmatpush.bf16.msra.mxu0 0
    %863 = vmatpush.bf16.msra.mxu0 0
    %864 = vmatpush.bf16.msra.mxu0 0
    %865 = vmatpush.bf16.msra.mxu0 0
    %866 = vmatpush.bf16.msra.mxu0 0
    %867 = vmatpush.bf16.msra.mxu0 0
    %868 = vmatpush.bf16.msra.mxu0 0
    %869 = vmatpush.bf16.msra.mxu0 %v857
    %870 = vmatmul.bf16.gmra.mxu0 %v854
    %v871 = vpop.f32.mrf.mxu0
    %v872 = vadd.f32 0.0, %v871
    %v873 = vpop.f32.mrf.mxu0
    %874 = vdwg.mxu0
    %875 = vmatpush.bf16.msra.mxu0 0
    %876 = vmatpush.bf16.msra.mxu0 0
    %877 = vmatpush.bf16.msra.mxu0 0
    %878 = vmatpush.bf16.msra.mxu0 0
    %879 = vmatpush.bf16.msra.mxu0 0
    %880 = vmatpush.bf16.msra.mxu0 0
    %881 = vmatpush.bf16.msra.mxu0 0
    %882 = vmatpush.bf16.msra.mxu0 %v860
    %883 = vmatmul.bf16.gmra.mxu0 %v854
    %v884 = vpop.f32.mrf.mxu0
    %v885 = vadd.f32 0.0, %v884
    %v886 = vpop.f32.mrf.mxu0
    %887 = vdwg.mxu0
    %v888 = vadd.f32 %v813, %v872
    %v889 = vadd.f32 %v826, %v885
    %v890 = vld [vmem:[#allocation2] sm:$0xff]
    %v891 = vld [vmem:[#allocation2 + $0x8] sm:$0xf]
    %894 = vst [vmem:[#allocation1] ss:$2 sm:$0xff] %v890
    %s895 = scalar_lea.vmem [#allocation1], 16
    %896 = vst [vmem:[%s895] ss:$2 sm:$0xff] %v891
    %v897 = vld.sshfl [vmem:[#allocation1] sm:$0xff pattern:$0x75316420]
    %v898 = vld.sshfl [vmem:[#allocation1 + $0x8] sm:$0xff pattern:$0x75316420]
    %v899 = vld.sshfl [vmem:[#allocation1 + $0x10] sm:$0xff pattern:$0x75316420]
    %900 = vrot.lane.b32.xlu0 %v897, 1
    %v901 = vpop.permute.xlu0 %900
    %902 = vrot.lane.b32.xlu0 %v898, 1
    %v903 = vpop.permute.xlu0 %902
    %904 = vrot.lane.b32.xlu0 %v899, 1
    %v905 = vpop.permute.xlu0 %904
    %v906 = vsel %vm317, %v901, %v903
    %v907 = vsel %vm317, %v903, %v905
    %v910 = vsel %vm301, %v906, 0.0
    %v911 = vsel %vm302, %v907, 0.0
    %v912 = vpack.c.bf16 %v910, %v910
    %v913 = vpack.c.bf16 %v911, %v911
    %v915 = vsel %vm157, %v54, 0
    %v918 = vsel %vm161, %v912, 0
    %v921 = vsel %vm161, %v913, 0
    %923 = vmatpush.bf16.msra.mxu0 0
    %924 = vmatpush.bf16.msra.mxu0 0
    %925 = vmatpush.bf16.msra.mxu0 0
    %926 = vmatpush.bf16.msra.mxu0 0
    %927 = vmatpush.bf16.msra.mxu0 0
    %928 = vmatpush.bf16.msra.mxu0 0
    %929 = vmatpush.bf16.msra.mxu0 0
    %930 = vmatpush.bf16.msra.mxu0 %v918
    %931 = vmatmul.bf16.gmra.mxu0 %v915
    %v932 = vpop.f32.mrf.mxu0
    %v933 = vadd.f32 0.0, %v932
    %v934 = vpop.f32.mrf.mxu0
    %935 = vdwg.mxu0
    %936 = vmatpush.bf16.msra.mxu0 0
    %937 = vmatpush.bf16.msra.mxu0 0
    %938 = vmatpush.bf16.msra.mxu0 0
    %939 = vmatpush.bf16.msra.mxu0 0
    %940 = vmatpush.bf16.msra.mxu0 0
    %941 = vmatpush.bf16.msra.mxu0 0
    %942 = vmatpush.bf16.msra.mxu0 0
    %943 = vmatpush.bf16.msra.mxu0 %v921
    %944 = vmatmul.bf16.gmra.mxu0 %v915
    %v945 = vpop.f32.mrf.mxu0
    %v946 = vadd.f32 0.0, %v945
    %v947 = vpop.f32.mrf.mxu0
    %948 = vdwg.mxu0
    %v949 = vadd.f32 %v888, %v933
    %v950 = vadd.f32 %v889, %v946
    %v951 = vld [vmem:[#allocation2 + $0x4] sm:$0xff]
    %953 = vst [vmem:[#allocation1] ss:$2 sm:$0xff] %v951
    %v954 = vld.sshfl [vmem:[#allocation1] sm:$0xff pattern:$0x75316420]
    %v955 = vld.sshfl [vmem:[#allocation1 + $0x8] sm:$0xff pattern:$0x75316420]
    %v958 = vsel %vm367, %v954, 0.0
    %v959 = vsel %vm368, %v955, 0.0
    %v960 = vpack.c.bf16 %v958, %v958
    %v961 = vpack.c.bf16 %v959, %v959
    %v963 = vsel %vm157, %v56, 0
    %v966 = vsel %vm161, %v960, 0
    %v969 = vsel %vm161, %v961, 0
    %971 = vmatpush.bf16.msra.mxu0 0
    %972 = vmatpush.bf16.msra.mxu0 0
    %973 = vmatpush.bf16.msra.mxu0 0
    %974 = vmatpush.bf16.msra.mxu0 0
    %975 = vmatpush.bf16.msra.mxu0 0
    %976 = vmatpush.bf16.msra.mxu0 0
    %977 = vmatpush.bf16.msra.mxu0 0
    %978 = vmatpush.bf16.msra.mxu0 %v966
    %979 = vmatmul.bf16.gmra.mxu0 %v963
    %v980 = vpop.f32.mrf.mxu0
    %v981 = vadd.f32 0.0, %v980
    %v982 = vpop.f32.mrf.mxu0
    %983 = vdwg.mxu0
    %984 = vmatpush.bf16.msra.mxu0 0
    %985 = vmatpush.bf16.msra.mxu0 0
    %986 = vmatpush.bf16.msra.mxu0 0
    %987 = vmatpush.bf16.msra.mxu0 0
    %988 = vmatpush.bf16.msra.mxu0 0
    %989 = vmatpush.bf16.msra.mxu0 0
    %990 = vmatpush.bf16.msra.mxu0 0
    %991 = vmatpush.bf16.msra.mxu0 %v969
    %992 = vmatmul.bf16.gmra.mxu0 %v963
    %v993 = vpop.f32.mrf.mxu0
    %v994 = vadd.f32 0.0, %v993
    %v995 = vpop.f32.mrf.mxu0
    %996 = vdwg.mxu0
    %v997 = vadd.f32 %v949, %v981
    %v998 = vadd.f32 %v950, %v994
    %v999 = vld [vmem:[#allocation2 + $0x4] sm:$0xff]
    %v1000 = vld [vmem:[#allocation2 + $0xc] sm:$0xf]
    %1003 = vst [vmem:[#allocation1] ss:$2 sm:$0xff] %v999
    %s1004 = scalar_lea.vmem [#allocation1], 16
    %1005 = vst [vmem:[%s1004] ss:$2 sm:$0xff] %v1000
    %v1006 = vld.sshfl [vmem:[#allocation1] sm:$0xff pattern:$0x75316420]
    %v1007 = vld.sshfl [vmem:[#allocation1 + $0x8] sm:$0xff pattern:$0x75316420]
    %v1008 = vld.sshfl [vmem:[#allocation1 + $0x10] sm:$0xff pattern:$0x75316420]
    %1009 = vrot.lane.b32.xlu0 %v1006, 127
    %v1010 = vpop.permute.xlu0 %1009
    %1011 = vrot.lane.b32.xlu0 %v1007, 127
    %v1012 = vpop.permute.xlu0 %1011
    %1013 = vrot.lane.b32.xlu0 %v1008, 127
    %v1014 = vpop.permute.xlu0 %1013
    %v1015 = vsel %vm437, %v1010, %v1012
    %v1016 = vsel %vm437, %v1012, %v1014
    %v1019 = vsel %vm421, %v1015, 0.0
    %v1020 = vsel %vm422, %v1016, 0.0
    %v1021 = vpack.c.bf16 %v1019, %v1019
    %v1022 = vpack.c.bf16 %v1020, %v1020
    %v1024 = vsel %vm157, %v58, 0
    %v1027 = vsel %vm161, %v1021, 0
    %v1030 = vsel %vm161, %v1022, 0
    %1032 = vmatpush.bf16.msra.mxu0 0
    %1033 = vmatpush.bf16.msra.mxu0 0
    %1034 = vmatpush.bf16.msra.mxu0 0
    %1035 = vmatpush.bf16.msra.mxu0 0
    %1036 = vmatpush.bf16.msra.mxu0 0
    %1037 = vmatpush.bf16.msra.mxu0 0
    %1038 = vmatpush.bf16.msra.mxu0 0
    %1039 = vmatpush.bf16.msra.mxu0 %v1027
    %1040 = vmatmul.bf16.gmra.mxu0 %v1024
    %v1041 = vpop.f32.mrf.mxu0
    %v1042 = vadd.f32 0.0, %v1041
    %v1043 = vpop.f32.mrf.mxu0
    %1044 = vdwg.mxu0
    %1045 = vmatpush.bf16.msra.mxu0 0
    %1046 = vmatpush.bf16.msra.mxu0 0
    %1047 = vmatpush.bf16.msra.mxu0 0
    %1048 = vmatpush.bf16.msra.mxu0 0
    %1049 = vmatpush.bf16.msra.mxu0 0
    %1050 = vmatpush.bf16.msra.mxu0 0
    %1051 = vmatpush.bf16.msra.mxu0 0
    %1052 = vmatpush.bf16.msra.mxu0 %v1030
    %1053 = vmatmul.bf16.gmra.mxu0 %v1024
    %v1054 = vpop.f32.mrf.mxu0
    %v1055 = vadd.f32 0.0, %v1054
    %v1056 = vpop.f32.mrf.mxu0
    %1057 = vdwg.mxu0
    %v1058 = vadd.f32 %v997, %v1042
    %v1059 = vadd.f32 %v998, %v1055
    %v1060 = vld [vmem:[#allocation2 + $0x4] sm:$0xff]
    %v1061 = vld [vmem:[#allocation2 + $0xc] sm:$0xf]
    %1064 = vst [vmem:[#allocation1] ss:$2 sm:$0xff] %v1060
    %s1065 = scalar_lea.vmem [#allocation1], 16
    %1066 = vst [vmem:[%s1065] ss:$2 sm:$0xff] %v1061
    %v1067 = vld.sshfl [vmem:[#allocation1] sm:$0xff pattern:$0x75316420]
    %v1068 = vld.sshfl [vmem:[#allocation1 + $0x8] sm:$0xff pattern:$0x75316420]
    %v1069 = vld.sshfl [vmem:[#allocation1 + $0x10] sm:$0xff pattern:$0x75316420]
    %1070 = vrot.lane.b32.xlu0 %v1067, 113
    %v1071 = vpop.permute.xlu0 %1070
    %1072 = vrot.lane.b32.xlu0 %v1068, 113
    %v1073 = vpop.permute.xlu0 %1072
    %1074 = vrot.lane.b32.xlu0 %v1069, 113
    %v1075 = vpop.permute.xlu0 %1074
    %v1076 = vsel %vm504, %v1071, %v1073
    %v1077 = vsel %vm504, %v1073, %v1075
    %v1080 = vsel %vm488, %v1076, 0.0
    %v1081 = vsel %vm489, %v1077, 0.0
    %v1082 = vpack.c.bf16 %v1080, %v1080
    %v1083 = vpack.c.bf16 %v1081, %v1081
    %v1085 = vsel %vm157, %v60, 0
    %v1088 = vsel %vm161, %v1082, 0
    %v1091 = vsel %vm161, %v1083, 0
    %1093 = vmatpush.bf16.msra.mxu0 0
    %1094 = vmatpush.bf16.msra.mxu0 0
    %1095 = vmatpush.bf16.msra.mxu0 0
    %1096 = vmatpush.bf16.msra.mxu0 0
    %1097 = vmatpush.bf16.msra.mxu0 0
    %1098 = vmatpush.bf16.msra.mxu0 0
    %1099 = vmatpush.bf16.msra.mxu0 0
    %1100 = vmatpush.bf16.msra.mxu0 %v1088
    %1101 = vmatmul.bf16.gmra.mxu0 %v1085
    %v1102 = vpop.f32.mrf.mxu0
    %v1103 = vadd.f32 0.0, %v1102
    %v1104 = vpop.f32.mrf.mxu0
    %1105 = vdwg.mxu0
    %1106 = vmatpush.bf16.msra.mxu0 0
    %1107 = vmatpush.bf16.msra.mxu0 0
    %1108 = vmatpush.bf16.msra.mxu0 0
    %1109 = vmatpush.bf16.msra.mxu0 0
    %1110 = vmatpush.bf16.msra.mxu0 0
    %1111 = vmatpush.bf16.msra.mxu0 0
    %1112 = vmatpush.bf16.msra.mxu0 0
    %1113 = vmatpush.bf16.msra.mxu0 %v1091
    %1114 = vmatmul.bf16.gmra.mxu0 %v1085
    %v1115 = vpop.f32.mrf.mxu0
    %v1116 = vadd.f32 0.0, %v1115
    %v1117 = vpop.f32.mrf.mxu0
    %1118 = vdwg.mxu0
    %v1119 = vadd.f32 %v1058, %v1103
    %v1120 = vadd.f32 %v1059, %v1116
    %v1121 = vld [vmem:[#allocation2 + $0x4] sm:$0xff]
    %v1122 = vld [vmem:[#allocation2 + $0xc] sm:$0xf]
    %1125 = vst [vmem:[#allocation1] ss:$2 sm:$0xff] %v1121
    %s1126 = scalar_lea.vmem [#allocation1], 16
    %1127 = vst [vmem:[%s1126] ss:$2 sm:$0xff] %v1122
    %v1128 = vld.sshfl [vmem:[#allocation1] sm:$0xff pattern:$0x75316420]
    %v1129 = vld.sshfl [vmem:[#allocation1 + $0x8] sm:$0xff pattern:$0x75316420]
    %v1130 = vld.sshfl [vmem:[#allocation1 + $0x10] sm:$0xff pattern:$0x75316420]
    %1131 = vrot.lane.b32.xlu0 %v1128, 112
    %v1132 = vpop.permute.xlu0 %1131
    %1133 = vrot.lane.b32.xlu0 %v1129, 112
    %v1134 = vpop.permute.xlu0 %1133
    %1135 = vrot.lane.b32.xlu0 %v1130, 112
    %v1136 = vpop.permute.xlu0 %1135
    %v1137 = vsel %vm571, %v1132, %v1134
    %v1138 = vsel %vm571, %v1134, %v1136
    %v1141 = vsel %vm555, %v1137, 0.0
    %v1142 = vsel %vm556, %v1138, 0.0
    %v1143 = vpack.c.bf16 %v1141, %v1141
    %v1144 = vpack.c.bf16 %v1142, %v1142
    %v1146 = vsel %vm157, %v62, 0
    %v1149 = vsel %vm161, %v1143, 0
    %v1152 = vsel %vm161, %v1144, 0
    %1154 = vmatpush.bf16.msra.mxu0 0
    %1155 = vmatpush.bf16.msra.mxu0 0
    %1156 = vmatpush.bf16.msra.mxu0 0
    %1157 = vmatpush.bf16.msra.mxu0 0
    %1158 = vmatpush.bf16.msra.mxu0 0
    %1159 = vmatpush.bf16.msra.mxu0 0
    %1160 = vmatpush.bf16.msra.mxu0 0
    %1161 = vmatpush.bf16.msra.mxu0 %v1149
    %1162 = vmatmul.bf16.gmra.mxu0 %v1146
    %v1163 = vpop.f32.mrf.mxu0
    %v1164 = vadd.f32 0.0, %v1163
    %v1165 = vpop.f32.mrf.mxu0
    %1166 = vdwg.mxu0
    %1167 = vmatpush.bf16.msra.mxu0 0
    %1168 = vmatpush.bf16.msra.mxu0 0
    %1169 = vmatpush.bf16.msra.mxu0 0
    %1170 = vmatpush.bf16.msra.mxu0 0
    %1171 = vmatpush.bf16.msra.mxu0 0
    %1172 = vmatpush.bf16.msra.mxu0 0
    %1173 = vmatpush.bf16.msra.mxu0 0
    %1174 = vmatpush.bf16.msra.mxu0 %v1152
    %1175 = vmatmul.bf16.gmra.mxu0 %v1146
    %v1176 = vpop.f32.mrf.mxu0
    %v1177 = vadd.f32 0.0, %v1176
    %v1178 = vpop.f32.mrf.mxu0
    %1179 = vdwg.mxu0
    %v1180 = vadd.f32 %v1119, %v1164
    %v1181 = vadd.f32 %v1120, %v1177
    %v1182 = vld [vmem:[#allocation2 + $0x4] sm:$0xff]
    %v1183 = vld [vmem:[#allocation2 + $0xc] sm:$0xf]
    %1186 = vst [vmem:[#allocation1] ss:$2 sm:$0xff] %v1182
    %s1187 = scalar_lea.vmem [#allocation1], 16
    %1188 = vst [vmem:[%s1187] ss:$2 sm:$0xff] %v1183
    %v1189 = vld.sshfl [vmem:[#allocation1] sm:$0xff pattern:$0x75316420]
    %v1190 = vld.sshfl [vmem:[#allocation1 + $0x8] sm:$0xff pattern:$0x75316420]
    %v1191 = vld.sshfl [vmem:[#allocation1 + $0x10] sm:$0xff pattern:$0x75316420]
    %1192 = vrot.lane.b32.xlu0 %v1189, 111
    %v1193 = vpop.permute.xlu0 %1192
    %1194 = vrot.lane.b32.xlu0 %v1190, 111
    %v1195 = vpop.permute.xlu0 %1194
    %1196 = vrot.lane.b32.xlu0 %v1191, 111
    %v1197 = vpop.permute.xlu0 %1196
    %v1198 = vsel %vm638, %v1193, %v1195
    %v1199 = vsel %vm638, %v1195, %v1197
    %v1202 = vsel %vm622, %v1198, 0.0
    %v1203 = vsel %vm623, %v1199, 0.0
    %v1204 = vpack.c.bf16 %v1202, %v1202
    %v1205 = vpack.c.bf16 %v1203, %v1203
    %v1207 = vsel %vm157, %v64, 0
    %v1210 = vsel %vm161, %v1204, 0
    %v1213 = vsel %vm161, %v1205, 0
    %1215 = vmatpush.bf16.msra.mxu0 0
    %1216 = vmatpush.bf16.msra.mxu0 0
    %1217 = vmatpush.bf16.msra.mxu0 0
    %1218 = vmatpush.bf16.msra.mxu0 0
    %1219 = vmatpush.bf16.msra.mxu0 0
    %1220 = vmatpush.bf16.msra.mxu0 0
    %1221 = vmatpush.bf16.msra.mxu0 0
    %1222 = vmatpush.bf16.msra.mxu0 %v1210
    %1223 = vmatmul.bf16.gmra.mxu0 %v1207
    %v1224 = vpop.f32.mrf.mxu0
    %v1225 = vadd.f32 0.0, %v1224
    %v1226 = vpop.f32.mrf.mxu0
    %1227 = vdwg.mxu0
    %1228 = vmatpush.bf16.msra.mxu0 0
    %1229 = vmatpush.bf16.msra.mxu0 0
    %1230 = vmatpush.bf16.msra.mxu0 0
    %1231 = vmatpush.bf16.msra.mxu0 0
    %1232 = vmatpush.bf16.msra.mxu0 0
    %1233 = vmatpush.bf16.msra.mxu0 0
    %1234 = vmatpush.bf16.msra.mxu0 0
    %1235 = vmatpush.bf16.msra.mxu0 %v1213
    %1236 = vmatmul.bf16.gmra.mxu0 %v1207
    %v1237 = vpop.f32.mrf.mxu0
    %v1238 = vadd.f32 0.0, %v1237
    %v1239 = vpop.f32.mrf.mxu0
    %1240 = vdwg.mxu0
    %v1241 = vadd.f32 %v1180, %v1225
    %v1242 = vadd.f32 %v1181, %v1238
    %1244 = vset.pattern.permute.xlu0 0
    %1245 = vperm.xlu0 %1244, %v93
    %v1246 = vpop.permute.xlu0 %1245
    %v1248 = vmul.f32 %v1241, %v1246
    %v1249 = vmul.f32 %v1242, %v1246
    %1251 = vset.pattern.permute.xlu0 0
    %1252 = vperm.xlu0 %1251, %v94
    %v1253 = vpop.permute.xlu0 %1252
    %v1255 = vadd.f32 %v1248, %v1253
    %v1256 = vadd.f32 %v1249, %v1253
    %vm1257 = vcmp.ge.f32.partialorder %v1255, 1.0
    %vm1258 = vcmp.ge.f32.partialorder %v1256, 1.0
    %v1259 = vsel %vm1257, 1, 0
    %v1260 = vsel %vm1258, 1, 0
    %v1261 = vcvt.s32.f32 %v1259
    %v1262 = vcvt.s32.f32 %v1260
    %v1265 = vrot.slane %v1262, 4
    %v1266 = vsel %vm707, %v1261, %v1265
    %v1268 = vadd.f32 %v95, %v1266
    %1269 = vst [vmem:[#allocation3] sm:$0xff] %v1268
    %s1270 = scalar_lea.vmem %s0, 8
    %v1271 = vld [vmem:[%s1270] sm:$0xff]
    %1272 = vst [vmem:[#allocation2 + $0x4] sm:$0xff] %v1271
    %v1273 = vld [vmem:[#allocation2] sm:$0xff]
    %v1274 = vld [vmem:[#allocation2 + $0x8] sm:$0xf]
    %1277 = vst [vmem:[#allocation1] ss:$2 sm:$0xff] %v1273
    %s1278 = scalar_lea.vmem [#allocation1], 16
    %1279 = vst [vmem:[%s1278] ss:$2 sm:$0xff] %v1274
    %v1280 = vld.sshfl [vmem:[#allocation1] sm:$0xff pattern:$0x75316420]
    %v1281 = vld.sshfl [vmem:[#allocation1 + $0x8] sm:$0xff pattern:$0x75316420]
    %v1282 = vld.sshfl [vmem:[#allocation1 + $0x10] sm:$0xff pattern:$0x75316420]
    %1283 = vrot.lane.b32.xlu0 %v1280, 17
    %v1284 = vpop.permute.xlu0 %1283
    %1285 = vrot.lane.b32.xlu0 %v1281, 17
    %v1286 = vpop.permute.xlu0 %1285
    %1287 = vrot.lane.b32.xlu0 %v1282, 17
    %v1288 = vpop.permute.xlu0 %1287
    %v1289 = vsel %vm118, %v1284, %v1286
    %v1290 = vsel %vm118, %v1286, %v1288
    %v1293 = vsel %vm102, %v1289, 0.0
    %v1294 = vsel %vm103, %v1290, 0.0
    %v1295 = vpack.c.bf16 %v1293, %v1293
    %v1296 = vpack.c.bf16 %v1294, %v1294
    %v1297 = vld [vmem:[#allocation2] sm:$0xff]
    %v1298 = vld [vmem:[#allocation2 + $0x8] sm:$0xf]
    %1301 = vst [vmem:[#allocation1] ss:$2 sm:$0xff] %v1297
    %s1302 = scalar_lea.vmem [#allocation1], 16
    %1303 = vst [vmem:[%s1302] ss:$2 sm:$0xff] %v1298
    %v1304 = vld.sshfl [vmem:[#allocation1] sm:$0xff pattern:$0x75316420]
    %v1305 = vld.sshfl [vmem:[#allocation1 + $0x8] sm:$0xff pattern:$0x75316420]
    %v1306 = vld.sshfl [vmem:[#allocation1 + $0x10] sm:$0xff pattern:$0x75316420]
    %1307 = vrot.lane.b32.xlu0 %v1304, 16
    %v1308 = vpop.permute.xlu0 %1307
    %1309 = vrot.lane.b32.xlu0 %v1305, 16
    %v1310 = vpop.permute.xlu0 %1309
    %1311 = vrot.lane.b32.xlu0 %v1306, 16
    %v1312 = vpop.permute.xlu0 %1311
    %v1313 = vsel %vm148, %v1308, %v1310
    %v1314 = vsel %vm148, %v1310, %v1312
    %v1317 = vsel %vm132, %v1313, 0.0
    %v1318 = vsel %vm133, %v1314, 0.0
    %v1319 = vpack.c.bf16 %v1317, %v1317
    %v1320 = vpack.c.bf16 %v1318, %v1318
    %v1322 = vsel %vm161, %v1319, 0
    %v1325 = vsel %vm161, %v1320, 0
    %1327 = vmatpush.bf16.msra.mxu0 0
    %1328 = vmatpush.bf16.msra.mxu0 0
    %1329 = vmatpush.bf16.msra.mxu0 0
    %1330 = vmatpush.bf16.msra.mxu0 0
    %1331 = vmatpush.bf16.msra.mxu0 0
    %1332 = vmatpush.bf16.msra.mxu0 0
    %1333 = vmatpush.bf16.msra.mxu0 0
    %1334 = vmatpush.bf16.msra.mxu0 %v1322
    %1335 = vmatmul.bf16.gmra.mxu0 %v159
    %v1336 = vpop.f32.mrf.mxu0
    %v1337 = vadd.f32 0.0, %v1336
    %v1338 = vpop.f32.mrf.mxu0
    %1339 = vdwg.mxu0
    %1340 = vmatpush.bf16.msra.mxu0 0
    %1341 = vmatpush.bf16.msra.mxu0 0
    %1342 = vmatpush.bf16.msra.mxu0 0
    %1343 = vmatpush.bf16.msra.mxu0 0
    %1344 = vmatpush.bf16.msra.mxu0 0
    %1345 = vmatpush.bf16.msra.mxu0 0
    %1346 = vmatpush.bf16.msra.mxu0 0
    %1347 = vmatpush.bf16.msra.mxu0 %v1325
    %1348 = vmatmul.bf16.gmra.mxu0 %v159
    %v1349 = vpop.f32.mrf.mxu0
    %v1350 = vadd.f32 0.0, %v1349
    %v1351 = vpop.f32.mrf.mxu0
    %1352 = vdwg.mxu0
    %v1354 = vsel %vm161, %v1295, 0
    %v1357 = vsel %vm161, %v1296, 0
    %1359 = vmatpush.bf16.msra.mxu0 0
    %1360 = vmatpush.bf16.msra.mxu0 0
    %1361 = vmatpush.bf16.msra.mxu0 0
    %1362 = vmatpush.bf16.msra.mxu0 0
    %1363 = vmatpush.bf16.msra.mxu0 0
    %1364 = vmatpush.bf16.msra.mxu0 0
    %1365 = vmatpush.bf16.msra.mxu0 0
    %1366 = vmatpush.bf16.msra.mxu0 %v1354
    %1367 = vmatmul.bf16.gmra.mxu0 %v195
    %v1368 = vpop.f32.mrf.mxu0
    %v1369 = vadd.f32 %v1337, %v1368
    %v1370 = vpop.f32.mrf.mxu0
    %1371 = vdwg.mxu0
    %1372 = vmatpush.bf16.msra.mxu0 0
    %1373 = vmatpush.bf16.msra.mxu0 0
    %1374 = vmatpush.bf16.msra.mxu0 0
    %1375 = vmatpush.bf16.msra.mxu0 0
    %1376 = vmatpush.bf16.msra.mxu0 0
    %1377 = vmatpush.bf16.msra.mxu0 0
    %1378 = vmatpush.bf16.msra.mxu0 0
    %1379 = vmatpush.bf16.msra.mxu0 %v1357
    %1380 = vmatmul.bf16.gmra.mxu0 %v195
    %v1381 = vpop.f32.mrf.mxu0
    %v1382 = vadd.f32 %v1350, %v1381
    %v1383 = vpop.f32.mrf.mxu0
    %1384 = vdwg.mxu0
    %v1385 = vld [vmem:[#allocation2] sm:$0xff]
    %v1386 = vld [vmem:[#allocation2 + $0x8] sm:$0xf]
    %1389 = vst [vmem:[#allocation1] ss:$2 sm:$0xff] %v1385
    %s1390 = scalar_lea.vmem [#allocation1], 16
    %1391 = vst [vmem:[%s1390] ss:$2 sm:$0xff] %v1386
    %v1392 = vld.sshfl [vmem:[#allocation1] sm:$0xff pattern:$0x75316420]
    %v1393 = vld.sshfl [vmem:[#allocation1 + $0x8] sm:$0xff pattern:$0x75316420]
    %v1394 = vld.sshfl [vmem:[#allocation1 + $0x10] sm:$0xff pattern:$0x75316420]
    %1395 = vrot.lane.b32.xlu0 %v1392, 15
    %v1396 = vpop.permute.xlu0 %1395
    %1397 = vrot.lane.b32.xlu0 %v1393, 15
    %v1398 = vpop.permute.xlu0 %1397
    %1399 = vrot.lane.b32.xlu0 %v1394, 15
    %v1400 = vpop.permute.xlu0 %1399
    %v1401 = vsel %vm250, %v1396, %v1398
    %v1402 = vsel %vm250, %v1398, %v1400
    %v1405 = vsel %vm234, %v1401, 0.0
    %v1406 = vsel %vm235, %v1402, 0.0
    %v1407 = vpack.c.bf16 %v1405, %v1405
    %v1408 = vpack.c.bf16 %v1406, %v1406
    %v1410 = vsel %vm161, %v1407, 0
    %v1413 = vsel %vm161, %v1408, 0
    %1415 = vmatpush.bf16.msra.mxu0 0
    %1416 = vmatpush.bf16.msra.mxu0 0
    %1417 = vmatpush.bf16.msra.mxu0 0
    %1418 = vmatpush.bf16.msra.mxu0 0
    %1419 = vmatpush.bf16.msra.mxu0 0
    %1420 = vmatpush.bf16.msra.mxu0 0
    %1421 = vmatpush.bf16.msra.mxu0 0
    %1422 = vmatpush.bf16.msra.mxu0 %v1410
    %1423 = vmatmul.bf16.gmra.mxu0 %v260
    %v1424 = vpop.f32.mrf.mxu0
    %v1425 = vadd.f32 0.0, %v1424
    %v1426 = vpop.f32.mrf.mxu0
    %1427 = vdwg.mxu0
    %1428 = vmatpush.bf16.msra.mxu0 0
    %1429 = vmatpush.bf16.msra.mxu0 0
    %1430 = vmatpush.bf16.msra.mxu0 0
    %1431 = vmatpush.bf16.msra.mxu0 0
    %1432 = vmatpush.bf16.msra.mxu0 0
    %1433 = vmatpush.bf16.msra.mxu0 0
    %1434 = vmatpush.bf16.msra.mxu0 0
    %1435 = vmatpush.bf16.msra.mxu0 %v1413
    %1436 = vmatmul.bf16.gmra.mxu0 %v260
    %v1437 = vpop.f32.mrf.mxu0
    %v1438 = vadd.f32 0.0, %v1437
    %v1439 = vpop.f32.mrf.mxu0
    %1440 = vdwg.mxu0
    %v1441 = vadd.f32 %v1369, %v1425
    %v1442 = vadd.f32 %v1382, %v1438
    %v1443 = vld [vmem:[#allocation2] sm:$0xff]
    %v1444 = vld [vmem:[#allocation2 + $0x8] sm:$0xf]
    %1447 = vst [vmem:[#allocation1] ss:$2 sm:$0xff] %v1443
    %s1448 = scalar_lea.vmem [#allocation1], 16
    %1449 = vst [vmem:[%s1448] ss:$2 sm:$0xff] %v1444
    %v1450 = vld.sshfl [vmem:[#allocation1] sm:$0xff pattern:$0x75316420]
    %v1451 = vld.sshfl [vmem:[#allocation1 + $0x8] sm:$0xff pattern:$0x75316420]
    %v1452 = vld.sshfl [vmem:[#allocation1 + $0x10] sm:$0xff pattern:$0x75316420]
    %1453 = vrot.lane.b32.xlu0 %v1450, 1
    %v1454 = vpop.permute.xlu0 %1453
    %1455 = vrot.lane.b32.xlu0 %v1451, 1
    %v1456 = vpop.permute.xlu0 %1455
    %1457 = vrot.lane.b32.xlu0 %v1452, 1
    %v1458 = vpop.permute.xlu0 %1457
    %v1459 = vsel %vm317, %v1454, %v1456
    %v1460 = vsel %vm317, %v1456, %v1458
    %v1463 = vsel %vm301, %v1459, 0.0
    %v1464 = vsel %vm302, %v1460, 0.0
    %v1465 = vpack.c.bf16 %v1463, %v1463
    %v1466 = vpack.c.bf16 %v1464, %v1464
    %v1468 = vsel %vm161, %v1465, 0
    %v1471 = vsel %vm161, %v1466, 0
    %1473 = vmatpush.bf16.msra.mxu0 0
    %1474 = vmatpush.bf16.msra.mxu0 0
    %1475 = vmatpush.bf16.msra.mxu0 0
    %1476 = vmatpush.bf16.msra.mxu0 0
    %1477 = vmatpush.bf16.msra.mxu0 0
    %1478 = vmatpush.bf16.msra.mxu0 0
    %1479 = vmatpush.bf16.msra.mxu0 0
    %1480 = vmatpush.bf16.msra.mxu0 %v1468
    %1481 = vmatmul.bf16.gmra.mxu0 %v327
    %v1482 = vpop.f32.mrf.mxu0
    %v1483 = vadd.f32 0.0, %v1482
    %v1484 = vpop.f32.mrf.mxu0
    %1485 = vdwg.mxu0
    %1486 = vmatpush.bf16.msra.mxu0 0
    %1487 = vmatpush.bf16.msra.mxu0 0
    %1488 = vmatpush.bf16.msra.mxu0 0
    %1489 = vmatpush.bf16.msra.mxu0 0
    %1490 = vmatpush.bf16.msra.mxu0 0
    %1491 = vmatpush.bf16.msra.mxu0 0
    %1492 = vmatpush.bf16.msra.mxu0 0
    %1493 = vmatpush.bf16.msra.mxu0 %v1471
    %1494 = vmatmul.bf16.gmra.mxu0 %v327
    %v1495 = vpop.f32.mrf.mxu0
    %v1496 = vadd.f32 0.0, %v1495
    %v1497 = vpop.f32.mrf.mxu0
    %1498 = vdwg.mxu0
    %v1499 = vadd.f32 %v1441, %v1483
    %v1500 = vadd.f32 %v1442, %v1496
    %v1501 = vld [vmem:[#allocation2 + $0x4] sm:$0xff]
    %1503 = vst [vmem:[#allocation1] ss:$2 sm:$0xff] %v1501
    %v1504 = vld.sshfl [vmem:[#allocation1] sm:$0xff pattern:$0x75316420]
    %v1505 = vld.sshfl [vmem:[#allocation1 + $0x8] sm:$0xff pattern:$0x75316420]
    %v1508 = vsel %vm367, %v1504, 0.0
    %v1509 = vsel %vm368, %v1505, 0.0
    %v1510 = vpack.c.bf16 %v1508, %v1508
    %v1511 = vpack.c.bf16 %v1509, %v1509
    %v1513 = vsel %vm161, %v1510, 0
    %v1516 = vsel %vm161, %v1511, 0
    %1518 = vmatpush.bf16.msra.mxu0 0
    %1519 = vmatpush.bf16.msra.mxu0 0
    %1520 = vmatpush.bf16.msra.mxu0 0
    %1521 = vmatpush.bf16.msra.mxu0 0
    %1522 = vmatpush.bf16.msra.mxu0 0
    %1523 = vmatpush.bf16.msra.mxu0 0
    %1524 = vmatpush.bf16.msra.mxu0 0
    %1525 = vmatpush.bf16.msra.mxu0 %v1513
    %1526 = vmatmul.bf16.gmra.mxu0 %v380
    %v1527 = vpop.f32.mrf.mxu0
    %v1528 = vadd.f32 0.0, %v1527
    %v1529 = vpop.f32.mrf.mxu0
    %1530 = vdwg.mxu0
    %1531 = vmatpush.bf16.msra.mxu0 0
    %1532 = vmatpush.bf16.msra.mxu0 0
    %1533 = vmatpush.bf16.msra.mxu0 0
    %1534 = vmatpush.bf16.msra.mxu0 0
    %1535 = vmatpush.bf16.msra.mxu0 0
    %1536 = vmatpush.bf16.msra.mxu0 0
    %1537 = vmatpush.bf16.msra.mxu0 0
    %1538 = vmatpush.bf16.msra.mxu0 %v1516
    %1539 = vmatmul.bf16.gmra.mxu0 %v380
    %v1540 = vpop.f32.mrf.mxu0
    %v1541 = vadd.f32 0.0, %v1540
    %v1542 = vpop.f32.mrf.mxu0
    %1543 = vdwg.mxu0
    %v1544 = vadd.f32 %v1499, %v1528
    %v1545 = vadd.f32 %v1500, %v1541
    %v1546 = vld [vmem:[#allocation2 + $0x4] sm:$0xff]
    %v1547 = vld [vmem:[#allocation2 + $0xc] sm:$0xf]
    %1550 = vst [vmem:[#allocation1] ss:$2 sm:$0xff] %v1546
    %s1551 = scalar_lea.vmem [#allocation1], 16
    %1552 = vst [vmem:[%s1551] ss:$2 sm:$0xff] %v1547
    %v1553 = vld.sshfl [vmem:[#allocation1] sm:$0xff pattern:$0x75316420]
    %v1554 = vld.sshfl [vmem:[#allocation1 + $0x8] sm:$0xff pattern:$0x75316420]
    %v1555 = vld.sshfl [vmem:[#allocation1 + $0x10] sm:$0xff pattern:$0x75316420]
    %1556 = vrot.lane.b32.xlu0 %v1553, 127
    %v1557 = vpop.permute.xlu0 %1556
    %1558 = vrot.lane.b32.xlu0 %v1554, 127
    %v1559 = vpop.permute.xlu0 %1558
    %1560 = vrot.lane.b32.xlu0 %v1555, 127
    %v1561 = vpop.permute.xlu0 %1560
    %v1562 = vsel %vm437, %v1557, %v1559
    %v1563 = vsel %vm437, %v1559, %v1561
    %v1566 = vsel %vm421, %v1562, 0.0
    %v1567 = vsel %vm422, %v1563, 0.0
    %v1568 = vpack.c.bf16 %v1566, %v1566
    %v1569 = vpack.c.bf16 %v1567, %v1567
    %v1571 = vsel %vm161, %v1568, 0
    %v1574 = vsel %vm161, %v1569, 0
    %1576 = vmatpush.bf16.msra.mxu0 0
    %1577 = vmatpush.bf16.msra.mxu0 0
    %1578 = vmatpush.bf16.msra.mxu0 0
    %1579 = vmatpush.bf16.msra.mxu0 0
    %1580 = vmatpush.bf16.msra.mxu0 0
    %1581 = vmatpush.bf16.msra.mxu0 0
    %1582 = vmatpush.bf16.msra.mxu0 0
    %1583 = vmatpush.bf16.msra.mxu0 %v1571
    %1584 = vmatmul.bf16.gmra.mxu0 %v447
    %v1585 = vpop.f32.mrf.mxu0
    %v1586 = vadd.f32 0.0, %v1585
    %v1587 = vpop.f32.mrf.mxu0
    %1588 = vdwg.mxu0
    %1589 = vmatpush.bf16.msra.mxu0 0
    %1590 = vmatpush.bf16.msra.mxu0 0
    %1591 = vmatpush.bf16.msra.mxu0 0
    %1592 = vmatpush.bf16.msra.mxu0 0
    %1593 = vmatpush.bf16.msra.mxu0 0
    %1594 = vmatpush.bf16.msra.mxu0 0
    %1595 = vmatpush.bf16.msra.mxu0 0
    %1596 = vmatpush.bf16.msra.mxu0 %v1574
    %1597 = vmatmul.bf16.gmra.mxu0 %v447
    %v1598 = vpop.f32.mrf.mxu0
    %v1599 = vadd.f32 0.0, %v1598
    %v1600 = vpop.f32.mrf.mxu0
    %1601 = vdwg.mxu0
    %v1602 = vadd.f32 %v1544, %v1586
    %v1603 = vadd.f32 %v1545, %v1599
    %v1604 = vld [vmem:[#allocation2 + $0x4] sm:$0xff]
    %v1605 = vld [vmem:[#allocation2 + $0xc] sm:$0xf]
    %1608 = vst [vmem:[#allocation1] ss:$2 sm:$0xff] %v1604
    %s1609 = scalar_lea.vmem [#allocation1], 16
    %1610 = vst [vmem:[%s1609] ss:$2 sm:$0xff] %v1605
    %v1611 = vld.sshfl [vmem:[#allocation1] sm:$0xff pattern:$0x75316420]
    %v1612 = vld.sshfl [vmem:[#allocation1 + $0x8] sm:$0xff pattern:$0x75316420]
    %v1613 = vld.sshfl [vmem:[#allocation1 + $0x10] sm:$0xff pattern:$0x75316420]
    %1614 = vrot.lane.b32.xlu0 %v1611, 113
    %v1615 = vpop.permute.xlu0 %1614
    %1616 = vrot.lane.b32.xlu0 %v1612, 113
    %v1617 = vpop.permute.xlu0 %1616
    %1618 = vrot.lane.b32.xlu0 %v1613, 113
    %v1619 = vpop.permute.xlu0 %1618
    %v1620 = vsel %vm504, %v1615, %v1617
    %v1621 = vsel %vm504, %v1617, %v1619
    %v1624 = vsel %vm488, %v1620, 0.0
    %v1625 = vsel %vm489, %v1621, 0.0
    %v1626 = vpack.c.bf16 %v1624, %v1624
    %v1627 = vpack.c.bf16 %v1625, %v1625
    %v1629 = vsel %vm161, %v1626, 0
    %v1632 = vsel %vm161, %v1627, 0
    %1634 = vmatpush.bf16.msra.mxu0 0
    %1635 = vmatpush.bf16.msra.mxu0 0
    %1636 = vmatpush.bf16.msra.mxu0 0
    %1637 = vmatpush.bf16.msra.mxu0 0
    %1638 = vmatpush.bf16.msra.mxu0 0
    %1639 = vmatpush.bf16.msra.mxu0 0
    %1640 = vmatpush.bf16.msra.mxu0 0
    %1641 = vmatpush.bf16.msra.mxu0 %v1629
    %1642 = vmatmul.bf16.gmra.mxu0 %v514
    %v1643 = vpop.f32.mrf.mxu0
    %v1644 = vadd.f32 0.0, %v1643
    %v1645 = vpop.f32.mrf.mxu0
    %1646 = vdwg.mxu0
    %1647 = vmatpush.bf16.msra.mxu0 0
    %1648 = vmatpush.bf16.msra.mxu0 0
    %1649 = vmatpush.bf16.msra.mxu0 0
    %1650 = vmatpush.bf16.msra.mxu0 0
    %1651 = vmatpush.bf16.msra.mxu0 0
    %1652 = vmatpush.bf16.msra.mxu0 0
    %1653 = vmatpush.bf16.msra.mxu0 0
    %1654 = vmatpush.bf16.msra.mxu0 %v1632
    %1655 = vmatmul.bf16.gmra.mxu0 %v514
    %v1656 = vpop.f32.mrf.mxu0
    %v1657 = vadd.f32 0.0, %v1656
    %v1658 = vpop.f32.mrf.mxu0
    %1659 = vdwg.mxu0
    %v1660 = vadd.f32 %v1602, %v1644
    %v1661 = vadd.f32 %v1603, %v1657
    %v1662 = vld [vmem:[#allocation2 + $0x4] sm:$0xff]
    %v1663 = vld [vmem:[#allocation2 + $0xc] sm:$0xf]
    %1666 = vst [vmem:[#allocation1] ss:$2 sm:$0xff] %v1662
    %s1667 = scalar_lea.vmem [#allocation1], 16
    %1668 = vst [vmem:[%s1667] ss:$2 sm:$0xff] %v1663
    %v1669 = vld.sshfl [vmem:[#allocation1] sm:$0xff pattern:$0x75316420]
    %v1670 = vld.sshfl [vmem:[#allocation1 + $0x8] sm:$0xff pattern:$0x75316420]
    %v1671 = vld.sshfl [vmem:[#allocation1 + $0x10] sm:$0xff pattern:$0x75316420]
    %1672 = vrot.lane.b32.xlu0 %v1669, 112
    %v1673 = vpop.permute.xlu0 %1672
    %1674 = vrot.lane.b32.xlu0 %v1670, 112
    %v1675 = vpop.permute.xlu0 %1674
    %1676 = vrot.lane.b32.xlu0 %v1671, 112
    %v1677 = vpop.permute.xlu0 %1676
    %v1678 = vsel %vm571, %v1673, %v1675
    %v1679 = vsel %vm571, %v1675, %v1677
    %v1682 = vsel %vm555, %v1678, 0.0
    %v1683 = vsel %vm556, %v1679, 0.0
    %v1684 = vpack.c.bf16 %v1682, %v1682
    %v1685 = vpack.c.bf16 %v1683, %v1683
    %v1687 = vsel %vm161, %v1684, 0
    %v1690 = vsel %vm161, %v1685, 0
    %1692 = vmatpush.bf16.msra.mxu0 0
    %1693 = vmatpush.bf16.msra.mxu0 0
    %1694 = vmatpush.bf16.msra.mxu0 0
    %1695 = vmatpush.bf16.msra.mxu0 0
    %1696 = vmatpush.bf16.msra.mxu0 0
    %1697 = vmatpush.bf16.msra.mxu0 0
    %1698 = vmatpush.bf16.msra.mxu0 0
    %1699 = vmatpush.bf16.msra.mxu0 %v1687
    %1700 = vmatmul.bf16.gmra.mxu0 %v581
    %v1701 = vpop.f32.mrf.mxu0
    %v1702 = vadd.f32 0.0, %v1701
    %v1703 = vpop.f32.mrf.mxu0
    %1704 = vdwg.mxu0
    %1705 = vmatpush.bf16.msra.mxu0 0
    %1706 = vmatpush.bf16.msra.mxu0 0
    %1707 = vmatpush.bf16.msra.mxu0 0
    %1708 = vmatpush.bf16.msra.mxu0 0
    %1709 = vmatpush.bf16.msra.mxu0 0
    %1710 = vmatpush.bf16.msra.mxu0 0
    %1711 = vmatpush.bf16.msra.mxu0 0
    %1712 = vmatpush.bf16.msra.mxu0 %v1690
    %1713 = vmatmul.bf16.gmra.mxu0 %v581
    %v1714 = vpop.f32.mrf.mxu0
    %v1715 = vadd.f32 0.0, %v1714
    %v1716 = vpop.f32.mrf.mxu0
    %1717 = vdwg.mxu0
    %v1718 = vadd.f32 %v1660, %v1702
    %v1719 = vadd.f32 %v1661, %v1715
    %v1720 = vld [vmem:[#allocation2 + $0x4] sm:$0xff]
    %v1721 = vld [vmem:[#allocation2 + $0xc] sm:$0xf]
    %1724 = vst [vmem:[#allocation1] ss:$2 sm:$0xff] %v1720
    %s1725 = scalar_lea.vmem [#allocation1], 16
    %1726 = vst [vmem:[%s1725] ss:$2 sm:$0xff] %v1721
    %v1727 = vld.sshfl [vmem:[#allocation1] sm:$0xff pattern:$0x75316420]
    %v1728 = vld.sshfl [vmem:[#allocation1 + $0x8] sm:$0xff pattern:$0x75316420]
    %v1729 = vld.sshfl [vmem:[#allocation1 + $0x10] sm:$0xff pattern:$0x75316420]
    %1730 = vrot.lane.b32.xlu0 %v1727, 111
    %v1731 = vpop.permute.xlu0 %1730
    %1732 = vrot.lane.b32.xlu0 %v1728, 111
    %v1733 = vpop.permute.xlu0 %1732
    %1734 = vrot.lane.b32.xlu0 %v1729, 111
    %v1735 = vpop.permute.xlu0 %1734
    %v1736 = vsel %vm638, %v1731, %v1733
    %v1737 = vsel %vm638, %v1733, %v1735
    %v1740 = vsel %vm622, %v1736, 0.0
    %v1741 = vsel %vm623, %v1737, 0.0
    %v1742 = vpack.c.bf16 %v1740, %v1740
    %v1743 = vpack.c.bf16 %v1741, %v1741
    %v1745 = vsel %vm161, %v1742, 0
    %v1748 = vsel %vm161, %v1743, 0
    %1750 = vmatpush.bf16.msra.mxu0 0
    %1751 = vmatpush.bf16.msra.mxu0 0
    %1752 = vmatpush.bf16.msra.mxu0 0
    %1753 = vmatpush.bf16.msra.mxu0 0
    %1754 = vmatpush.bf16.msra.mxu0 0
    %1755 = vmatpush.bf16.msra.mxu0 0
    %1756 = vmatpush.bf16.msra.mxu0 0
    %1757 = vmatpush.bf16.msra.mxu0 %v1745
    %1758 = vmatmul.bf16.gmra.mxu0 %v648
    %v1759 = vpop.f32.mrf.mxu0
    %v1760 = vadd.f32 0.0, %v1759
    %v1761 = vpop.f32.mrf.mxu0
    %1762 = vdwg.mxu0
    %1763 = vmatpush.bf16.msra.mxu0 0
    %1764 = vmatpush.bf16.msra.mxu0 0
    %1765 = vmatpush.bf16.msra.mxu0 0
    %1766 = vmatpush.bf16.msra.mxu0 0
    %1767 = vmatpush.bf16.msra.mxu0 0
    %1768 = vmatpush.bf16.msra.mxu0 0
    %1769 = vmatpush.bf16.msra.mxu0 0
    %1770 = vmatpush.bf16.msra.mxu0 %v1748
    %1771 = vmatmul.bf16.gmra.mxu0 %v648
    %v1772 = vpop.f32.mrf.mxu0
    %v1773 = vadd.f32 0.0, %v1772
    %v1774 = vpop.f32.mrf.mxu0
    %1775 = vdwg.mxu0
    %v1776 = vadd.f32 %v1718, %v1760
    %v1777 = vadd.f32 %v1719, %v1773
    %v1778 = vmul.f32 %v1776, %v687
    %v1779 = vmul.f32 %v1777, %v687
    %v1780 = vadd.f32 %v1778, %v694
    %v1781 = vadd.f32 %v1779, %v694
    %vm1782 = vcmp.ge.f32.partialorder %v1780, 1.0
    %vm1783 = vcmp.ge.f32.partialorder %v1781, 1.0
    %v1784 = vsel %vm1782, 1, 0
    %v1785 = vsel %vm1783, 1, 0
    %v1786 = vcvt.s32.f32 %v1784
    %v1787 = vcvt.s32.f32 %v1785
    %v1790 = vrot.slane %v1787, 4
    %v1791 = vsel %vm707, %v1786, %v1790
    %1793 = vst [vmem:[#allocation2 + $0x4] sm:$0xff] %v1791
    %v1794 = vld [vmem:[#allocation2] sm:$0xff]
    %v1795 = vld [vmem:[#allocation2 + $0x8] sm:$0xf]
    %1798 = vst [vmem:[#allocation1] ss:$2 sm:$0xff] %v1794
    %s1799 = scalar_lea.vmem [#allocation1], 16
    %1800 = vst [vmem:[%s1799] ss:$2 sm:$0xff] %v1795
    %v1801 = vld.sshfl [vmem:[#allocation1] sm:$0xff pattern:$0x75316420]
    %v1802 = vld.sshfl [vmem:[#allocation1 + $0x8] sm:$0xff pattern:$0x75316420]
    %v1803 = vld.sshfl [vmem:[#allocation1 + $0x10] sm:$0xff pattern:$0x75316420]
    %1804 = vrot.lane.b32.xlu0 %v1801, 17
    %v1805 = vpop.permute.xlu0 %1804
    %1806 = vrot.lane.b32.xlu0 %v1802, 17
    %v1807 = vpop.permute.xlu0 %1806
    %1808 = vrot.lane.b32.xlu0 %v1803, 17
    %v1809 = vpop.permute.xlu0 %1808
    %v1810 = vsel %vm118, %v1805, %v1807
    %v1811 = vsel %vm118, %v1807, %v1809
    %v1814 = vsel %vm102, %v1810, 0.0
    %v1815 = vsel %vm103, %v1811, 0.0
    %v1816 = vpack.c.bf16 %v1814, %v1814
    %v1817 = vpack.c.bf16 %v1815, %v1815
    %v1818 = vld [vmem:[#allocation2] sm:$0xff]
    %v1819 = vld [vmem:[#allocation2 + $0x8] sm:$0xf]
    %1822 = vst [vmem:[#allocation1] ss:$2 sm:$0xff] %v1818
    %s1823 = scalar_lea.vmem [#allocation1], 16
    %1824 = vst [vmem:[%s1823] ss:$2 sm:$0xff] %v1819
    %v1825 = vld.sshfl [vmem:[#allocation1] sm:$0xff pattern:$0x75316420]
    %v1826 = vld.sshfl [vmem:[#allocation1 + $0x8] sm:$0xff pattern:$0x75316420]
    %v1827 = vld.sshfl [vmem:[#allocation1 + $0x10] sm:$0xff pattern:$0x75316420]
    %1828 = vrot.lane.b32.xlu0 %v1825, 16
    %v1829 = vpop.permute.xlu0 %1828
    %1830 = vrot.lane.b32.xlu0 %v1826, 16
    %v1831 = vpop.permute.xlu0 %1830
    %1832 = vrot.lane.b32.xlu0 %v1827, 16
    %v1833 = vpop.permute.xlu0 %1832
    %v1834 = vsel %vm148, %v1829, %v1831
    %v1835 = vsel %vm148, %v1831, %v1833
    %v1838 = vsel %vm132, %v1834, 0.0
    %v1839 = vsel %vm133, %v1835, 0.0
    %v1840 = vpack.c.bf16 %v1838, %v1838
    %v1841 = vpack.c.bf16 %v1839, %v1839
    %v1843 = vsel %vm161, %v1840, 0
    %v1846 = vsel %vm161, %v1841, 0
    %1848 = vmatpush.bf16.msra.mxu0 0
    %1849 = vmatpush.bf16.msra.mxu0 0
    %1850 = vmatpush.bf16.msra.mxu0 0
    %1851 = vmatpush.bf16.msra.mxu0 0
    %1852 = vmatpush.bf16.msra.mxu0 0
    %1853 = vmatpush.bf16.msra.mxu0 0
    %1854 = vmatpush.bf16.msra.mxu0 0
    %1855 = vmatpush.bf16.msra.mxu0 %v1843
    %1856 = vmatmul.bf16.gmra.mxu0 %v760
    %v1857 = vpop.f32.mrf.mxu0
    %v1858 = vadd.f32 0.0, %v1857
    %v1859 = vpop.f32.mrf.mxu0
    %1860 = vdwg.mxu0
    %1861 = vmatpush.bf16.msra.mxu0 0
    %1862 = vmatpush.bf16.msra.mxu0 0
    %1863 = vmatpush.bf16.msra.mxu0 0
    %1864 = vmatpush.bf16.msra.mxu0 0
    %1865 = vmatpush.bf16.msra.mxu0 0
    %1866 = vmatpush.bf16.msra.mxu0 0
    %1867 = vmatpush.bf16.msra.mxu0 0
    %1868 = vmatpush.bf16.msra.mxu0 %v1846
    %1869 = vmatmul.bf16.gmra.mxu0 %v760
    %v1870 = vpop.f32.mrf.mxu0
    %v1871 = vadd.f32 0.0, %v1870
    %v1872 = vpop.f32.mrf.mxu0
    %1873 = vdwg.mxu0
    %v1875 = vsel %vm161, %v1816, 0
    %v1878 = vsel %vm161, %v1817, 0
    %1880 = vmatpush.bf16.msra.mxu0 0
    %1881 = vmatpush.bf16.msra.mxu0 0
    %1882 = vmatpush.bf16.msra.mxu0 0
    %1883 = vmatpush.bf16.msra.mxu0 0
    %1884 = vmatpush.bf16.msra.mxu0 0
    %1885 = vmatpush.bf16.msra.mxu0 0
    %1886 = vmatpush.bf16.msra.mxu0 0
    %1887 = vmatpush.bf16.msra.mxu0 %v1875
    %1888 = vmatmul.bf16.gmra.mxu0 %v795
    %v1889 = vpop.f32.mrf.mxu0
    %v1890 = vadd.f32 %v1858, %v1889
    %v1891 = vpop.f32.mrf.mxu0
    %1892 = vdwg.mxu0
    %1893 = vmatpush.bf16.msra.mxu0 0
    %1894 = vmatpush.bf16.msra.mxu0 0
    %1895 = vmatpush.bf16.msra.mxu0 0
    %1896 = vmatpush.bf16.msra.mxu0 0
    %1897 = vmatpush.bf16.msra.mxu0 0
    %1898 = vmatpush.bf16.msra.mxu0 0
    %1899 = vmatpush.bf16.msra.mxu0 0
    %1900 = vmatpush.bf16.msra.mxu0 %v1878
    %1901 = vmatmul.bf16.gmra.mxu0 %v795
    %v1902 = vpop.f32.mrf.mxu0
    %v1903 = vadd.f32 %v1871, %v1902
    %v1904 = vpop.f32.mrf.mxu0
    %1905 = vdwg.mxu0
    %v1906 = vld [vmem:[#allocation2] sm:$0xff]
    %v1907 = vld [vmem:[#allocation2 + $0x8] sm:$0xf]
    %1910 = vst [vmem:[#allocation1] ss:$2 sm:$0xff] %v1906
    %s1911 = scalar_lea.vmem [#allocation1], 16
    %1912 = vst [vmem:[%s1911] ss:$2 sm:$0xff] %v1907
    %v1913 = vld.sshfl [vmem:[#allocation1] sm:$0xff pattern:$0x75316420]
    %v1914 = vld.sshfl [vmem:[#allocation1 + $0x8] sm:$0xff pattern:$0x75316420]
    %v1915 = vld.sshfl [vmem:[#allocation1 + $0x10] sm:$0xff pattern:$0x75316420]
    %1916 = vrot.lane.b32.xlu0 %v1913, 15
    %v1917 = vpop.permute.xlu0 %1916
    %1918 = vrot.lane.b32.xlu0 %v1914, 15
    %v1919 = vpop.permute.xlu0 %1918
    %1920 = vrot.lane.b32.xlu0 %v1915, 15
    %v1921 = vpop.permute.xlu0 %1920
    %v1922 = vsel %vm250, %v1917, %v1919
    %v1923 = vsel %vm250, %v1919, %v1921
    %v1926 = vsel %vm234, %v1922, 0.0
    %v1927 = vsel %vm235, %v1923, 0.0
    %v1928 = vpack.c.bf16 %v1926, %v1926
    %v1929 = vpack.c.bf16 %v1927, %v1927
    %v1931 = vsel %vm161, %v1928, 0
    %v1934 = vsel %vm161, %v1929, 0
    %1936 = vmatpush.bf16.msra.mxu0 0
    %1937 = vmatpush.bf16.msra.mxu0 0
    %1938 = vmatpush.bf16.msra.mxu0 0
    %1939 = vmatpush.bf16.msra.mxu0 0
    %1940 = vmatpush.bf16.msra.mxu0 0
    %1941 = vmatpush.bf16.msra.mxu0 0
    %1942 = vmatpush.bf16.msra.mxu0 0
    %1943 = vmatpush.bf16.msra.mxu0 %v1931
    %1944 = vmatmul.bf16.gmra.mxu0 %v854
    %v1945 = vpop.f32.mrf.mxu0
    %v1946 = vadd.f32 0.0, %v1945
    %v1947 = vpop.f32.mrf.mxu0
    %1948 = vdwg.mxu0
    %1949 = vmatpush.bf16.msra.mxu0 0
    %1950 = vmatpush.bf16.msra.mxu0 0
    %1951 = vmatpush.bf16.msra.mxu0 0
    %1952 = vmatpush.bf16.msra.mxu0 0
    %1953 = vmatpush.bf16.msra.mxu0 0
    %1954 = vmatpush.bf16.msra.mxu0 0
    %1955 = vmatpush.bf16.msra.mxu0 0
    %1956 = vmatpush.bf16.msra.mxu0 %v1934
    %1957 = vmatmul.bf16.gmra.mxu0 %v854
    %v1958 = vpop.f32.mrf.mxu0
    %v1959 = vadd.f32 0.0, %v1958
    %v1960 = vpop.f32.mrf.mxu0
    %1961 = vdwg.mxu0
    %v1962 = vadd.f32 %v1890, %v1946
    %v1963 = vadd.f32 %v1903, %v1959
    %v1964 = vld [vmem:[#allocation2] sm:$0xff]
    %v1965 = vld [vmem:[#allocation2 + $0x8] sm:$0xf]
    %1968 = vst [vmem:[#allocation1] ss:$2 sm:$0xff] %v1964
    %s1969 = scalar_lea.vmem [#allocation1], 16
    %1970 = vst [vmem:[%s1969] ss:$2 sm:$0xff] %v1965
    %v1971 = vld.sshfl [vmem:[#allocation1] sm:$0xff pattern:$0x75316420]
    %v1972 = vld.sshfl [vmem:[#allocation1 + $0x8] sm:$0xff pattern:$0x75316420]
    %v1973 = vld.sshfl [vmem:[#allocation1 + $0x10] sm:$0xff pattern:$0x75316420]
    %1974 = vrot.lane.b32.xlu0 %v1971, 1
    %v1975 = vpop.permute.xlu0 %1974
    %1976 = vrot.lane.b32.xlu0 %v1972, 1
    %v1977 = vpop.permute.xlu0 %1976
    %1978 = vrot.lane.b32.xlu0 %v1973, 1
    %v1979 = vpop.permute.xlu0 %1978
    %v1980 = vsel %vm317, %v1975, %v1977
    %v1981 = vsel %vm317, %v1977, %v1979
    %v1984 = vsel %vm301, %v1980, 0.0
    %v1985 = vsel %vm302, %v1981, 0.0
    %v1986 = vpack.c.bf16 %v1984, %v1984
    %v1987 = vpack.c.bf16 %v1985, %v1985
    %v1989 = vsel %vm161, %v1986, 0
    %v1992 = vsel %vm161, %v1987, 0
    %1994 = vmatpush.bf16.msra.mxu0 0
    %1995 = vmatpush.bf16.msra.mxu0 0
    %1996 = vmatpush.bf16.msra.mxu0 0
    %1997 = vmatpush.bf16.msra.mxu0 0
    %1998 = vmatpush.bf16.msra.mxu0 0
    %1999 = vmatpush.bf16.msra.mxu0 0
    %2000 = vmatpush.bf16.msra.mxu0 0
    %2001 = vmatpush.bf16.msra.mxu0 %v1989
    %2002 = vmatmul.bf16.gmra.mxu0 %v915
    %v2003 = vpop.f32.mrf.mxu0
    %v2004 = vadd.f32 0.0, %v2003
    %v2005 = vpop.f32.mrf.mxu0
    %2006 = vdwg.mxu0
    %2007 = vmatpush.bf16.msra.mxu0 0
    %2008 = vmatpush.bf16.msra.mxu0 0
    %2009 = vmatpush.bf16.msra.mxu0 0
    %2010 = vmatpush.bf16.msra.mxu0 0
    %2011 = vmatpush.bf16.msra.mxu0 0
    %2012 = vmatpush.bf16.msra.mxu0 0
    %2013 = vmatpush.bf16.msra.mxu0 0
    %2014 = vmatpush.bf16.msra.mxu0 %v1992
    %2015 = vmatmul.bf16.gmra.mxu0 %v915
    %v2016 = vpop.f32.mrf.mxu0
    %v2017 = vadd.f32 0.0, %v2016
    %v2018 = vpop.f32.mrf.mxu0
    %2019 = vdwg.mxu0
    %v2020 = vadd.f32 %v1962, %v2004
    %v2021 = vadd.f32 %v1963, %v2017
    %v2022 = vld [vmem:[#allocation2 + $0x4] sm:$0xff]
    %2024 = vst [vmem:[#allocation1] ss:$2 sm:$0xff] %v2022
    %v2025 = vld.sshfl [vmem:[#allocation1] sm:$0xff pattern:$0x75316420]
    %v2026 = vld.sshfl [vmem:[#allocation1 + $0x8] sm:$0xff pattern:$0x75316420]
    %v2029 = vsel %vm367, %v2025, 0.0
    %v2030 = vsel %vm368, %v2026, 0.0
    %v2031 = vpack.c.bf16 %v2029, %v2029
    %v2032 = vpack.c.bf16 %v2030, %v2030
    %v2034 = vsel %vm161, %v2031, 0
    %v2037 = vsel %vm161, %v2032, 0
    %2039 = vmatpush.bf16.msra.mxu0 0
    %2040 = vmatpush.bf16.msra.mxu0 0
    %2041 = vmatpush.bf16.msra.mxu0 0
    %2042 = vmatpush.bf16.msra.mxu0 0
    %2043 = vmatpush.bf16.msra.mxu0 0
    %2044 = vmatpush.bf16.msra.mxu0 0
    %2045 = vmatpush.bf16.msra.mxu0 0
    %2046 = vmatpush.bf16.msra.mxu0 %v2034
    %2047 = vmatmul.bf16.gmra.mxu0 %v963
    %v2048 = vpop.f32.mrf.mxu0
    %v2049 = vadd.f32 0.0, %v2048
    %v2050 = vpop.f32.mrf.mxu0
    %2051 = vdwg.mxu0
    %2052 = vmatpush.bf16.msra.mxu0 0
    %2053 = vmatpush.bf16.msra.mxu0 0
    %2054 = vmatpush.bf16.msra.mxu0 0
    %2055 = vmatpush.bf16.msra.mxu0 0
    %2056 = vmatpush.bf16.msra.mxu0 0
    %2057 = vmatpush.bf16.msra.mxu0 0
    %2058 = vmatpush.bf16.msra.mxu0 0
    %2059 = vmatpush.bf16.msra.mxu0 %v2037
    %2060 = vmatmul.bf16.gmra.mxu0 %v963
    %v2061 = vpop.f32.mrf.mxu0
    %v2062 = vadd.f32 0.0, %v2061
    %v2063 = vpop.f32.mrf.mxu0
    %2064 = vdwg.mxu0
    %v2065 = vadd.f32 %v2020, %v2049
    %v2066 = vadd.f32 %v2021, %v2062
    %v2067 = vld [vmem:[#allocation2 + $0x4] sm:$0xff]
    %v2068 = vld [vmem:[#allocation2 + $0xc] sm:$0xf]
    %2071 = vst [vmem:[#allocation1] ss:$2 sm:$0xff] %v2067
    %s2072 = scalar_lea.vmem [#allocation1], 16
    %2073 = vst [vmem:[%s2072] ss:$2 sm:$0xff] %v2068
    %v2074 = vld.sshfl [vmem:[#allocation1] sm:$0xff pattern:$0x75316420]
    %v2075 = vld.sshfl [vmem:[#allocation1 + $0x8] sm:$0xff pattern:$0x75316420]
    %v2076 = vld.sshfl [vmem:[#allocation1 + $0x10] sm:$0xff pattern:$0x75316420]
    %2077 = vrot.lane.b32.xlu0 %v2074, 127
    %v2078 = vpop.permute.xlu0 %2077
    %2079 = vrot.lane.b32.xlu0 %v2075, 127
    %v2080 = vpop.permute.xlu0 %2079
    %2081 = vrot.lane.b32.xlu0 %v2076, 127
    %v2082 = vpop.permute.xlu0 %2081
    %v2083 = vsel %vm437, %v2078, %v2080
    %v2084 = vsel %vm437, %v2080, %v2082
    %v2087 = vsel %vm421, %v2083, 0.0
    %v2088 = vsel %vm422, %v2084, 0.0
    %v2089 = vpack.c.bf16 %v2087, %v2087
    %v2090 = vpack.c.bf16 %v2088, %v2088
    %v2092 = vsel %vm161, %v2089, 0
    %v2095 = vsel %vm161, %v2090, 0
    %2097 = vmatpush.bf16.msra.mxu0 0
    %2098 = vmatpush.bf16.msra.mxu0 0
    %2099 = vmatpush.bf16.msra.mxu0 0
    %2100 = vmatpush.bf16.msra.mxu0 0
    %2101 = vmatpush.bf16.msra.mxu0 0
    %2102 = vmatpush.bf16.msra.mxu0 0
    %2103 = vmatpush.bf16.msra.mxu0 0
    %2104 = vmatpush.bf16.msra.mxu0 %v2092
    %2105 = vmatmul.bf16.gmra.mxu0 %v1024
    %v2106 = vpop.f32.mrf.mxu0
    %v2107 = vadd.f32 0.0, %v2106
    %v2108 = vpop.f32.mrf.mxu0
    %2109 = vdwg.mxu0
    %2110 = vmatpush.bf16.msra.mxu0 0
    %2111 = vmatpush.bf16.msra.mxu0 0
    %2112 = vmatpush.bf16.msra.mxu0 0
    %2113 = vmatpush.bf16.msra.mxu0 0
    %2114 = vmatpush.bf16.msra.mxu0 0
    %2115 = vmatpush.bf16.msra.mxu0 0
    %2116 = vmatpush.bf16.msra.mxu0 0
    %2117 = vmatpush.bf16.msra.mxu0 %v2095
    %2118 = vmatmul.bf16.gmra.mxu0 %v1024
    %v2119 = vpop.f32.mrf.mxu0
    %v2120 = vadd.f32 0.0, %v2119
    %v2121 = vpop.f32.mrf.mxu0
    %2122 = vdwg.mxu0
    %v2123 = vadd.f32 %v2065, %v2107
    %v2124 = vadd.f32 %v2066, %v2120
    %v2125 = vld [vmem:[#allocation2 + $0x4] sm:$0xff]
    %v2126 = vld [vmem:[#allocation2 + $0xc] sm:$0xf]
    %2129 = vst [vmem:[#allocation1] ss:$2 sm:$0xff] %v2125
    %s2130 = scalar_lea.vmem [#allocation1], 16
    %2131 = vst [vmem:[%s2130] ss:$2 sm:$0xff] %v2126
    %v2132 = vld.sshfl [vmem:[#allocation1] sm:$0xff pattern:$0x75316420]
    %v2133 = vld.sshfl [vmem:[#allocation1 + $0x8] sm:$0xff pattern:$0x75316420]
    %v2134 = vld.sshfl [vmem:[#allocation1 + $0x10] sm:$0xff pattern:$0x75316420]
    %2135 = vrot.lane.b32.xlu0 %v2132, 113
    %v2136 = vpop.permute.xlu0 %2135
    %2137 = vrot.lane.b32.xlu0 %v2133, 113
    %v2138 = vpop.permute.xlu0 %2137
    %2139 = vrot.lane.b32.xlu0 %v2134, 113
    %v2140 = vpop.permute.xlu0 %2139
    %v2141 = vsel %vm504, %v2136, %v2138
    %v2142 = vsel %vm504, %v2138, %v2140
    %v2145 = vsel %vm488, %v2141, 0.0
    %v2146 = vsel %vm489, %v2142, 0.0
    %v2147 = vpack.c.bf16 %v2145, %v2145
    %v2148 = vpack.c.bf16 %v2146, %v2146
    %v2150 = vsel %vm161, %v2147, 0
    %v2153 = vsel %vm161, %v2148, 0
    %2155 = vmatpush.bf16.msra.mxu0 0
    %2156 = vmatpush.bf16.msra.mxu0 0
    %2157 = vmatpush.bf16.msra.mxu0 0
    %2158 = vmatpush.bf16.msra.mxu0 0
    %2159 = vmatpush.bf16.msra.mxu0 0
    %2160 = vmatpush.bf16.msra.mxu0 0
    %2161 = vmatpush.bf16.msra.mxu0 0
    %2162 = vmatpush.bf16.msra.mxu0 %v2150
    %2163 = vmatmul.bf16.gmra.mxu0 %v1085
    %v2164 = vpop.f32.mrf.mxu0
    %v2165 = vadd.f32 0.0, %v2164
    %v2166 = vpop.f32.mrf.mxu0
    %2167 = vdwg.mxu0
    %2168 = vmatpush.bf16.msra.mxu0 0
    %2169 = vmatpush.bf16.msra.mxu0 0
    %2170 = vmatpush.bf16.msra.mxu0 0
    %2171 = vmatpush.bf16.msra.mxu0 0
    %2172 = vmatpush.bf16.msra.mxu0 0
    %2173 = vmatpush.bf16.msra.mxu0 0
    %2174 = vmatpush.bf16.msra.mxu0 0
    %2175 = vmatpush.bf16.msra.mxu0 %v2153
    %2176 = vmatmul.bf16.gmra.mxu0 %v1085
    %v2177 = vpop.f32.mrf.mxu0
    %v2178 = vadd.f32 0.0, %v2177
    %v2179 = vpop.f32.mrf.mxu0
    %2180 = vdwg.mxu0
    %v2181 = vadd.f32 %v2123, %v2165
    %v2182 = vadd.f32 %v2124, %v2178
    %v2183 = vld [vmem:[#allocation2 + $0x4] sm:$0xff]
    %v2184 = vld [vmem:[#allocation2 + $0xc] sm:$0xf]
    %2187 = vst [vmem:[#allocation1] ss:$2 sm:$0xff] %v2183
    %s2188 = scalar_lea.vmem [#allocation1], 16
    %2189 = vst [vmem:[%s2188] ss:$2 sm:$0xff] %v2184
    %v2190 = vld.sshfl [vmem:[#allocation1] sm:$0xff pattern:$0x75316420]
    %v2191 = vld.sshfl [vmem:[#allocation1 + $0x8] sm:$0xff pattern:$0x75316420]
    %v2192 = vld.sshfl [vmem:[#allocation1 + $0x10] sm:$0xff pattern:$0x75316420]
    %2193 = vrot.lane.b32.xlu0 %v2190, 112
    %v2194 = vpop.permute.xlu0 %2193
    %2195 = vrot.lane.b32.xlu0 %v2191, 112
    %v2196 = vpop.permute.xlu0 %2195
    %2197 = vrot.lane.b32.xlu0 %v2192, 112
    %v2198 = vpop.permute.xlu0 %2197
    %v2199 = vsel %vm571, %v2194, %v2196
    %v2200 = vsel %vm571, %v2196, %v2198
    %v2203 = vsel %vm555, %v2199, 0.0
    %v2204 = vsel %vm556, %v2200, 0.0
    %v2205 = vpack.c.bf16 %v2203, %v2203
    %v2206 = vpack.c.bf16 %v2204, %v2204
    %v2208 = vsel %vm161, %v2205, 0
    %v2211 = vsel %vm161, %v2206, 0
    %2213 = vmatpush.bf16.msra.mxu0 0
    %2214 = vmatpush.bf16.msra.mxu0 0
    %2215 = vmatpush.bf16.msra.mxu0 0
    %2216 = vmatpush.bf16.msra.mxu0 0
    %2217 = vmatpush.bf16.msra.mxu0 0
    %2218 = vmatpush.bf16.msra.mxu0 0
    %2219 = vmatpush.bf16.msra.mxu0 0
    %2220 = vmatpush.bf16.msra.mxu0 %v2208
    %2221 = vmatmul.bf16.gmra.mxu0 %v1146
    %v2222 = vpop.f32.mrf.mxu0
    %v2223 = vadd.f32 0.0, %v2222
    %v2224 = vpop.f32.mrf.mxu0
    %2225 = vdwg.mxu0
    %2226 = vmatpush.bf16.msra.mxu0 0
    %2227 = vmatpush.bf16.msra.mxu0 0
    %2228 = vmatpush.bf16.msra.mxu0 0
    %2229 = vmatpush.bf16.msra.mxu0 0
    %2230 = vmatpush.bf16.msra.mxu0 0
    %2231 = vmatpush.bf16.msra.mxu0 0
    %2232 = vmatpush.bf16.msra.mxu0 0
    %2233 = vmatpush.bf16.msra.mxu0 %v2211
    %2234 = vmatmul.bf16.gmra.mxu0 %v1146
    %v2235 = vpop.f32.mrf.mxu0
    %v2236 = vadd.f32 0.0, %v2235
    %v2237 = vpop.f32.mrf.mxu0
    %2238 = vdwg.mxu0
    %v2239 = vadd.f32 %v2181, %v2223
    %v2240 = vadd.f32 %v2182, %v2236
    %v2241 = vld [vmem:[#allocation2 + $0x4] sm:$0xff]
    %v2242 = vld [vmem:[#allocation2 + $0xc] sm:$0xf]
    %2245 = vst [vmem:[#allocation1] ss:$2 sm:$0xff] %v2241
    %s2246 = scalar_lea.vmem [#allocation1], 16
    %2247 = vst [vmem:[%s2246] ss:$2 sm:$0xff] %v2242
    %v2248 = vld.sshfl [vmem:[#allocation1] sm:$0xff pattern:$0x75316420]
    %v2249 = vld.sshfl [vmem:[#allocation1 + $0x8] sm:$0xff pattern:$0x75316420]
    %v2250 = vld.sshfl [vmem:[#allocation1 + $0x10] sm:$0xff pattern:$0x75316420]
    %2251 = vrot.lane.b32.xlu0 %v2248, 111
    %v2252 = vpop.permute.xlu0 %2251
    %2253 = vrot.lane.b32.xlu0 %v2249, 111
    %v2254 = vpop.permute.xlu0 %2253
    %2255 = vrot.lane.b32.xlu0 %v2250, 111
    %v2256 = vpop.permute.xlu0 %2255
    %v2257 = vsel %vm638, %v2252, %v2254
    %v2258 = vsel %vm638, %v2254, %v2256
    %v2261 = vsel %vm622, %v2257, 0.0
    %v2262 = vsel %vm623, %v2258, 0.0
    %v2263 = vpack.c.bf16 %v2261, %v2261
    %v2264 = vpack.c.bf16 %v2262, %v2262
    %v2266 = vsel %vm161, %v2263, 0
    %v2269 = vsel %vm161, %v2264, 0
    %2271 = vmatpush.bf16.msra.mxu0 0
    %2272 = vmatpush.bf16.msra.mxu0 0
    %2273 = vmatpush.bf16.msra.mxu0 0
    %2274 = vmatpush.bf16.msra.mxu0 0
    %2275 = vmatpush.bf16.msra.mxu0 0
    %2276 = vmatpush.bf16.msra.mxu0 0
    %2277 = vmatpush.bf16.msra.mxu0 0
    %2278 = vmatpush.bf16.msra.mxu0 %v2266
    %2279 = vmatmul.bf16.gmra.mxu0 %v1207
    %v2280 = vpop.f32.mrf.mxu0
    %v2281 = vadd.f32 0.0, %v2280
    %v2282 = vpop.f32.mrf.mxu0
    %2283 = vdwg.mxu0
    %2284 = vmatpush.bf16.msra.mxu0 0
    %2285 = vmatpush.bf16.msra.mxu0 0
    %2286 = vmatpush.bf16.msra.mxu0 0
    %2287 = vmatpush.bf16.msra.mxu0 0
    %2288 = vmatpush.bf16.msra.mxu0 0
    %2289 = vmatpush.bf16.msra.mxu0 0
    %2290 = vmatpush.bf16.msra.mxu0 0
    %2291 = vmatpush.bf16.msra.mxu0 %v2269
    %2292 = vmatmul.bf16.gmra.mxu0 %v1207
    %v2293 = vpop.f32.mrf.mxu0
    %v2294 = vadd.f32 0.0, %v2293
    %v2295 = vpop.f32.mrf.mxu0
    %2296 = vdwg.mxu0
    %v2297 = vadd.f32 %v2239, %v2281
    %v2298 = vadd.f32 %v2240, %v2294
    %v2299 = vmul.f32 %v2297, %v1246
    %v2300 = vmul.f32 %v2298, %v1246
    %v2301 = vadd.f32 %v2299, %v1253
    %v2302 = vadd.f32 %v2300, %v1253
    %vm2303 = vcmp.ge.f32.partialorder %v2301, 1.0
    %vm2304 = vcmp.ge.f32.partialorder %v2302, 1.0
    %v2305 = vsel %vm2303, 1, 0
    %v2306 = vsel %vm2304, 1, 0
    %v2307 = vcvt.s32.f32 %v2305
    %v2308 = vcvt.s32.f32 %v2306
    %v2311 = vrot.slane %v2308, 4
    %v2312 = vsel %vm707, %v2307, %v2311
    %v2314 = vadd.f32 %v1271, %v2312
    %s2315 = scalar_lea.vmem [#allocation3], 8
    %2316 = vst [vmem:[%s2315] sm:$0xff] %v2314
    // Predicated region
    $region34: #{tpu_custom_call.1} parent=1 // pred_check
      _
    $region35: #{tpu_custom_call.1} parent=1 // pred_check_branch
      %2318 = sbr.rel (0) target = $region37
    $region36: #{tpu_custom_call.1} parent=1 // pred_region
      %2320 = vsyncadd [#allocation4], 0
      %s2321 = sshll.u32 [#allocation3], 4
      %s2322 = int_to_ptr.vmem [resolvable:$true] %s2321
      %s2323 = sshll.u32 %s8, 4
      %s2324 = int_to_ptr.hbm [resolvable:$true] %s2323
      %2329 = dma.vmem_to_hbm [thread:$0]  %s2322, 256, %s2324, [#allocation4], 128, 128, 8
    $region37: #{tpu_custom_call.1} parent=1 // pred_fallthru
      _
    // Predicated region
    $region38: #{tpu_custom_call.1} parent=1 // pred_check
      _
    $region39: #{tpu_custom_call.1} parent=1 // pred_check_branch
      %2331 = sbr.rel (0) target = $region41
    $region40: #{tpu_custom_call.1} parent=1 // pred_region
      %2333 = dma.done [#allocation4], 256
    $region41: #{tpu_custom_call.1} parent=1 // pred_fallthru
      _
    %2334 = vsyncpa [#allocation4], 1

</llo_original>
